<compile_context>
chip_gen: v5e
topology: v5e:2x2
jax: 0.10.0
libtpu: 0.0.40
codegen_flags: <defaults>
</compile_context>

<pallas_src>
import functools

import numpy as np
import jax
import jax.numpy as jnp
from jax import lax
from jax.experimental import pallas as pl
from jax.experimental.pallas import tpu as pltpu

ALPHA = 0.1  # LeakyReLU negative slope


# ---------------------------------------------------------------------------
# Host-side construction of banded "row-matmul" weights.
# Activations live as (rows, width*C); a KxK conv becomes K row-taps
#     out_row[y] = sum_dy in_row[y+dy-1] @ M[dy]
# where M[dy] is a banded (width_in*Cin, width_out*Cout) matrix encoding the
# width taps AND the zero padding at the width edges.  The per-tap matrices are
# later stacked along K so each stage is a single matmul.
# ---------------------------------------------------------------------------
def _band_from_conv3(w_hwio, width):
    """3x3 stride-1 pad-1 conv -> (3, width*Cin, width*Cout) f32 band matrices."""
    mats = []
    for dy in range(3):
        m = None
        for dx in range(3):
            # ind[xi, xo] = 1  iff  xi == xo + dx - 1   (edge taps simply drop out)
            ind = np.eye(width, k=1 - dx, dtype=np.float32)
            term = jnp.kron(jnp.asarray(ind), w_hwio[dy, dx].astype(jnp.float32))
            m = term if m is None else m + term
        mats.append(m)
    return jnp.stack(mats)


def _band_from_convT4(w_ct, width_in):
    """ConvTranspose2d(k=4, s=2, p=1) row kernels.

    w_ct: PyTorch layout (Cin, Cout, 4, 4).
    Returns (4, width_in*Cin, 2*width_in*Cout) f32; M[ky] maps one input row to
    one output row (the 2x width upsample + phase interleave is inside the band
    structure, so no zero-dilated input is ever built).
    """
    width_out = 2 * width_in
    mats = []
    for ky in range(4):
        m = None
        for kx in range(4):
            ind = np.zeros((width_in, width_out), np.float32)
            ix = np.arange(width_in)
            xo = 2 * ix - 1 + kx          # output column touched by (ix, kx)
            ok = (xo >= 0) & (xo < width_out)
            ind[ix[ok], xo[ok]] = 1.0
            term = jnp.kron(jnp.asarray(ind), w_ct[:, :, ky, kx].astype(jnp.float32))
            m = term if m is None else m + term
        mats.append(m)
    return jnp.stack(mats)


# ---------------------------------------------------------------------------
# Fused Pallas kernel: one grid step = `bb` batch images flattened into the row
# (M) axis.  Even/odd output rows are kept as separate planes so every row
# access is a statically offset slice — no strided stores, no transposes.
# ---------------------------------------------------------------------------
def _up2d_fused_kernel(x_ref, se_ref, so_ref, wt_ref, w1_ref, w2_ref,
                       bu_ref, b1_ref, b2_ref,
                       oe_ref, oo_ref,
                       s1_ref, s2_ref, s3_ref, *, h):
    f32, bf16 = jnp.float32, jnp.bfloat16
    R = x_ref.shape[0]                 # flattened rows this step (= bb * h)
    bb = R // h                        # images flattened into M
    WC = x_ref.shape[1]                # W  * Cin
    W2C = bu_ref.shape[1] // 2         # W2 * Cin
    W2O = oe_ref.shape[1]              # W2 * Cout

    def lrelu(v):
        return jnp.where(v >= 0, v, ALPHA * v)

    def shift_down_store(dst, row0, col0, cols, src):
        # dst[row0 + r, col0:col0+cols] = src[r-1] within each image; 0 at image row 0
        dst[row0 + 1:row0 + R, col0:col0 + cols] = src[0:R - 1]
        for n in range(bb):
            r = n * h
            dst[row0 + r:row0 + r + 1, col0:col0 + cols] = jnp.zeros((1, cols), dst.dtype)

    def shift_up_store(dst, row0, col0, cols, src):
        # dst[row0 + r, col0:col0+cols] = src[r+1] within each image; 0 at image row h-1
        dst[row0:row0 + R - 1, col0:col0 + cols] = src[1:R]
        for n in range(bb):
            r = n * h + h - 1
            dst[row0 + r:row0 + r + 1, col0:col0 + cols] = jnp.zeros((1, cols), dst.dtype)

    # ---- stage 1: ConvTranspose2d(4, s=2, p=1) + LeakyReLU — ONE dot --------
    # LHS row m = [x[m-1] || x[m] || x[m+1]]; RHS packs even|odd phase columns.
    xb = x_ref[...].astype(bf16)
    s1_ref[:, WC:2 * WC] = xb                                    # x[m]
    shift_down_store(s1_ref, 0, 0, WC, xb)                       # x[m-1]
    shift_up_store(s1_ref, 0, 2 * WC, WC, xb)                    # x[m+1]
    x0 = lrelu(jnp.dot(s1_ref[...], wt_ref[...],
                       preferred_element_type=f32) + bu_ref[...])
    x0 = x0.astype(bf16)                                         # cast once
    x0_even, x0_odd = x0[:, :W2C], x0[:, W2C:]                   # rows 2m / 2m+1

    # ---- stage 2: Conv2d 3x3 pad 1 + LeakyReLU — ONE dot, phases M-stacked --
    # even output rows 2m   -> s2 rows [0, R)
    shift_down_store(s2_ref, 0, 0, W2C, x0_odd)                  # x0[2m-1]
    s2_ref[0:R, W2C:2 * W2C] = x0_even                           # x0[2m]
    s2_ref[0:R, 2 * W2C:3 * W2C] = x0_odd                        # x0[2m+1]
    # odd output rows 2m+1  -> s2 rows [R, 2R)
    s2_ref[R:2 * R, 0:W2C] = x0_even                             # x0[2m]
    s2_ref[R:2 * R, W2C:2 * W2C] = x0_odd                        # x0[2m+1]
    shift_up_store(s2_ref, R, 2 * W2C, W2C, x0_even)             # x0[2m+2]
    x1 = lrelu(jnp.dot(s2_ref[...], w1_ref[...],
                       preferred_element_type=f32) + b1_ref[...])
    x1 = x1.astype(bf16)                                         # cast once
    x1_even, x1_odd = x1[0:R], x1[R:2 * R]

    # ---- stage 3: concat(x1, skip) + Conv2d 3x3 + LeakyReLU — ONE dot -------
    # concat is fused into K: [x1 prev|cur|next || skip prev|cur|next].
    seb = se_ref[...].astype(bf16)
    sob = so_ref[...].astype(bf16)
    # even output rows 2m
    shift_down_store(s3_ref, 0, 0 * W2O, W2O, x1_odd)            # x1[2m-1]
    s3_ref[0:R, 1 * W2O:2 * W2O] = x1_even                       # x1[2m]
    s3_ref[0:R, 2 * W2O:3 * W2O] = x1_odd                        # x1[2m+1]
    shift_down_store(s3_ref, 0, 3 * W2O, W2O, sob)               # skip[2m-1]
    s3_ref[0:R, 4 * W2O:5 * W2O] = seb                           # skip[2m]
    s3_ref[0:R, 5 * W2O:6 * W2O] = sob                           # skip[2m+1]
    # odd output rows 2m+1
    s3_ref[R:2 * R, 0 * W2O:1 * W2O] = x1_even                   # x1[2m]
    s3_ref[R:2 * R, 1 * W2O:2 * W2O] = x1_odd                    # x1[2m+1]
    shift_up_store(s3_ref, R, 2 * W2O, W2O, x1_even)             # x1[2m+2]
    s3_ref[R:2 * R, 3 * W2O:4 * W2O] = seb                       # skip[2m]
    s3_ref[R:2 * R, 4 * W2O:5 * W2O] = sob                       # skip[2m+1]
    shift_up_store(s3_ref, R, 5 * W2O, W2O, seb)                 # skip[2m+2]
    y = lrelu(jnp.dot(s3_ref[...], w2_ref[...],
                      preferred_element_type=f32) + b2_ref[...])
    oe_ref[...] = y[0:R].astype(oe_ref.dtype)                    # output rows 2m
    oo_ref[...] = y[R:2 * R].astype(oo_ref.dtype)                # output rows 2m+1


def _auto_batch_tile(n):
    """Largest divisor of n that still leaves >= 2 grid steps (feeds v7x's 2 TCs)."""
    if n <= 1:
        return 1
    best = 1
    for bb in range(1, n + 1):
        if n % bb == 0 and n // bb >= 2:
            best = bb
    return best


# ---------------------------------------------------------------------------
# Up2D forward (NCHW in / NCHW out, matching the PyTorch module)
# ---------------------------------------------------------------------------
def up2d_forward(params, x_nchw, skip_nchw, *, batch_tile=None):
    N, Cin, H, W = x_nchw.shape
    Cout = params["conv1_w"].shape[-1]
    H2, W2 = 2 * H, 2 * W
    dtype = x_nchw.dtype
    f32, bf16 = jnp.float32, jnp.bfloat16
    WC, W2C, W2O = W * Cin, W2 * Cin, W2 * Cout

    bb = _auto_batch_tile(N) if batch_tile is None else batch_tile
    assert N % bb == 0, (N, bb)

    # --- layout plumbing (reshape/transpose only; in a real decoder keep the
    #     (rows, width*C) layout across layers to avoid these HBM round-trips) -
    x2d = jnp.transpose(x_nchw, (0, 2, 3, 1)).reshape(N * H, WC)
    skip_rows = jnp.transpose(skip_nchw, (0, 2, 3, 1)).reshape(N, H, 2, W2O)
    se2d = skip_rows[:, :, 0, :].reshape(N * H, W2O)      # skip even rows
    so2d = skip_rows[:, :, 1, :].reshape(N * H, W2O)      # skip odd rows

    # --- K-stacked banded weights (bf16) and row-broadcast biases (f32) ------
    # (built per call here for the demo; precompute once in a real decoder)
    wt_b = _band_from_convT4(params["unpool_w"], W)                 # (4, WC,  W2C)
    w1_b = _band_from_conv3(params["conv1_w"], W2)                  # (3, W2C, W2O)
    w2a_b = _band_from_conv3(params["conv2_w"][:, :, :Cout, :], W2)  # x1 half
    w2b_b = _band_from_conv3(params["conv2_w"][:, :, Cout:, :], W2)  # skip half

    zc = jnp.zeros((WC, W2C), f32)
    wt_comb = jnp.concatenate([                                     # (3*WC, 2*W2C)
        jnp.concatenate([wt_b[3], zc], axis=1),        # K block: x[m-1]
        jnp.concatenate([wt_b[1], wt_b[2]], axis=1),   # K block: x[m]
        jnp.concatenate([zc, wt_b[0]], axis=1),        # K block: x[m+1]
    ], axis=0).astype(bf16)
    w1_comb = jnp.concatenate([w1_b[0], w1_b[1], w1_b[2]], axis=0).astype(bf16)
    w2_comb = jnp.concatenate([w2a_b[0], w2a_b[1], w2a_b[2],
                               w2b_b[0], w2b_b[1], w2b_b[2]], axis=0).astype(bf16)

    bu = jnp.tile(params["unpool_b"].astype(f32), 2 * W2).reshape(1, 2 * W2C)
    b1 = jnp.tile(params["conv1_b"].astype(f32), W2).reshape(1, W2O)
    b2 = jnp.tile(params["conv2_b"].astype(f32), W2).reshape(1, W2O)

    out_even, out_odd = pl.pallas_call(
        functools.partial(_up2d_fused_kernel, h=H),
        out_shape=(jax.ShapeDtypeStruct((N * H, W2O), dtype),
                   jax.ShapeDtypeStruct((N * H, W2O), dtype)),
        grid=(N // bb,),   # batch tiles; "parallel" -> shards over v7x's 2 TCs
        in_specs=[
            pl.BlockSpec((bb * H, WC), lambda n: (n, 0)),
            pl.BlockSpec((bb * H, W2O), lambda n: (n, 0)),
            pl.BlockSpec((bb * H, W2O), lambda n: (n, 0)),
            pl.BlockSpec((3 * WC, 2 * W2C), lambda n: (0, 0)),     # constant blocks:
            pl.BlockSpec((3 * W2C, W2O), lambda n: (0, 0)),        # fetched once
            pl.BlockSpec((6 * W2O, W2O), lambda n: (0, 0)),
            pl.BlockSpec((1, 2 * W2C), lambda n: (0, 0)),
            pl.BlockSpec((1, W2O), lambda n: (0, 0)),
            pl.BlockSpec((1, W2O), lambda n: (0, 0)),
        ],
        out_specs=[pl.BlockSpec((bb * H, W2O), lambda n: (n, 0)),
                   pl.BlockSpec((bb * H, W2O), lambda n: (n, 0))],
        scratch_shapes=[
            pltpu.VMEM((bb * H, 3 * WC), jnp.bfloat16),       # stage-1 im2col rows
            pltpu.VMEM((2 * bb * H, 3 * W2C), jnp.bfloat16),  # stage-2 im2col rows
            pltpu.VMEM((2 * bb * H, 6 * W2O), jnp.bfloat16),  # stage-3 im2col rows
        ],
        compiler_params=pltpu.CompilerParams(
            dimension_semantics=("parallel",),
            vmem_limit_bytes=48 * 1024 * 1024,
        ),
    )(x2d, se2d, so2d, wt_comb, w1_comb, w2_comb, bu, b1, b2)

    # re-interleave even/odd row planes and go back to NCHW (free XLA reshape)
    y = jnp.stack([out_even, out_odd], axis=1)          # (N*H, 2, W2*Cout)
    y = y.reshape(N, H2, W2, Cout)
    return jnp.transpose(y, (0, 3, 1, 2))


def init_params(key, in_channels, out_channels):
    ks = jax.random.split(key, 6)
    # unpooling2d: ConvTranspose2d weights in PyTorch layout (Cin, Cin, 4, 4)
    unpool_w = 0.1 * jax.random.normal(ks[0], (in_channels, in_channels, 4, 4), jnp.float32)
    unpool_b = 0.1 * jax.random.normal(ks[1], (in_channels,), jnp.float32)
    # conv1: Conv2d(in, out, 3) stored HWIO
    conv1_w = 0.1 * jax.random.normal(ks[2], (3, 3, in_channels, out_channels), jnp.float32)
    conv1_b = 0.1 * jax.random.normal(ks[3], (out_channels,), jnp.float32)
    # conv2: Conv2d(2*out, out, 3) stored HWIO (first half: x1, second half: skip)
    conv2_w = 0.1 * jax.random.normal(ks[4], (3, 3, 2 * out_channels, out_channels), jnp.float32)
    conv2_b = 0.1 * jax.random.normal(ks[5], (out_channels,), jnp.float32)
    return dict(unpool_w=unpool_w, unpool_b=unpool_b,
                conv1_w=conv1_w, conv1_b=conv1_b,
                conv2_w=conv2_w, conv2_b=conv2_b)


# ---------------------------------------------------------------------------
# Pure-JAX (lax.conv, f32) reference of the PyTorch semantics, for verification.
# ---------------------------------------------------------------------------
def _lrelu(x):
    return jnp.where(x >= 0, x, ALPHA * x)


def up2d_reference(params, x_nchw, skip_nchw):
    dn = ("NCHW", "OIHW", "NCHW")
    w_ct = params["unpool_w"]                                   # (Cin, Cout, 4, 4)
    w_eq = jnp.transpose(w_ct, (1, 0, 2, 3))[:, :, ::-1, ::-1]  # OIHW, flipped
    x0 = lax.conv_general_dilated(x_nchw, w_eq, (1, 1), [(2, 2), (2, 2)],
                                  lhs_dilation=(2, 2), dimension_numbers=dn)
    x0 = _lrelu(x0 + params["unpool_b"][None, :, None, None])
    w1 = jnp.transpose(params["conv1_w"], (3, 2, 0, 1))          # HWIO -> OIHW
    x1 = lax.conv_general_dilated(x0, w1, (1, 1), [(1, 1), (1, 1)],
                                  dimension_numbers=dn)
    x1 = _lrelu(x1 + params["conv1_b"][None, :, None, None])
    xc = jnp.concatenate([x1, skip_nchw], axis=1)
    w2 = jnp.transpose(params["conv2_w"], (3, 2, 0, 1))
    x2 = lax.conv_general_dilated(xc, w2, (1, 1), [(1, 1), (1, 1)],
                                  dimension_numbers=dn)
    return _lrelu(x2 + params["conv2_b"][None, :, None, None])


if __name__ == "__main__":
    in_channels, out_channels = 4, 8
    N, H, W = 2, 16, 16

    key = jax.random.PRNGKey(0)
    k_p, k_x, k_s = jax.random.split(key, 3)
    params = init_params(k_p, in_channels, out_channels)
    x = jax.random.normal(k_x, (N, in_channels, H, W), jnp.float32)
    skip = jax.random.normal(k_s, (N, out_channels, 2 * H, 2 * W), jnp.float32)

    fwd = jax.jit(up2d_forward)
    out = jax.block_until_ready(fwd(params, x, skip))
    assert out.shape == (N, out_channels, 2 * H, 2 * W), out.shape

    ref = jax.block_until_ready(up2d_reference(params, x, skip))
    # bf16 MXU operands / bf16 staged activations with f32 accumulation
    # -> tolerance intentionally loosened vs the f32 reference.
    max_err = float(jnp.max(jnp.abs(out - ref)))
    assert jnp.allclose(out, ref, atol=3e-2, rtol=3e-2), max_err

    print("KERNEL_OK")
</pallas_src>

<mosaic_0001>
module attributes {stable_mosaic.version = 11 : i64} {
  func.func @_up2d_fused_kernel(%arg0: i32, %arg1: memref<16x64xf32, #tpu.memory_space<vmem>>, %arg2: memref<16x256xf32, #tpu.memory_space<vmem>>, %arg3: memref<16x256xf32, #tpu.memory_space<vmem>>, %arg4: memref<192x256xbf16, #tpu.memory_space<vmem>>, %arg5: memref<384x256xbf16, #tpu.memory_space<vmem>>, %arg6: memref<1536x256xbf16, #tpu.memory_space<vmem>>, %arg7: memref<1x256xf32, #tpu.memory_space<vmem>>, %arg8: memref<1x256xf32, #tpu.memory_space<vmem>>, %arg9: memref<1x256xf32, #tpu.memory_space<vmem>>, %arg10: memref<16x256xf32, #tpu.memory_space<vmem>>, %arg11: memref<16x256xf32, #tpu.memory_space<vmem>>, %arg12: memref<16x192xbf16, #tpu.memory_space<vmem>>, %arg13: memref<32x384xbf16, #tpu.memory_space<vmem>>, %arg14: memref<32x1536xbf16, #tpu.memory_space<vmem>>) attributes {dimension_semantics = [#tpu.dimension_semantics<parallel>], iteration_bounds = array<i64: 2>, scalar_prefetch = 0 : i64, scratch_operands = 3 : i64, tpu.core_type = #tpu.core_type<tc>, window_params = [{transform_indices = @transform_0, window_bounds = array<i64: 16, 64>}, {transform_indices = @transform_1, window_bounds = array<i64: 16, 256>}, {transform_indices = @transform_2, window_bounds = array<i64: 16, 256>}, {pipeline_mode = #tpu.pipeline_mode<synchronous>, transform_indices = @transform_3, window_bounds = array<i64: 192, 256>}, {pipeline_mode = #tpu.pipeline_mode<synchronous>, transform_indices = @transform_4, window_bounds = array<i64: 384, 256>}, {pipeline_mode = #tpu.pipeline_mode<synchronous>, transform_indices = @transform_5, window_bounds = array<i64: 1536, 256>}, {pipeline_mode = #tpu.pipeline_mode<synchronous>, transform_indices = @transform_6, window_bounds = array<i64: 1, 256>}, {pipeline_mode = #tpu.pipeline_mode<synchronous>, transform_indices = @transform_7, window_bounds = array<i64: 1, 256>}, {pipeline_mode = #tpu.pipeline_mode<synchronous>, transform_indices = @transform_8, window_bounds = array<i64: 1, 256>}, {transform_indices = @transform_9, window_bounds = array<i64: 16, 256>}, {transform_indices = @transform_10, window_bounds = array<i64: 16, 256>}]} {
    %c0 = arith.constant 0 : index
    %c0_0 = arith.constant 0 : index
    %0 = vector.load %arg1[%c0, %c0_0] : memref<16x64xf32, #tpu.memory_space<vmem>>, vector<16x64xf32>
    %1 = arith.truncf %0 : vector<16x64xf32> to vector<16x64xbf16>
    %c0_1 = arith.constant 0 : index
    %c64 = arith.constant 64 : index
    %2 = vector.load %arg12[%c0_1, %c64] : memref<16x192xbf16, #tpu.memory_space<vmem>>, vector<16x64xbf16>
    tpu.vector_store %arg12[%c0_1, %c64], %1 {strides = array<i32>} : memref<16x192xbf16, #tpu.memory_space<vmem>>, vector<16x64xbf16>,
    %3 = vector.extract_strided_slice %1 {offsets = [0, 0], sizes = [15, 64], strides = [1, 1]} : vector<16x64xbf16> to vector<15x64xbf16>
    %c1 = arith.constant 1 : index
    %c0_2 = arith.constant 0 : index
    %4 = vector.load %arg12[%c1, %c0_2] : memref<16x192xbf16, #tpu.memory_space<vmem>>, vector<15x64xbf16>
    tpu.vector_store %arg12[%c1, %c0_2], %3 {strides = array<i32>} : memref<16x192xbf16, #tpu.memory_space<vmem>>, vector<15x64xbf16>,
    %cst = arith.constant 0.000000e+00 : bf16
    %5 = vector.broadcast %cst : bf16 to vector<1x64xbf16>
    %c0_3 = arith.constant 0 : index
    %c0_4 = arith.constant 0 : index
    %6 = vector.load %arg12[%c0_3, %c0_4] : memref<16x192xbf16, #tpu.memory_space<vmem>>, vector<1x64xbf16>
    tpu.vector_store %arg12[%c0_3, %c0_4], %5 {strides = array<i32>} : memref<16x192xbf16, #tpu.memory_space<vmem>>, vector<1x64xbf16>,
    %7 = vector.extract_strided_slice %1 {offsets = [1, 0], sizes = [15, 64], strides = [1, 1]} : vector<16x64xbf16> to vector<15x64xbf16>
    %c0_5 = arith.constant 0 : index
    %c128 = arith.constant 128 : index
    %8 = vector.load %arg12[%c0_5, %c128] : memref<16x192xbf16, #tpu.memory_space<vmem>>, vector<15x64xbf16>
    tpu.vector_store %arg12[%c0_5, %c128], %7 {strides = array<i32>} : memref<16x192xbf16, #tpu.memory_space<vmem>>, vector<15x64xbf16>,
    %cst_6 = arith.constant 0.000000e+00 : bf16
    %9 = vector.broadcast %cst_6 : bf16 to vector<1x64xbf16>
    %c15 = arith.constant 15 : index
    %c128_7 = arith.constant 128 : index
    %10 = vector.load %arg12[%c15, %c128_7] : memref<16x192xbf16, #tpu.memory_space<vmem>>, vector<1x64xbf16>
    tpu.vector_store %arg12[%c15, %c128_7], %9 {strides = array<i32>} : memref<16x192xbf16, #tpu.memory_space<vmem>>, vector<1x64xbf16>,
    %c0_8 = arith.constant 0 : index
    %c0_9 = arith.constant 0 : index
    %11 = vector.load %arg12[%c0_8, %c0_9] : memref<16x192xbf16, #tpu.memory_space<vmem>>, vector<16x192xbf16>
    %c0_10 = arith.constant 0 : index
    %c0_11 = arith.constant 0 : index
    %12 = vector.load %arg4[%c0_10, %c0_11] : memref<192x256xbf16, #tpu.memory_space<vmem>>, vector<192x256xbf16>
    %cst_12 = arith.constant dense<0.000000e+00> : vector<16x256xf32>
    %13 = tpu.matmul %11, %12, %cst_12 {dimension_numbers = #tpu.dot_dimension_numbers<[1], [0], [0], [1], [0, 0, 1, 1], [], []>} : vector<16x192xbf16>, vector<192x256xbf16>, vector<16x256xf32> -> vector<16x256xf32>
    %c0_13 = arith.constant 0 : index
    %c0_14 = arith.constant 0 : index
    %14 = vector.load %arg7[%c0_13, %c0_14] : memref<1x256xf32, #tpu.memory_space<vmem>>, vector<1x256xf32>
    %15 = vector.broadcast %14 : vector<1x256xf32> to vector<16x256xf32>
    %16 = arith.addf %13, %15 : vector<16x256xf32>
    %cst_15 = arith.constant 0.000000e+00 : f32
    %17 = vector.broadcast %cst_15 : f32 to vector<16x256xf32>
    %18 = arith.cmpf oge, %16, %17 : vector<16x256xf32>
    %cst_16 = arith.constant 1.000000e-01 : f32
    %19 = vector.broadcast %cst_16 : f32 to vector<16x256xf32>
    %20 = arith.mulf %19, %16 : vector<16x256xf32>
    %21 = arith.select %18, %16, %20 : vector<16x256xi1>, vector<16x256xf32>
    %22 = arith.truncf %21 : vector<16x256xf32> to vector<16x256xbf16>
    %23 = vector.extract_strided_slice %22 {offsets = [0, 0], sizes = [16, 128], strides = [1, 1]} : vector<16x256xbf16> to vector<16x128xbf16>
    %24 = vector.extract_strided_slice %22 {offsets = [0, 128], sizes = [16, 128], strides = [1, 1]} : vector<16x256xbf16> to vector<16x128xbf16>
    %25 = vector.extract_strided_slice %24 {offsets = [0, 0], sizes = [15, 128], strides = [1, 1]} : vector<16x128xbf16> to vector<15x128xbf16>
    %c1_17 = arith.constant 1 : index
    %c0_18 = arith.constant 0 : index
    %26 = vector.load %arg13[%c1_17, %c0_18] : memref<32x384xbf16, #tpu.memory_space<vmem>>, vector<15x128xbf16>
    tpu.vector_store %arg13[%c1_17, %c0_18], %25 {strides = array<i32>} : memref<32x384xbf16, #tpu.memory_space<vmem>>, vector<15x128xbf16>,
    %cst_19 = arith.constant 0.000000e+00 : bf16
    %27 = vector.broadcast %cst_19 : bf16 to vector<1x128xbf16>
    %c0_20 = arith.constant 0 : index
    %c0_21 = arith.constant 0 : index
    %28 = vector.load %arg13[%c0_20, %c0_21] : memref<32x384xbf16, #tpu.memory_space<vmem>>, vector<1x128xbf16>
    tpu.vector_store %arg13[%c0_20, %c0_21], %27 {strides = array<i32>} : memref<32x384xbf16, #tpu.memory_space<vmem>>, vector<1x128xbf16>,
    %c0_22 = arith.constant 0 : index
    %c128_23 = arith.constant 128 : index
    %29 = vector.load %arg13[%c0_22, %c128_23] : memref<32x384xbf16, #tpu.memory_space<vmem>>, vector<16x128xbf16>
    tpu.vector_store %arg13[%c0_22, %c128_23], %23 {strides = array<i32>} : memref<32x384xbf16, #tpu.memory_space<vmem>>, vector<16x128xbf16>,
    %c0_24 = arith.constant 0 : index
    %c256 = arith.constant 256 : index
    %30 = vector.load %arg13[%c0_24, %c256] : memref<32x384xbf16, #tpu.memory_space<vmem>>, vector<16x128xbf16>
    tpu.vector_store %arg13[%c0_24, %c256], %24 {strides = array<i32>} : memref<32x384xbf16, #tpu.memory_space<vmem>>, vector<16x128xbf16>,
    %c16 = arith.constant 16 : index
    %c0_25 = arith.constant 0 : index
    %31 = vector.load %arg13[%c16, %c0_25] : memref<32x384xbf16, #tpu.memory_space<vmem>>, vector<16x128xbf16>
    tpu.vector_store %arg13[%c16, %c0_25], %23 {strides = array<i32>} : memref<32x384xbf16, #tpu.memory_space<vmem>>, vector<16x128xbf16>,
    %c16_26 = arith.constant 16 : index
    %c128_27 = arith.constant 128 : index
    %32 = vector.load %arg13[%c16_26, %c128_27] : memref<32x384xbf16, #tpu.memory_space<vmem>>, vector<16x128xbf16>
    tpu.vector_store %arg13[%c16_26, %c128_27], %24 {strides = array<i32>} : memref<32x384xbf16, #tpu.memory_space<vmem>>, vector<16x128xbf16>,
    %33 = vector.extract_strided_slice %23 {offsets = [1, 0], sizes = [15, 128], strides = [1, 1]} : vector<16x128xbf16> to vector<15x128xbf16>
    %c16_28 = arith.constant 16 : index
    %c256_29 = arith.constant 256 : index
    %34 = vector.load %arg13[%c16_28, %c256_29] : memref<32x384xbf16, #tpu.memory_space<vmem>>, vector<15x128xbf16>
    tpu.vector_store %arg13[%c16_28, %c256_29], %33 {strides = array<i32>} : memref<32x384xbf16, #tpu.memory_space<vmem>>, vector<15x128xbf16>,
    %cst_30 = arith.constant 0.000000e+00 : bf16
    %35 = vector.broadcast %cst_30 : bf16 to vector<1x128xbf16>
    %c31 = arith.constant 31 : index
    %c256_31 = arith.constant 256 : index
    %36 = vector.load %arg13[%c31, %c256_31] : memref<32x384xbf16, #tpu.memory_space<vmem>>, vector<1x128xbf16>
    tpu.vector_store %arg13[%c31, %c256_31], %35 {strides = array<i32>} : memref<32x384xbf16, #tpu.memory_space<vmem>>, vector<1x128xbf16>,
    %c0_32 = arith.constant 0 : index
    %c0_33 = arith.constant 0 : index
    %37 = vector.load %arg13[%c0_32, %c0_33] : memref<32x384xbf16, #tpu.memory_space<vmem>>, vector<32x384xbf16>
    %c0_34 = arith.constant 0 : index
    %c0_35 = arith.constant 0 : index
    %38 = vector.load %arg5[%c0_34, %c0_35] : memref<384x256xbf16, #tpu.memory_space<vmem>>, vector<384x256xbf16>
    %cst_36 = arith.constant dense<0.000000e+00> : vector<32x256xf32>
    %39 = tpu.matmul %37, %38, %cst_36 {dimension_numbers = #tpu.dot_dimension_numbers<[1], [0], [0], [1], [0, 0, 1, 1], [], []>} : vector<32x384xbf16>, vector<384x256xbf16>, vector<32x256xf32> -> vector<32x256xf32>
    %c0_37 = arith.constant 0 : index
    %c0_38 = arith.constant 0 : index
    %40 = vector.load %arg8[%c0_37, %c0_38] : memref<1x256xf32, #tpu.memory_space<vmem>>, vector<1x256xf32>
    %41 = vector.broadcast %40 : vector<1x256xf32> to vector<32x256xf32>
    %42 = arith.addf %39, %41 : vector<32x256xf32>
    %cst_39 = arith.constant 0.000000e+00 : f32
    %43 = vector.broadcast %cst_39 : f32 to vector<32x256xf32>
    %44 = arith.cmpf oge, %42, %43 : vector<32x256xf32>
    %cst_40 = arith.constant 1.000000e-01 : f32
    %45 = vector.broadcast %cst_40 : f32 to vector<32x256xf32>
    %46 = arith.mulf %45, %42 : vector<32x256xf32>
    %47 = arith.select %44, %42, %46 : vector<32x256xi1>, vector<32x256xf32>
    %48 = arith.truncf %47 : vector<32x256xf32> to vector<32x256xbf16>
    %49 = vector.extract_strided_slice %48 {offsets = [0, 0], sizes = [16, 256], strides = [1, 1]} : vector<32x256xbf16> to vector<16x256xbf16>
    %50 = vector.extract_strided_slice %48 {offsets = [16, 0], sizes = [16, 256], strides = [1, 1]} : vector<32x256xbf16> to vector<16x256xbf16>
    %c0_41 = arith.constant 0 : index
    %c0_42 = arith.constant 0 : index
    %51 = vector.load %arg2[%c0_41, %c0_42] : memref<16x256xf32, #tpu.memory_space<vmem>>, vector<16x256xf32>
    %52 = arith.truncf %51 : vector<16x256xf32> to vector<16x256xbf16>
    %c0_43 = arith.constant 0 : index
    %c0_44 = arith.constant 0 : index
    %53 = vector.load %arg3[%c0_43, %c0_44] : memref<16x256xf32, #tpu.memory_space<vmem>>, vector<16x256xf32>
    %54 = arith.truncf %53 : vector<16x256xf32> to vector<16x256xbf16>
    %55 = vector.extract_strided_slice %50 {offsets = [0, 0], sizes = [15, 256], strides = [1, 1]} : vector<16x256xbf16> to vector<15x256xbf16>
    %c1_45 = arith.constant 1 : index
    %c0_46 = arith.constant 0 : index
    %56 = vector.load %arg14[%c1_45, %c0_46] : memref<32x1536xbf16, #tpu.memory_space<vmem>>, vector<15x256xbf16>
    tpu.vector_store %arg14[%c1_45, %c0_46], %55 {strides = array<i32>} : memref<32x1536xbf16, #tpu.memory_space<vmem>>, vector<15x256xbf16>,
    %cst_47 = arith.constant 0.000000e+00 : bf16
    %57 = vector.broadcast %cst_47 : bf16 to vector<1x256xbf16>
    %c0_48 = arith.constant 0 : index
    %c0_49 = arith.constant 0 : index
    %58 = vector.load %arg14[%c0_48, %c0_49] : memref<32x1536xbf16, #tpu.memory_space<vmem>>, vector<1x256xbf16>
    tpu.vector_store %arg14[%c0_48, %c0_49], %57 {strides = array<i32>} : memref<32x1536xbf16, #tpu.memory_space<vmem>>, vector<1x256xbf16>,
    %c0_50 = arith.constant 0 : index
    %c256_51 = arith.constant 256 : index
    %59 = vector.load %arg14[%c0_50, %c256_51] : memref<32x1536xbf16, #tpu.memory_space<vmem>>, vector<16x256xbf16>
    tpu.vector_store %arg14[%c0_50, %c256_51], %49 {strides = array<i32>} : memref<32x1536xbf16, #tpu.memory_space<vmem>>, vector<16x256xbf16>,
    %c0_52 = arith.constant 0 : index
    %c512 = arith.constant 512 : index
    %60 = vector.load %arg14[%c0_52, %c512] : memref<32x1536xbf16, #tpu.memory_space<vmem>>, vector<16x256xbf16>
    tpu.vector_store %arg14[%c0_52, %c512], %50 {strides = array<i32>} : memref<32x1536xbf16, #tpu.memory_space<vmem>>, vector<16x256xbf16>,
    %61 = vector.extract_strided_slice %54 {offsets = [0, 0], sizes = [15, 256], strides = [1, 1]} : vector<16x256xbf16> to vector<15x256xbf16>
    %c1_53 = arith.constant 1 : index
    %c768 = arith.constant 768 : index
    %62 = vector.load %arg14[%c1_53, %c768] : memref<32x1536xbf16, #tpu.memory_space<vmem>>, vector<15x256xbf16>
    tpu.vector_store %arg14[%c1_53, %c768], %61 {strides = array<i32>} : memref<32x1536xbf16, #tpu.memory_space<vmem>>, vector<15x256xbf16>,
    %cst_54 = arith.constant 0.000000e+00 : bf16
    %63 = vector.broadcast %cst_54 : bf16 to vector<1x256xbf16>
    %c0_55 = arith.constant 0 : index
    %c768_56 = arith.constant 768 : index
    %64 = vector.load %arg14[%c0_55, %c768_56] : memref<32x1536xbf16, #tpu.memory_space<vmem>>, vector<1x256xbf16>
    tpu.vector_store %arg14[%c0_55, %c768_56], %63 {strides = array<i32>} : memref<32x1536xbf16, #tpu.memory_space<vmem>>, vector<1x256xbf16>,
    %c0_57 = arith.constant 0 : index
    %c1024 = arith.constant 1024 : index
    %65 = vector.load %arg14[%c0_57, %c1024] : memref<32x1536xbf16, #tpu.memory_space<vmem>>, vector<16x256xbf16>
    tpu.vector_store %arg14[%c0_57, %c1024], %52 {strides = array<i32>} : memref<32x1536xbf16, #tpu.memory_space<vmem>>, vector<16x256xbf16>,
    %c0_58 = arith.constant 0 : index
    %c1280 = arith.constant 1280 : index
    %66 = vector.load %arg14[%c0_58, %c1280] : memref<32x1536xbf16, #tpu.memory_space<vmem>>, vector<16x256xbf16>
    tpu.vector_store %arg14[%c0_58, %c1280], %54 {strides = array<i32>} : memref<32x1536xbf16, #tpu.memory_space<vmem>>, vector<16x256xbf16>,
    %c16_59 = arith.constant 16 : index
    %c0_60 = arith.constant 0 : index
    %67 = vector.load %arg14[%c16_59, %c0_60] : memref<32x1536xbf16, #tpu.memory_space<vmem>>, vector<16x256xbf16>
    tpu.vector_store %arg14[%c16_59, %c0_60], %49 {strides = array<i32>} : memref<32x1536xbf16, #tpu.memory_space<vmem>>, vector<16x256xbf16>,
    %c16_61 = arith.constant 16 : index
    %c256_62 = arith.constant 256 : index
    %68 = vector.load %arg14[%c16_61, %c256_62] : memref<32x1536xbf16, #tpu.memory_space<vmem>>, vector<16x256xbf16>
    tpu.vector_store %arg14[%c16_61, %c256_62], %50 {strides = array<i32>} : memref<32x1536xbf16, #tpu.memory_space<vmem>>, vector<16x256xbf16>,
    %69 = vector.extract_strided_slice %49 {offsets = [1, 0], sizes = [15, 256], strides = [1, 1]} : vector<16x256xbf16> to vector<15x256xbf16>
    %c16_63 = arith.constant 16 : index
    %c512_64 = arith.constant 512 : index
    %70 = vector.load %arg14[%c16_63, %c512_64] : memref<32x1536xbf16, #tpu.memory_space<vmem>>, vector<15x256xbf16>
    tpu.vector_store %arg14[%c16_63, %c512_64], %69 {strides = array<i32>} : memref<32x1536xbf16, #tpu.memory_space<vmem>>, vector<15x256xbf16>,
    %cst_65 = arith.constant 0.000000e+00 : bf16
    %71 = vector.broadcast %cst_65 : bf16 to vector<1x256xbf16>
    %c31_66 = arith.constant 31 : index
    %c512_67 = arith.constant 512 : index
    %72 = vector.load %arg14[%c31_66, %c512_67] : memref<32x1536xbf16, #tpu.memory_space<vmem>>, vector<1x256xbf16>
    tpu.vector_store %arg14[%c31_66, %c512_67], %71 {strides = array<i32>} : memref<32x1536xbf16, #tpu.memory_space<vmem>>, vector<1x256xbf16>,
    %c16_68 = arith.constant 16 : index
    %c768_69 = arith.constant 768 : index
    %73 = vector.load %arg14[%c16_68, %c768_69] : memref<32x1536xbf16, #tpu.memory_space<vmem>>, vector<16x256xbf16>
    tpu.vector_store %arg14[%c16_68, %c768_69], %52 {strides = array<i32>} : memref<32x1536xbf16, #tpu.memory_space<vmem>>, vector<16x256xbf16>,
    %c16_70 = arith.constant 16 : index
    %c1024_71 = arith.constant 1024 : index
    %74 = vector.load %arg14[%c16_70, %c1024_71] : memref<32x1536xbf16, #tpu.memory_space<vmem>>, vector<16x256xbf16>
    tpu.vector_store %arg14[%c16_70, %c1024_71], %54 {strides = array<i32>} : memref<32x1536xbf16, #tpu.memory_space<vmem>>, vector<16x256xbf16>,
    %75 = vector.extract_strided_slice %52 {offsets = [1, 0], sizes = [15, 256], strides = [1, 1]} : vector<16x256xbf16> to vector<15x256xbf16>
    %c16_72 = arith.constant 16 : index
    %c1280_73 = arith.constant 1280 : index
    %76 = vector.load %arg14[%c16_72, %c1280_73] : memref<32x1536xbf16, #tpu.memory_space<vmem>>, vector<15x256xbf16>
    tpu.vector_store %arg14[%c16_72, %c1280_73], %75 {strides = array<i32>} : memref<32x1536xbf16, #tpu.memory_space<vmem>>, vector<15x256xbf16>,
    %cst_74 = arith.constant 0.000000e+00 : bf16
    %77 = vector.broadcast %cst_74 : bf16 to vector<1x256xbf16>
    %c31_75 = arith.constant 31 : index
    %c1280_76 = arith.constant 1280 : index
    %78 = vector.load %arg14[%c31_75, %c1280_76] : memref<32x1536xbf16, #tpu.memory_space<vmem>>, vector<1x256xbf16>
    tpu.vector_store %arg14[%c31_75, %c1280_76], %77 {strides = array<i32>} : memref<32x1536xbf16, #tpu.memory_space<vmem>>, vector<1x256xbf16>,
    %c0_77 = arith.constant 0 : index
    %c0_78 = arith.constant 0 : index
    %79 = vector.load %arg14[%c0_77, %c0_78] : memref<32x1536xbf16, #tpu.memory_space<vmem>>, vector<32x1536xbf16>
    %c0_79 = arith.constant 0 : index
    %c0_80 = arith.constant 0 : index
    %80 = vector.load %arg6[%c0_79, %c0_80] : memref<1536x256xbf16, #tpu.memory_space<vmem>>, vector<1536x256xbf16>
    %cst_81 = arith.constant dense<0.000000e+00> : vector<32x256xf32>
    %81 = tpu.matmul %79, %80, %cst_81 {dimension_numbers = #tpu.dot_dimension_numbers<[1], [0], [0], [1], [0, 0, 1, 1], [], []>} : vector<32x1536xbf16>, vector<1536x256xbf16>, vector<32x256xf32> -> vector<32x256xf32>
    %c0_82 = arith.constant 0 : index
    %c0_83 = arith.constant 0 : index
    %82 = vector.load %arg9[%c0_82, %c0_83] : memref<1x256xf32, #tpu.memory_space<vmem>>, vector<1x256xf32>
    %83 = vector.broadcast %82 : vector<1x256xf32> to vector<32x256xf32>
    %84 = arith.addf %81, %83 : vector<32x256xf32>
    %cst_84 = arith.constant 0.000000e+00 : f32
    %85 = vector.broadcast %cst_84 : f32 to vector<32x256xf32>
    %86 = arith.cmpf oge, %84, %85 : vector<32x256xf32>
    %cst_85 = arith.constant 1.000000e-01 : f32
    %87 = vector.broadcast %cst_85 : f32 to vector<32x256xf32>
    %88 = arith.mulf %87, %84 : vector<32x256xf32>
    %89 = arith.select %86, %84, %88 : vector<32x256xi1>, vector<32x256xf32>
    %90 = vector.extract_strided_slice %89 {offsets = [0, 0], sizes = [16, 256], strides = [1, 1]} : vector<32x256xf32> to vector<16x256xf32>
    %c0_86 = arith.constant 0 : index
    %c0_87 = arith.constant 0 : index
    %91 = vector.load %arg10[%c0_86, %c0_87] : memref<16x256xf32, #tpu.memory_space<vmem>>, vector<16x256xf32>
    tpu.vector_store %arg10[%c0_86, %c0_87], %90 {strides = array<i32>} : memref<16x256xf32, #tpu.memory_space<vmem>>, vector<16x256xf32>,
    %92 = vector.extract_strided_slice %89 {offsets = [16, 0], sizes = [16, 256], strides = [1, 1]} : vector<32x256xf32> to vector<16x256xf32>
    %c0_88 = arith.constant 0 : index
    %c0_89 = arith.constant 0 : index
    %93 = vector.load %arg11[%c0_88, %c0_89] : memref<16x256xf32, #tpu.memory_space<vmem>>, vector<16x256xf32>
    tpu.vector_store %arg11[%c0_88, %c0_89], %92 {strides = array<i32>} : memref<16x256xf32, #tpu.memory_space<vmem>>, vector<16x256xf32>,
    return
  }
  func.func @transform_0(%arg0: i32) -> (i32, i32) {
    %c0_i32 = arith.constant 0 : i32
    %c0_i32_0 = arith.constant 0 : i32
    return %arg0, %c0_i32 : i32, i32
  }
  func.func @transform_1(%arg0: i32) -> (i32, i32) {
    %c0_i32 = arith.constant 0 : i32
    %c0_i32_0 = arith.constant 0 : i32
    return %arg0, %c0_i32 : i32, i32
  }
  func.func @transform_2(%arg0: i32) -> (i32, i32) {
    %c0_i32 = arith.constant 0 : i32
    %c0_i32_0 = arith.constant 0 : i32
    return %arg0, %c0_i32 : i32, i32
  }
  func.func @transform_3(%arg0: i32) -> (i32, i32) {
    %c0_i32 = arith.constant 0 : i32
    %c0_i32_0 = arith.constant 0 : i32
    %c0_i32_1 = arith.constant 0 : i32
    return %c0_i32, %c0_i32_0 : i32, i32
  }
  func.func @transform_4(%arg0: i32) -> (i32, i32) {
    %c0_i32 = arith.constant 0 : i32
    %c0_i32_0 = arith.constant 0 : i32
    %c0_i32_1 = arith.constant 0 : i32
    return %c0_i32, %c0_i32_0 : i32, i32
  }
  func.func @transform_5(%arg0: i32) -> (i32, i32) {
    %c0_i32 = arith.constant 0 : i32
    %c0_i32_0 = arith.constant 0 : i32
    %c0_i32_1 = arith.constant 0 : i32
    return %c0_i32, %c0_i32_0 : i32, i32
  }
  func.func @transform_6(%arg0: i32) -> (i32, i32) {
    %c0_i32 = arith.constant 0 : i32
    %c0_i32_0 = arith.constant 0 : i32
    %c0_i32_1 = arith.constant 0 : i32
    return %c0_i32, %c0_i32_0 : i32, i32
  }
  func.func @transform_7(%arg0: i32) -> (i32, i32) {
    %c0_i32 = arith.constant 0 : i32
    %c0_i32_0 = arith.constant 0 : i32
    %c0_i32_1 = arith.constant 0 : i32
    return %c0_i32, %c0_i32_0 : i32, i32
  }
  func.func @transform_8(%arg0: i32) -> (i32, i32) {
    %c0_i32 = arith.constant 0 : i32
    %c0_i32_0 = arith.constant 0 : i32
    %c0_i32_1 = arith.constant 0 : i32
    return %c0_i32, %c0_i32_0 : i32, i32
  }
  func.func @transform_9(%arg0: i32) -> (i32, i32) {
    %c0_i32 = arith.constant 0 : i32
    %c0_i32_0 = arith.constant 0 : i32
    return %arg0, %c0_i32 : i32, i32
  }
  func.func @transform_10(%arg0: i32) -> (i32, i32) {
    %c0_i32 = arith.constant 0 : i32
    %c0_i32_0 = arith.constant 0 : i32
    return %arg0, %c0_i32 : i32, i32
  }
}

</mosaic_0001>

<llo_original>
// kernel: tile.18
$region0: #{tile.18}
  #allocation0 [shape = 's32[1]{0}', space=sflag, size = 0x4, scoped, tag = 'scoped memory for tile.18']
  %s0 = inlined_call_operand.vmem [shape: f32[4], index: 0, kind: input, shape index: {}]
  %s1 = inlined_call_operand.vmem [shape: f32[64,4], index: 1, kind: output, shape index: {}]
  // Predicated region
  $region2: #{tile.18} parent=0 // pred_check
    _
  $region3: #{tile.18} parent=0 // pred_check_branch
    %3 = sbr.rel (0) target = $region5
  $region4: #{tile.18} parent=0 // pred_region
    _
  $region5: #{tile.18} parent=0 // pred_fallthru
    _
  %v4 = vld [vmem:[%s0] ss:$0 sm:$0xff]
  %5 = vst [vmem:[%s1] sm:$0xff] %v4
  %s6 = scalar_lea.vmem %s1, 8
  %7 = vst [vmem:[%s6] sm:$0xff] %v4
  %s8 = scalar_lea.vmem %s1, 16
  %9 = vst [vmem:[%s8] sm:$0xff] %v4
  %s10 = scalar_lea.vmem %s1, 24
  %11 = vst [vmem:[%s10] sm:$0xff] %v4
  %s12 = scalar_lea.vmem %s1, 32
  %13 = vst [vmem:[%s12] sm:$0xff] %v4
  %s14 = scalar_lea.vmem %s1, 40
  %15 = vst [vmem:[%s14] sm:$0xff] %v4
  %s16 = scalar_lea.vmem %s1, 48
  %17 = vst [vmem:[%s16] sm:$0xff] %v4
  %s18 = scalar_lea.vmem %s1, 56
  %19 = vst [vmem:[%s18] sm:$0xff] %v4

// kernel: tile.19
$region0: #{tile.19}
  %s0 = inlined_call_operand.vmem [shape: f32[64,4], index: 0, kind: input, shape index: {}]
  %s1 = inlined_call_operand.vmem [shape: f32[1,256], index: 1, kind: output, shape index: {}]
  $region1: #{tile.19} parent=0
    #allocation0 [shape = 'u8[8192]{0}', space=vmem, size = 0x2000, scoped, tag = 'scoped mem for output reshape']
    %v2 = vld [vmem:[%s0] sm:$0x1]
    %s3 = scalar_lea.vmem %s0, 31
    %v4 = vld [vmem:[%s3] sm:$0x2]
    %vm5 = vcmask 1041409
    %v6 = vsel %vm5, %v4, %v2
    %vm7 = vcmask 31744
    %8 = vst.msk [vmem:[#allocation0] ss:$8 sm:$0x3] %vm7, %v6
    %s9 = scalar_lea.vmem %s0, 31
    %v10 = vld [vmem:[%s9] sm:$0x1]
    %s11 = scalar_lea.vmem %s0, 62
    %v12 = vld [vmem:[%s11] sm:$0x2]
    %vm13 = vcmask 1041409
    %v14 = vsel %vm13, %v12, %v10
    %15 = vrot.lane.b32.xlu0 %v14, 124
    %v16 = vpop.permute.xlu0 %15
    %vm17 = vcmask 1048544
    %18 = vst.msk [vmem:[#allocation0] ss:$8 sm:$0x3] %vm17, %v16
    %s19 = scalar_lea.vmem %s0, 30
    %v20 = vld [vmem:[%s19] sm:$0x1]
    %s21 = scalar_lea.vmem %s0, 61
    %v22 = vld [vmem:[%s21] sm:$0x2]
    %vm23 = vcmask 1041409
    %v24 = vsel %vm23, %v22, %v20
    %25 = vrot.lane.b32.xlu0 %v24, 120
    %v26 = vpop.permute.xlu0 %25
    %vm27 = vcmask 1015744
    %28 = vst.msk [vmem:[#allocation0] ss:$8 sm:$0x3] %vm27, %v26
    %s29 = scalar_lea.vmem %s0, 29
    %v30 = vld [vmem:[%s29] sm:$0x1]
    %s31 = scalar_lea.vmem %s0, 60
    %v32 = vld [vmem:[%s31] sm:$0x2]
    %vm33 = vcmask 1041409
    %v34 = vsel %vm33, %v32, %v30
    %35 = vrot.lane.b32.xlu0 %v34, 116
    %v36 = vpop.permute.xlu0 %35
    %vm37 = vcmask 982944
    %38 = vst.msk [vmem:[#allocation0] ss:$8 sm:$0x3] %vm37, %v36
    %s39 = scalar_lea.vmem %s0, 28
    %v40 = vld [vmem:[%s39] sm:$0x1]
    %s41 = scalar_lea.vmem %s0, 59
    %v42 = vld [vmem:[%s41] sm:$0x2]
    %vm43 = vcmask 1041409
    %v44 = vsel %vm43, %v42, %v40
    %45 = vrot.lane.b32.xlu0 %v44, 112
    %v46 = vpop.permute.xlu0 %45
    %vm47 = vcmask 950144
    %48 = vst.msk [vmem:[#allocation0] ss:$8 sm:$0x3] %vm47, %v46
    %s49 = scalar_lea.vmem %s0, 27
    %v50 = vld [vmem:[%s49] sm:$0x1]
    %s51 = scalar_lea.vmem %s0, 58
    %v52 = vld [vmem:[%s51] sm:$0x2]
    %vm53 = vcmask 1041409
    %v54 = vsel %vm53, %v52, %v50
    %55 = vrot.lane.b32.xlu0 %v54, 108
    %v56 = vpop.permute.xlu0 %55
    %vm57 = vcmask 917344
    %58 = vst.msk [vmem:[#allocation0] ss:$8 sm:$0x3] %vm57, %v56
    %s59 = scalar_lea.vmem %s0, 26
    %v60 = vld [vmem:[%s59] sm:$0x1]
    %s61 = scalar_lea.vmem %s0, 57
    %v62 = vld [vmem:[%s61] sm:$0x2]
    %vm63 = vcmask 1041409
    %v64 = vsel %vm63, %v62, %v60
    %65 = vrot.lane.b32.xlu0 %v64, 104
    %v66 = vpop.permute.xlu0 %65
    %vm67 = vcmask 884544
    %68 = vst.msk [vmem:[#allocation0] ss:$8 sm:$0x3] %vm67, %v66
    %s69 = scalar_lea.vmem %s0, 25
    %v70 = vld [vmem:[%s69] sm:$0x1]
    %s71 = scalar_lea.vmem %s0, 56
    %v72 = vld [vmem:[%s71] sm:$0x2]
    %vm73 = vcmask 1041409
    %v74 = vsel %vm73, %v72, %v70
    %75 = vrot.lane.b32.xlu0 %v74, 100
    %v76 = vpop.permute.xlu0 %75
    %vm77 = vcmask 851744
    %78 = vst.msk [vmem:[#allocation0] ss:$8 sm:$0x3] %vm77, %v76
    %s79 = scalar_lea.vmem %s0, 24
    %v80 = vld [vmem:[%s79] sm:$0x1]
    %s81 = scalar_lea.vmem %s0, 55
    %v82 = vld [vmem:[%s81] sm:$0x2]
    %vm83 = vcmask 1041409
    %v84 = vsel %vm83, %v82, %v80
    %85 = vrot.lane.b32.xlu0 %v84, 96
    %v86 = vpop.permute.xlu0 %85
    %vm87 = vcmask 818944
    %88 = vst.msk [vmem:[#allocation0] ss:$8 sm:$0x3] %vm87, %v86
    %s89 = scalar_lea.vmem %s0, 23
    %v90 = vld [vmem:[%s89] sm:$0x1]
    %s91 = scalar_lea.vmem %s0, 54
    %v92 = vld [vmem:[%s91] sm:$0x2]
    %vm93 = vcmask 1041409
    %v94 = vsel %vm93, %v92, %v90
    %95 = vrot.lane.b32.xlu0 %v94, 92
    %v96 = vpop.permute.xlu0 %95
    %vm97 = vcmask 786144
    %98 = vst.msk [vmem:[#allocation0] ss:$8 sm:$0x3] %vm97, %v96
    %s99 = scalar_lea.vmem %s0, 22
    %v100 = vld [vmem:[%s99] sm:$0x1]
    %s101 = scalar_lea.vmem %s0, 53
    %v102 = vld [vmem:[%s101] sm:$0x2]
    %vm103 = vcmask 1041409
    %v104 = vsel %vm103, %v102, %v100
    %105 = vrot.lane.b32.xlu0 %v104, 88
    %v106 = vpop.permute.xlu0 %105
    %vm107 = vcmask 753344
    %108 = vst.msk [vmem:[#allocation0] ss:$8 sm:$0x3] %vm107, %v106
    %s109 = scalar_lea.vmem %s0, 21
    %v110 = vld [vmem:[%s109] sm:$0x1]
    %s111 = scalar_lea.vmem %s0, 52
    %v112 = vld [vmem:[%s111] sm:$0x2]
    %vm113 = vcmask 1041409
    %v114 = vsel %vm113, %v112, %v110
    %115 = vrot.lane.b32.xlu0 %v114, 84
    %v116 = vpop.permute.xlu0 %115
    %vm117 = vcmask 720544
    %118 = vst.msk [vmem:[#allocation0] ss:$8 sm:$0x3] %vm117, %v116
    %s119 = scalar_lea.vmem %s0, 20
    %v120 = vld [vmem:[%s119] sm:$0x1]
    %s121 = scalar_lea.vmem %s0, 51
    %v122 = vld [vmem:[%s121] sm:$0x2]
    %vm123 = vcmask 1041409
    %v124 = vsel %vm123, %v122, %v120
    %125 = vrot.lane.b32.xlu0 %v124, 80
    %v126 = vpop.permute.xlu0 %125
    %vm127 = vcmask 687744
    %128 = vst.msk [vmem:[#allocation0] ss:$8 sm:$0x3] %vm127, %v126
    %s129 = scalar_lea.vmem %s0, 19
    %v130 = vld [vmem:[%s129] sm:$0x1]
    %s131 = scalar_lea.vmem %s0, 50
    %v132 = vld [vmem:[%s131] sm:$0x2]
    %vm133 = vcmask 1041409
    %v134 = vsel %vm133, %v132, %v130
    %135 = vrot.lane.b32.xlu0 %v134, 76
    %v136 = vpop.permute.xlu0 %135
    %vm137 = vcmask 654944
    %138 = vst.msk [vmem:[#allocation0] ss:$8 sm:$0x3] %vm137, %v136
    %s139 = scalar_lea.vmem %s0, 18
    %v140 = vld [vmem:[%s139] sm:$0x1]
    %s141 = scalar_lea.vmem %s0, 49
    %v142 = vld [vmem:[%s141] sm:$0x2]
    %vm143 = vcmask 1041409
    %v144 = vsel %vm143, %v142, %v140
    %145 = vrot.lane.b32.xlu0 %v144, 72
    %v146 = vpop.permute.xlu0 %145
    %vm147 = vcmask 622144
    %148 = vst.msk [vmem:[#allocation0] ss:$8 sm:$0x3] %vm147, %v146
    %s149 = scalar_lea.vmem %s0, 17
    %v150 = vld [vmem:[%s149] sm:$0x1]
    %s151 = scalar_lea.vmem %s0, 48
    %v152 = vld [vmem:[%s151] sm:$0x2]
    %vm153 = vcmask 1041409
    %v154 = vsel %vm153, %v152, %v150
    %155 = vrot.lane.b32.xlu0 %v154, 68
    %v156 = vpop.permute.xlu0 %155
    %vm157 = vcmask 589344
    %158 = vst.msk [vmem:[#allocation0] ss:$8 sm:$0x3] %vm157, %v156
    %s159 = scalar_lea.vmem %s0, 16
    %v160 = vld [vmem:[%s159] sm:$0x1]
    %s161 = scalar_lea.vmem %s0, 47
    %v162 = vld [vmem:[%s161] sm:$0x2]
    %vm163 = vcmask 1041409
    %v164 = vsel %vm163, %v162, %v160
    %165 = vrot.lane.b32.xlu0 %v164, 64
    %v166 = vpop.permute.xlu0 %165
    %vm167 = vcmask 556544
    %168 = vst.msk [vmem:[#allocation0] ss:$8 sm:$0x3] %vm167, %v166
    %s169 = scalar_lea.vmem %s0, 15
    %v170 = vld [vmem:[%s169] sm:$0x1]
    %s171 = scalar_lea.vmem %s0, 46
    %v172 = vld [vmem:[%s171] sm:$0x2]
    %vm173 = vcmask 1041409
    %v174 = vsel %vm173, %v172, %v170
    %175 = vrot.lane.b32.xlu0 %v174, 60
    %v176 = vpop.permute.xlu0 %175
    %vm177 = vcmask 523744
    %178 = vst.msk [vmem:[#allocation0] ss:$8 sm:$0x3] %vm177, %v176
    %s179 = scalar_lea.vmem %s0, 14
    %v180 = vld [vmem:[%s179] sm:$0x1]
    %s181 = scalar_lea.vmem %s0, 45
    %v182 = vld [vmem:[%s181] sm:$0x2]
    %vm183 = vcmask 1041409
    %v184 = vsel %vm183, %v182, %v180
    %185 = vrot.lane.b32.xlu0 %v184, 56
    %v186 = vpop.permute.xlu0 %185
    %vm187 = vcmask 490944
    %188 = vst.msk [vmem:[#allocation0] ss:$8 sm:$0x3] %vm187, %v186
    %s189 = scalar_lea.vmem %s0, 13
    %v190 = vld [vmem:[%s189] sm:$0x1]
    %s191 = scalar_lea.vmem %s0, 44
    %v192 = vld [vmem:[%s191] sm:$0x2]
    %vm193 = vcmask 1041409
    %v194 = vsel %vm193, %v192, %v190
    %195 = vrot.lane.b32.xlu0 %v194, 52
    %v196 = vpop.permute.xlu0 %195
    %vm197 = vcmask 458144
    %198 = vst.msk [vmem:[#allocation0] ss:$8 sm:$0x3] %vm197, %v196
    %s199 = scalar_lea.vmem %s0, 12
    %v200 = vld [vmem:[%s199] sm:$0x1]
    %s201 = scalar_lea.vmem %s0, 43
    %v202 = vld [vmem:[%s201] sm:$0x2]
    %vm203 = vcmask 1041409
    %v204 = vsel %vm203, %v202, %v200
    %205 = vrot.lane.b32.xlu0 %v204, 48
    %v206 = vpop.permute.xlu0 %205
    %vm207 = vcmask 425344
    %208 = vst.msk [vmem:[#allocation0] ss:$8 sm:$0x3] %vm207, %v206
    %s209 = scalar_lea.vmem %s0, 11
    %v210 = vld [vmem:[%s209] sm:$0x1]
    %s211 = scalar_lea.vmem %s0, 42
    %v212 = vld [vmem:[%s211] sm:$0x2]
    %vm213 = vcmask 1041409
    %v214 = vsel %vm213, %v212, %v210
    %215 = vrot.lane.b32.xlu0 %v214, 44
    %v216 = vpop.permute.xlu0 %215
    %vm217 = vcmask 392544
    %218 = vst.msk [vmem:[#allocation0] ss:$8 sm:$0x3] %vm217, %v216
    %s219 = scalar_lea.vmem %s0, 10
    %v220 = vld [vmem:[%s219] sm:$0x1]
    %s221 = scalar_lea.vmem %s0, 41
    %v222 = vld [vmem:[%s221] sm:$0x2]
    %vm223 = vcmask 1041409
    %v224 = vsel %vm223, %v222, %v220
    %225 = vrot.lane.b32.xlu0 %v224, 40
    %v226 = vpop.permute.xlu0 %225
    %vm227 = vcmask 359744
    %228 = vst.msk [vmem:[#allocation0] ss:$8 sm:$0x3] %vm227, %v226
    %s229 = scalar_lea.vmem %s0, 9
    %v230 = vld [vmem:[%s229] sm:$0x1]
    %s231 = scalar_lea.vmem %s0, 40
    %v232 = vld [vmem:[%s231] sm:$0x2]
    %vm233 = vcmask 1041409
    %v234 = vsel %vm233, %v232, %v230
    %235 = vrot.lane.b32.xlu0 %v234, 36
    %v236 = vpop.permute.xlu0 %235
    %vm237 = vcmask 326944
    %238 = vst.msk [vmem:[#allocation0] ss:$8 sm:$0x3] %vm237, %v236
    %s239 = scalar_lea.vmem %s0, 8
    %v240 = vld [vmem:[%s239] sm:$0x1]
    %s241 = scalar_lea.vmem %s0, 39
    %v242 = vld [vmem:[%s241] sm:$0x2]
    %vm243 = vcmask 1041409
    %v244 = vsel %vm243, %v242, %v240
    %245 = vrot.lane.b32.xlu0 %v244, 32
    %v246 = vpop.permute.xlu0 %245
    %vm247 = vcmask 294144
    %248 = vst.msk [vmem:[#allocation0] ss:$8 sm:$0x3] %vm247, %v246
    %s249 = scalar_lea.vmem %s0, 7
    %v250 = vld [vmem:[%s249] sm:$0x1]
    %s251 = scalar_lea.vmem %s0, 38
    %v252 = vld [vmem:[%s251] sm:$0x2]
    %vm253 = vcmask 1041409
    %v254 = vsel %vm253, %v252, %v250
    %255 = vrot.lane.b32.xlu0 %v254, 28
    %v256 = vpop.permute.xlu0 %255
    %vm257 = vcmask 261344
    %258 = vst.msk [vmem:[#allocation0] ss:$8 sm:$0x3] %vm257, %v256
    %s259 = scalar_lea.vmem %s0, 6
    %v260 = vld [vmem:[%s259] sm:$0x1]
    %s261 = scalar_lea.vmem %s0, 37
    %v262 = vld [vmem:[%s261] sm:$0x2]
    %vm263 = vcmask 1041409
    %v264 = vsel %vm263, %v262, %v260
    %265 = vrot.lane.b32.xlu0 %v264, 24
    %v266 = vpop.permute.xlu0 %265
    %vm267 = vcmask 228544
    %268 = vst.msk [vmem:[#allocation0] ss:$8 sm:$0x3] %vm267, %v266
    %s269 = scalar_lea.vmem %s0, 5
    %v270 = vld [vmem:[%s269] sm:$0x1]
    %s271 = scalar_lea.vmem %s0, 36
    %v272 = vld [vmem:[%s271] sm:$0x2]
    %vm273 = vcmask 1041409
    %v274 = vsel %vm273, %v272, %v270
    %275 = vrot.lane.b32.xlu0 %v274, 20
    %v276 = vpop.permute.xlu0 %275
    %vm277 = vcmask 195744
    %278 = vst.msk [vmem:[#allocation0] ss:$8 sm:$0x3] %vm277, %v276
    %s279 = scalar_lea.vmem %s0, 4
    %v280 = vld [vmem:[%s279] sm:$0x1]
    %s281 = scalar_lea.vmem %s0, 35
    %v282 = vld [vmem:[%s281] sm:$0x2]
    %vm283 = vcmask 1041409
    %v284 = vsel %vm283, %v282, %v280
    %285 = vrot.lane.b32.xlu0 %v284, 16
    %v286 = vpop.permute.xlu0 %285
    %vm287 = vcmask 162944
    %288 = vst.msk [vmem:[#allocation0] ss:$8 sm:$0x3] %vm287, %v286
    %s289 = scalar_lea.vmem %s0, 3
    %v290 = vld [vmem:[%s289] sm:$0x1]
    %s291 = scalar_lea.vmem %s0, 34
    %v292 = vld [vmem:[%s291] sm:$0x2]
    %vm293 = vcmask 1041409
    %v294 = vsel %vm293, %v292, %v290
    %295 = vrot.lane.b32.xlu0 %v294, 12
    %v296 = vpop.permute.xlu0 %295
    %vm297 = vcmask 130144
    %298 = vst.msk [vmem:[#allocation0] ss:$8 sm:$0x3] %vm297, %v296
    %s299 = scalar_lea.vmem %s0, 2
    %v300 = vld [vmem:[%s299] sm:$0x1]
    %s301 = scalar_lea.vmem %s0, 33
    %v302 = vld [vmem:[%s301] sm:$0x2]
    %vm303 = vcmask 1041409
    %v304 = vsel %vm303, %v302, %v300
    %305 = vrot.lane.b32.xlu0 %v304, 8
    %v306 = vpop.permute.xlu0 %305
    %vm307 = vcmask 97344
    %308 = vst.msk [vmem:[#allocation0] ss:$8 sm:$0x3] %vm307, %v306
    %s309 = scalar_lea.vmem %s0, 1
    %v310 = vld [vmem:[%s309] sm:$0x1]
    %s311 = scalar_lea.vmem %s0, 32
    %v312 = vld [vmem:[%s311] sm:$0x2]
    %vm313 = vcmask 1041409
    %v314 = vsel %vm313, %v312, %v310
    %315 = vrot.lane.b32.xlu0 %v314, 4
    %v316 = vpop.permute.xlu0 %315
    %vm317 = vcmask 64544
    %318 = vst.msk [vmem:[#allocation0] ss:$8 sm:$0x3] %vm317, %v316
    %s320 = ssub.s32 2, 1
    %v321 = vld [vmem:[#allocation0] sm:%s320]
    %s323 = ssub.s32 2, 1
    %324 = vst [vmem:[%s1] sm:%s323] %v321
    %s325 = scalar_lea.vmem [#allocation0], 8
    %v326 = vld [vmem:[%s325] sm:%s320]
    %s328 = ssub.s32 2, 1
    %s329 = scalar_lea.vmem %s1, 1
    %330 = vst [vmem:[%s329] sm:%s328] %v326

// kernel: tile.23
$region0: #{tile.23}
  #allocation0 [shape = 's32[1]{0}', space=sflag, size = 0x4, scoped, tag = 'scoped memory for tile.23']
  %s0 = inlined_call_operand.vmem [shape: f32[8], index: 0, kind: input, shape index: {}]
  %s1 = inlined_call_operand.vmem [shape: f32[32,8], index: 1, kind: output, shape index: {}]
  // Predicated region
  $region2: #{tile.23} parent=0 // pred_check
    _
  $region3: #{tile.23} parent=0 // pred_check_branch
    %3 = sbr.rel (0) target = $region5
  $region4: #{tile.23} parent=0 // pred_region
    _
  $region5: #{tile.23} parent=0 // pred_fallthru
    _
  %v4 = vld [vmem:[%s0] ss:$0 sm:$0xff]
  %5 = vst [vmem:[%s1] sm:$0xff] %v4
  %s6 = scalar_lea.vmem %s1, 8
  %7 = vst [vmem:[%s6] sm:$0xff] %v4
  %s8 = scalar_lea.vmem %s1, 16
  %9 = vst [vmem:[%s8] sm:$0xff] %v4
  %s10 = scalar_lea.vmem %s1, 24
  %11 = vst [vmem:[%s10] sm:$0xff] %v4

// kernel: tile.24
$region0: #{tile.24}
  %s0 = inlined_call_operand.vmem [shape: f32[32,8], index: 0, kind: input, shape index: {}]
  %s1 = inlined_call_operand.vmem [shape: f32[1,256], index: 1, kind: output, shape index: {}]
  $region1: #{tile.24} parent=0
    #allocation0 [shape = 'u8[8192]{0}', space=vmem, size = 0x2000, scoped, tag = 'scoped mem for output reshape']
    %s2 = smov 3
    %v3 = vld [vmem:[%s0] ss:$16 sm:%s2]
    %vm4 = vcmask 64512
    %5 = vst.msk [vmem:[#allocation0] ss:$8 sm:$0x3] %vm4, %v3
    %s6 = scalar_lea.vmem %s0, 15
    %s7 = smov 3
    %v8 = vld [vmem:[%s6] ss:$16 sm:%s7]
    %9 = vrot.lane.b32.xlu0 %v8, 120
    %v10 = vpop.permute.xlu0 %9
    %vm11 = vcmask 1048512
    %12 = vst.msk [vmem:[#allocation0] ss:$8 sm:$0x3] %vm11, %v10
    %s13 = scalar_lea.vmem %s0, 14
    %s14 = smov 3
    %v15 = vld [vmem:[%s13] ss:$16 sm:%s14]
    %16 = vrot.lane.b32.xlu0 %v15, 112
    %v17 = vpop.permute.xlu0 %16
    %vm18 = vcmask 982912
    %19 = vst.msk [vmem:[#allocation0] ss:$8 sm:$0x3] %vm18, %v17
    %s20 = scalar_lea.vmem %s0, 13
    %s21 = smov 3
    %v22 = vld [vmem:[%s20] ss:$16 sm:%s21]
    %23 = vrot.lane.b32.xlu0 %v22, 104
    %v24 = vpop.permute.xlu0 %23
    %vm25 = vcmask 917312
    %26 = vst.msk [vmem:[#allocation0] ss:$8 sm:$0x3] %vm25, %v24
    %s27 = scalar_lea.vmem %s0, 12
    %s28 = smov 3
    %v29 = vld [vmem:[%s27] ss:$16 sm:%s28]
    %30 = vrot.lane.b32.xlu0 %v29, 96
    %v31 = vpop.permute.xlu0 %30
    %vm32 = vcmask 851712
    %33 = vst.msk [vmem:[#allocation0] ss:$8 sm:$0x3] %vm32, %v31
    %s34 = scalar_lea.vmem %s0, 11
    %s35 = smov 3
    %v36 = vld [vmem:[%s34] ss:$16 sm:%s35]
    %37 = vrot.lane.b32.xlu0 %v36, 88
    %v38 = vpop.permute.xlu0 %37
    %vm39 = vcmask 786112
    %40 = vst.msk [vmem:[#allocation0] ss:$8 sm:$0x3] %vm39, %v38
    %s41 = scalar_lea.vmem %s0, 10
    %s42 = smov 3
    %v43 = vld [vmem:[%s41] ss:$16 sm:%s42]
    %44 = vrot.lane.b32.xlu0 %v43, 80
    %v45 = vpop.permute.xlu0 %44
    %vm46 = vcmask 720512
    %47 = vst.msk [vmem:[#allocation0] ss:$8 sm:$0x3] %vm46, %v45
    %s48 = scalar_lea.vmem %s0, 9
    %s49 = smov 3
    %v50 = vld [vmem:[%s48] ss:$16 sm:%s49]
    %51 = vrot.lane.b32.xlu0 %v50, 72
    %v52 = vpop.permute.xlu0 %51
    %vm53 = vcmask 654912
    %54 = vst.msk [vmem:[#allocation0] ss:$8 sm:$0x3] %vm53, %v52
    %s55 = scalar_lea.vmem %s0, 8
    %s56 = smov 3
    %v57 = vld [vmem:[%s55] ss:$16 sm:%s56]
    %58 = vrot.lane.b32.xlu0 %v57, 64
    %v59 = vpop.permute.xlu0 %58
    %vm60 = vcmask 589312
    %61 = vst.msk [vmem:[#allocation0] ss:$8 sm:$0x3] %vm60, %v59
    %s62 = scalar_lea.vmem %s0, 7
    %s63 = smov 3
    %v64 = vld [vmem:[%s62] ss:$16 sm:%s63]
    %65 = vrot.lane.b32.xlu0 %v64, 56
    %v66 = vpop.permute.xlu0 %65
    %vm67 = vcmask 523712
    %68 = vst.msk [vmem:[#allocation0] ss:$8 sm:$0x3] %vm67, %v66
    %s69 = scalar_lea.vmem %s0, 6
    %s70 = smov 3
    %v71 = vld [vmem:[%s69] ss:$16 sm:%s70]
    %72 = vrot.lane.b32.xlu0 %v71, 48
    %v73 = vpop.permute.xlu0 %72
    %vm74 = vcmask 458112
    %75 = vst.msk [vmem:[#allocation0] ss:$8 sm:$0x3] %vm74, %v73
    %s76 = scalar_lea.vmem %s0, 5
    %s77 = smov 3
    %v78 = vld [vmem:[%s76] ss:$16 sm:%s77]
    %79 = vrot.lane.b32.xlu0 %v78, 40
    %v80 = vpop.permute.xlu0 %79
    %vm81 = vcmask 392512
    %82 = vst.msk [vmem:[#allocation0] ss:$8 sm:$0x3] %vm81, %v80
    %s83 = scalar_lea.vmem %s0, 4
    %s84 = smov 3
    %v85 = vld [vmem:[%s83] ss:$16 sm:%s84]
    %86 = vrot.lane.b32.xlu0 %v85, 32
    %v87 = vpop.permute.xlu0 %86
    %vm88 = vcmask 326912
    %89 = vst.msk [vmem:[#allocation0] ss:$8 sm:$0x3] %vm88, %v87
    %s90 = scalar_lea.vmem %s0, 3
    %s91 = smov 3
    %v92 = vld [vmem:[%s90] ss:$16 sm:%s91]
    %93 = vrot.lane.b32.xlu0 %v92, 24
    %v94 = vpop.permute.xlu0 %93
    %vm95 = vcmask 261312
    %96 = vst.msk [vmem:[#allocation0] ss:$8 sm:$0x3] %vm95, %v94
    %s97 = scalar_lea.vmem %s0, 2
    %s98 = smov 3
    %v99 = vld [vmem:[%s97] ss:$16 sm:%s98]
    %100 = vrot.lane.b32.xlu0 %v99, 16
    %v101 = vpop.permute.xlu0 %100
    %vm102 = vcmask 195712
    %103 = vst.msk [vmem:[#allocation0] ss:$8 sm:$0x3] %vm102, %v101
    %s104 = scalar_lea.vmem %s0, 1
    %s105 = smov 3
    %v106 = vld [vmem:[%s104] ss:$16 sm:%s105]
    %107 = vrot.lane.b32.xlu0 %v106, 8
    %v108 = vpop.permute.xlu0 %107
    %vm109 = vcmask 130112
    %110 = vst.msk [vmem:[#allocation0] ss:$8 sm:$0x3] %vm109, %v108
    %s112 = ssub.s32 2, 1
    %v113 = vld [vmem:[#allocation0] sm:%s112]
    %s115 = ssub.s32 2, 1
    %116 = vst [vmem:[%s1] sm:%s115] %v113
    %s117 = scalar_lea.vmem [#allocation0], 8
    %v118 = vld [vmem:[%s117] sm:%s112]
    %s120 = ssub.s32 2, 1
    %s121 = scalar_lea.vmem %s1, 1
    %122 = vst [vmem:[%s121] sm:%s120] %v118

// kernel: up2d_forward.1
$region0: #{up2d_forward.1}
  #allocation0 [shape = 'u32[]', space=smem, size = 0x4, offset = 0x4, fixed_abs, tag = 'smem constant byte address 0x4 - core index']
  #allocation1 [shape = 'u32[72,128]{1,0:T(1,128)}', space=vmem, size = 0x9000, scoped, tag = 'internal scratch']
  #allocation2 [shape = 'bf16[16,192]{1,0:T(8,128)(2,1)}', space=vmem, size = 0x2000, scoped, tag = 'scratch operand']
  #allocation3 [shape = 'bf16[32,384]{1,0:T(8,128)(2,1)}', space=vmem, size = 0x6000, scoped, tag = 'scratch operand']
  #allocation4 [shape = 'bf16[32,1536]{1,0:T(8,128)(2,1)}', space=vmem, size = 0x18000, scoped, tag = 'scratch operand']
  %s0 = inlined_call_operand.vmem [shape: f32[32,64], index: 0, kind: input, shape index: {}]
  %s1 = inlined_call_operand.vmem [shape: f32[32,256], index: 1, kind: input, shape index: {}]
  %s2 = inlined_call_operand.vmem [shape: f32[32,256], index: 2, kind: input, shape index: {}]
  %s3 = inlined_call_operand.vmem [shape: bf16[192,256], index: 3, kind: input, shape index: {}]
  %s4 = inlined_call_operand.vmem [shape: bf16[384,256], index: 4, kind: input, shape index: {}]
  %s5 = inlined_call_operand.vmem [shape: bf16[1536,256], index: 5, kind: input, shape index: {}]
  %s6 = inlined_call_operand.vmem [shape: f32[1,256], index: 6, kind: input, shape index: {}]
  %s7 = inlined_call_operand.vmem [shape: f32[1,256], index: 7, kind: input, shape index: {}]
  %s8 = inlined_call_operand.vmem [shape: f32[1,256], index: 8, kind: input, shape index: {}]
  %s9 = inlined_call_operand.vmem [shape: f32[32,256], index: 9, kind: output, shape index: {0}]
  %s10 = inlined_call_operand.vmem [shape: f32[32,256], index: 10, kind: output, shape index: {1}]
  %11 = xla_tuple %s9, %s10
  %s12 = sld [smem:[#allocation0]]
  $region77: #{up2d_forward.1} parent=0
    _
  %s14 = ssub.s32 1, %s12
  %s15 = scalar_select 0, %s14, %s12
  loop: start=0, step=1, limit=4
  $region2: #{up2d_forward.1} parent=0 // loop_pre_header
    _
  $region3: #{up2d_forward.1} parent=0 // loop_header
    %s17 = sphi 0, %s21
    %p18 = scmp.ge.s32.totalorder %s17, 4
    %s27 = sphi 0, %s29
    %s30 = sphi 0, %s27
    %s31 = sphi 0, %s30
    %s47 = sphi 0, %s31
    %s53 = sphi 0, %s55
    %s56 = sphi 0, %s53
    %s57 = sphi 0, %s56
    %s73 = sphi 0, %s57
    %s79 = sphi 0, %s81
    %s82 = sphi 0, %s79
    %s83 = sphi 0, %s82
    %s99 = sphi 0, %s83
    %s103 = sphi 0, %s103
    %s105 = sphi 0, %s103
    %s106 = sphi 0, %s105
    %s120 = sphi 0, %s106
    %s124 = sphi 0, %s124
    %s126 = sphi 0, %s124
    %s127 = sphi 0, %s126
    %s141 = sphi 0, %s127
    %s145 = sphi 0, %s145
    %s147 = sphi 0, %s145
    %s148 = sphi 0, %s147
    %s162 = sphi 0, %s148
    %s166 = sphi 0, %s166
    %s168 = sphi 0, %s166
    %s169 = sphi 0, %s168
    %s183 = sphi 0, %s169
    %s187 = sphi 0, %s187
    %s189 = sphi 0, %s187
    %s190 = sphi 0, %s189
    %s204 = sphi 0, %s190
    %s208 = sphi 0, %s208
    %s210 = sphi 0, %s208
    %s211 = sphi 0, %s210
    %s225 = sphi 0, %s211
    %s231 = sphi 0, %s233
    %s234 = sphi 0, %s231
    %s235 = sphi 0, %s234
    %s251 = sphi 0, %s235
    %s257 = sphi 0, %s259
    %s260 = sphi 0, %s257
    %s261 = sphi 0, %s260
    %s277 = sphi 0, %s261
  $region4: #{up2d_forward.1} parent=0 // loop_header_branch
    %20 = sbr.rel (%p18) target = $region8
  $region5: #{up2d_forward.1} parent=0 // loop_body
    %s22 = ssub.s32 %s17, 1
    %s23 = ssub.s32 %s17, 2
    %s24 = sadd.s32 %s17, 1
    %s25 = ssub.s32 %s17, %s24
    %p26 = scmp.eq.s32.totalorder %s25, 0
    %s28 = sadd.s32 %s27, 1
    %s29 = scalar_select %p26, %s27, %s28
    %p32 = pneg %p26
    %p33 = scmp.eq.s32.totalorder %s17, 1
    %p34 = por %p32, %p33
    %p35 = scmp.ne.s32.totalorder %s27, %s30
    %p36 = scmp.eq.s32.totalorder %s17, 0
    %p37 = por %p35, %p36
    %p38 = scmp.ne.s32.totalorder %s27, %s30
    %p39 = scmp.eq.s32.totalorder %s22, 1
    %p40 = por %p38, %p39
    %p41 = scmp.ne.s32.totalorder %s30, %s31
    %p42 = scmp.eq.s32.totalorder %s22, 0
    %p43 = por %p41, %p42
    %p44 = scmp.ne.s32.totalorder %s30, %s31
    %p45 = scmp.eq.s32.totalorder %s23, 1
    %p46 = por %p44, %p45
    %p48 = scmp.ne.s32.totalorder %s31, %s47
    %p49 = scmp.eq.s32.totalorder %s23, 0
    %p50 = por %p48, %p49
    %s51 = ssub.s32 %s17, %s24
    %p52 = scmp.eq.s32.totalorder %s51, 0
    %s54 = sadd.s32 %s53, 1
    %s55 = scalar_select %p52, %s53, %s54
    %p58 = pneg %p52
    %p59 = scmp.eq.s32.totalorder %s17, 1
    %p60 = por %p58, %p59
    %p61 = scmp.ne.s32.totalorder %s53, %s56
    %p62 = scmp.eq.s32.totalorder %s17, 0
    %p63 = por %p61, %p62
    %p64 = scmp.ne.s32.totalorder %s53, %s56
    %p65 = scmp.eq.s32.totalorder %s22, 1
    %p66 = por %p64, %p65
    %p67 = scmp.ne.s32.totalorder %s56, %s57
    %p68 = scmp.eq.s32.totalorder %s22, 0
    %p69 = por %p67, %p68
    %p70 = scmp.ne.s32.totalorder %s56, %s57
    %p71 = scmp.eq.s32.totalorder %s23, 1
    %p72 = por %p70, %p71
    %p74 = scmp.ne.s32.totalorder %s57, %s73
    %p75 = scmp.eq.s32.totalorder %s23, 0
    %p76 = por %p74, %p75
    %s77 = ssub.s32 %s17, %s24
    %p78 = scmp.eq.s32.totalorder %s77, 0
    %s80 = sadd.s32 %s79, 1
    %s81 = scalar_select %p78, %s79, %s80
    %p84 = pneg %p78
    %p85 = scmp.eq.s32.totalorder %s17, 1
    %p86 = por %p84, %p85
    %p87 = scmp.ne.s32.totalorder %s79, %s82
    %p88 = scmp.eq.s32.totalorder %s17, 0
    %p89 = por %p87, %p88
    %p90 = scmp.ne.s32.totalorder %s79, %s82
    %p91 = scmp.eq.s32.totalorder %s22, 1
    %p92 = por %p90, %p91
    %p93 = scmp.ne.s32.totalorder %s82, %s83
    %p94 = scmp.eq.s32.totalorder %s22, 0
    %p95 = por %p93, %p94
    %p96 = scmp.ne.s32.totalorder %s82, %s83
    %p97 = scmp.eq.s32.totalorder %s23, 1
    %p98 = por %p96, %p97
    %p100 = scmp.ne.s32.totalorder %s83, %s99
    %p101 = scmp.eq.s32.totalorder %s23, 0
    %p102 = por %p100, %p101
    %s104 = sadd.s32 %s103, 1
    %p107 = scmp.eq.s32.totalorder %s17, 1
    %p108 = scmp.ne.s32.totalorder %s103, %s105
    %p109 = scmp.eq.s32.totalorder %s17, 0
    %p110 = por %p108, %p109
    %p111 = scmp.ne.s32.totalorder %s103, %s105
    %p112 = scmp.eq.s32.totalorder %s22, 1
    %p113 = por %p111, %p112
    %p114 = scmp.ne.s32.totalorder %s105, %s106
    %p115 = scmp.eq.s32.totalorder %s22, 0
    %p116 = por %p114, %p115
    %p117 = scmp.ne.s32.totalorder %s105, %s106
    %p118 = scmp.eq.s32.totalorder %s23, 1
    %p119 = por %p117, %p118
    %p121 = scmp.ne.s32.totalorder %s106, %s120
    %p122 = scmp.eq.s32.totalorder %s23, 0
    %p123 = por %p121, %p122
    %s125 = sadd.s32 %s124, 1
    %p128 = scmp.eq.s32.totalorder %s17, 1
    %p129 = scmp.ne.s32.totalorder %s124, %s126
    %p130 = scmp.eq.s32.totalorder %s17, 0
    %p131 = por %p129, %p130
    %p132 = scmp.ne.s32.totalorder %s124, %s126
    %p133 = scmp.eq.s32.totalorder %s22, 1
    %p134 = por %p132, %p133
    %p135 = scmp.ne.s32.totalorder %s126, %s127
    %p136 = scmp.eq.s32.totalorder %s22, 0
    %p137 = por %p135, %p136
    %p138 = scmp.ne.s32.totalorder %s126, %s127
    %p139 = scmp.eq.s32.totalorder %s23, 1
    %p140 = por %p138, %p139
    %p142 = scmp.ne.s32.totalorder %s127, %s141
    %p143 = scmp.eq.s32.totalorder %s23, 0
    %p144 = por %p142, %p143
    %s146 = sadd.s32 %s145, 1
    %p149 = scmp.eq.s32.totalorder %s17, 1
    %p150 = scmp.ne.s32.totalorder %s145, %s147
    %p151 = scmp.eq.s32.totalorder %s17, 0
    %p152 = por %p150, %p151
    %p153 = scmp.ne.s32.totalorder %s145, %s147
    %p154 = scmp.eq.s32.totalorder %s22, 1
    %p155 = por %p153, %p154
    %p156 = scmp.ne.s32.totalorder %s147, %s148
    %p157 = scmp.eq.s32.totalorder %s22, 0
    %p158 = por %p156, %p157
    %p159 = scmp.ne.s32.totalorder %s147, %s148
    %p160 = scmp.eq.s32.totalorder %s23, 1
    %p161 = por %p159, %p160
    %p163 = scmp.ne.s32.totalorder %s148, %s162
    %p164 = scmp.eq.s32.totalorder %s23, 0
    %p165 = por %p163, %p164
    %s167 = sadd.s32 %s166, 1
    %p170 = scmp.eq.s32.totalorder %s17, 1
    %p171 = scmp.ne.s32.totalorder %s166, %s168
    %p172 = scmp.eq.s32.totalorder %s17, 0
    %p173 = por %p171, %p172
    %p174 = scmp.ne.s32.totalorder %s166, %s168
    %p175 = scmp.eq.s32.totalorder %s22, 1
    %p176 = por %p174, %p175
    %p177 = scmp.ne.s32.totalorder %s168, %s169
    %p178 = scmp.eq.s32.totalorder %s22, 0
    %p179 = por %p177, %p178
    %p180 = scmp.ne.s32.totalorder %s168, %s169
    %p181 = scmp.eq.s32.totalorder %s23, 1
    %p182 = por %p180, %p181
    %p184 = scmp.ne.s32.totalorder %s169, %s183
    %p185 = scmp.eq.s32.totalorder %s23, 0
    %p186 = por %p184, %p185
    %s188 = sadd.s32 %s187, 1
    %p191 = scmp.eq.s32.totalorder %s17, 1
    %p192 = scmp.ne.s32.totalorder %s187, %s189
    %p193 = scmp.eq.s32.totalorder %s17, 0
    %p194 = por %p192, %p193
    %p195 = scmp.ne.s32.totalorder %s187, %s189
    %p196 = scmp.eq.s32.totalorder %s22, 1
    %p197 = por %p195, %p196
    %p198 = scmp.ne.s32.totalorder %s189, %s190
    %p199 = scmp.eq.s32.totalorder %s22, 0
    %p200 = por %p198, %p199
    %p201 = scmp.ne.s32.totalorder %s189, %s190
    %p202 = scmp.eq.s32.totalorder %s23, 1
    %p203 = por %p201, %p202
    %p205 = scmp.ne.s32.totalorder %s190, %s204
    %p206 = scmp.eq.s32.totalorder %s23, 0
    %p207 = por %p205, %p206
    %s209 = sadd.s32 %s208, 1
    %p212 = scmp.eq.s32.totalorder %s17, 1
    %p213 = scmp.ne.s32.totalorder %s208, %s210
    %p214 = scmp.eq.s32.totalorder %s17, 0
    %p215 = por %p213, %p214
    %p216 = scmp.ne.s32.totalorder %s208, %s210
    %p217 = scmp.eq.s32.totalorder %s22, 1
    %p218 = por %p216, %p217
    %p219 = scmp.ne.s32.totalorder %s210, %s211
    %p220 = scmp.eq.s32.totalorder %s22, 0
    %p221 = por %p219, %p220
    %p222 = scmp.ne.s32.totalorder %s210, %s211
    %p223 = scmp.eq.s32.totalorder %s23, 1
    %p224 = por %p222, %p223
    %p226 = scmp.ne.s32.totalorder %s211, %s225
    %p227 = scmp.eq.s32.totalorder %s23, 0
    %p228 = por %p226, %p227
    %s229 = ssub.s32 %s17, %s24
    %p230 = scmp.eq.s32.totalorder %s229, 0
    %s232 = sadd.s32 %s231, 1
    %s233 = scalar_select %p230, %s231, %s232
    %p236 = pneg %p230
    %p237 = scmp.eq.s32.totalorder %s17, 1
    %p238 = por %p236, %p237
    %p239 = scmp.ne.s32.totalorder %s231, %s234
    %p240 = scmp.eq.s32.totalorder %s17, 0
    %p241 = por %p239, %p240
    %p242 = scmp.ne.s32.totalorder %s231, %s234
    %p243 = scmp.eq.s32.totalorder %s22, 1
    %p244 = por %p242, %p243
    %p245 = scmp.ne.s32.totalorder %s234, %s235
    %p246 = scmp.eq.s32.totalorder %s22, 0
    %p247 = por %p245, %p246
    %p248 = scmp.ne.s32.totalorder %s234, %s235
    %p249 = scmp.eq.s32.totalorder %s23, 1
    %p250 = por %p248, %p249
    %p252 = scmp.ne.s32.totalorder %s235, %s251
    %p253 = scmp.eq.s32.totalorder %s23, 0
    %p254 = por %p252, %p253
    %s255 = ssub.s32 %s17, %s24
    %p256 = scmp.eq.s32.totalorder %s255, 0
    %s258 = sadd.s32 %s257, 1
    %s259 = scalar_select %p256, %s257, %s258
    %p262 = pneg %p256
    %p263 = scmp.eq.s32.totalorder %s17, 1
    %p264 = por %p262, %p263
    %p265 = scmp.ne.s32.totalorder %s257, %s260
    %p266 = scmp.eq.s32.totalorder %s17, 0
    %p267 = por %p265, %p266
    %p268 = scmp.ne.s32.totalorder %s257, %s260
    %p269 = scmp.eq.s32.totalorder %s22, 1
    %p270 = por %p268, %p269
    %p271 = scmp.ne.s32.totalorder %s260, %s261
    %p272 = scmp.eq.s32.totalorder %s22, 0
    %p273 = por %p271, %p272
    %p274 = scmp.ne.s32.totalorder %s260, %s261
    %p275 = scmp.eq.s32.totalorder %s23, 1
    %p276 = por %p274, %p275
    %p278 = scmp.ne.s32.totalorder %s261, %s277
    %p279 = scmp.eq.s32.totalorder %s23, 0
    %p280 = por %p278, %p279
    %p281 = scmp.le.s32.totalorder 1, %s17
    %p282 = scmp.lt.s32.totalorder %s17, 3
    %p283 = pnand %p281, %p282
    %p284 = pneg %p283
    // Predicated region
    $region9: #{up2d_forward.1} parent=5 // pred_check
      _
    $region10: #{up2d_forward.1} parent=5 // pred_check_branch
      %286 = sbr.rel (%p283) target = $region12
    $region11: #{up2d_forward.1} parent=5 // pred_region
      %s287 = ssub.s32 %s17, 1
      // Predicated region
      $region13: #{up2d_forward.1} parent=11 // pred_check
        %p288 = pneg %p116
      $region14: #{up2d_forward.1} parent=11 // pred_check_branch
        %290 = sbr.rel (%p288) target = $region16
      $region15: #{up2d_forward.1} parent=11 // pred_region
        _
      $region16: #{up2d_forward.1} parent=11 // pred_fallthru
        _
      // Predicated region
      $region17: #{up2d_forward.1} parent=11 // pred_check
        %p291 = pneg %p137
      $region18: #{up2d_forward.1} parent=11 // pred_check_branch
        %293 = sbr.rel (%p291) target = $region20
      $region19: #{up2d_forward.1} parent=11 // pred_region
        _
      $region20: #{up2d_forward.1} parent=11 // pred_fallthru
        _
      // Predicated region
      $region21: #{up2d_forward.1} parent=11 // pred_check
        %p294 = pneg %p158
      $region22: #{up2d_forward.1} parent=11 // pred_check_branch
        %296 = sbr.rel (%p294) target = $region24
      $region23: #{up2d_forward.1} parent=11 // pred_region
        _
      $region24: #{up2d_forward.1} parent=11 // pred_fallthru
        _
      // Predicated region
      $region25: #{up2d_forward.1} parent=11 // pred_check
        %p297 = pneg %p179
      $region26: #{up2d_forward.1} parent=11 // pred_check_branch
        %299 = sbr.rel (%p297) target = $region28
      $region27: #{up2d_forward.1} parent=11 // pred_region
        _
      $region28: #{up2d_forward.1} parent=11 // pred_fallthru
        _
      // Predicated region
      $region29: #{up2d_forward.1} parent=11 // pred_check
        %p300 = pneg %p200
      $region30: #{up2d_forward.1} parent=11 // pred_check_branch
        %302 = sbr.rel (%p300) target = $region32
      $region31: #{up2d_forward.1} parent=11 // pred_region
        _
      $region32: #{up2d_forward.1} parent=11 // pred_fallthru
        _
      // Predicated region
      $region33: #{up2d_forward.1} parent=11 // pred_check
        %p303 = pneg %p221
      $region34: #{up2d_forward.1} parent=11 // pred_check_branch
        %305 = sbr.rel (%p303) target = $region36
      $region35: #{up2d_forward.1} parent=11 // pred_region
        _
      $region36: #{up2d_forward.1} parent=11 // pred_fallthru
        _
    $region12: #{up2d_forward.1} parent=5 // pred_fallthru
      _
    %p306 = scmp.lt.s32.totalorder %s17, 2
    // Predicated region
    $region37: #{up2d_forward.1} parent=5 // pred_check
      %p307 = pneg %p306
    $region38: #{up2d_forward.1} parent=5 // pred_check_branch
      %309 = sbr.rel (%p307) target = $region40
    $region39: #{up2d_forward.1} parent=5 // pred_region
      // Predicated region
      $region41: #{up2d_forward.1} parent=39 // pred_check
        %p310 = pneg %p37
      $region42: #{up2d_forward.1} parent=39 // pred_check_branch
        %312 = sbr.rel (%p310) target = $region44
      $region43: #{up2d_forward.1} parent=39 // pred_region
        %s313 = smul.u32 2, %s17
        %p314 = scmp.lt.s32.totalorder %s313, 3
        %s315 = scalar_select %p314, %s313, 3
        %s316 = smul.addr %s315, 8
        %s317 = scalar_lea.vmem %s0, %s316
        %s318 = smul.u32 2, %s17
      $region44: #{up2d_forward.1} parent=39 // pred_fallthru
        _
      // Predicated region
      $region45: #{up2d_forward.1} parent=39 // pred_check
        %p319 = pneg %p63
      $region46: #{up2d_forward.1} parent=39 // pred_check_branch
        %321 = sbr.rel (%p319) target = $region48
      $region47: #{up2d_forward.1} parent=39 // pred_region
        %s322 = smul.u32 2, %s17
        %p323 = scmp.lt.s32.totalorder %s322, 3
        %s324 = scalar_select %p323, %s322, 3
        %s325 = smul.addr %s324, 2
        %s326 = smul.addr %s325, 8
        %s327 = scalar_lea.vmem %s1, %s326
        %s328 = smul.u32 2, %s17
      $region48: #{up2d_forward.1} parent=39 // pred_fallthru
        _
      // Predicated region
      $region49: #{up2d_forward.1} parent=39 // pred_check
        %p329 = pneg %p89
      $region50: #{up2d_forward.1} parent=39 // pred_check_branch
        %331 = sbr.rel (%p329) target = $region52
      $region51: #{up2d_forward.1} parent=39 // pred_region
        %s332 = smul.u32 2, %s17
        %p333 = scmp.lt.s32.totalorder %s332, 3
        %s334 = scalar_select %p333, %s332, 3
        %s335 = smul.addr %s334, 2
        %s336 = smul.addr %s335, 8
        %s337 = scalar_lea.vmem %s2, %s336
        %s338 = smul.u32 2, %s17
      $region52: #{up2d_forward.1} parent=39 // pred_fallthru
        _
    $region40: #{up2d_forward.1} parent=5 // pred_fallthru
      _
    %p339 = scmp.le.s32.totalorder 1, %s17
    %p340 = scmp.lt.s32.totalorder %s17, 3
    %p341 = pnand %p339, %p340
    %p342 = pneg %p341
    // Predicated region
    $region53: #{up2d_forward.1} parent=5 // pred_check
      _
    $region54: #{up2d_forward.1} parent=5 // pred_check_branch
      %344 = sbr.rel (%p341) target = $region56
    $region55: #{up2d_forward.1} parent=5 // pred_region
      %s345 = ssub.s32 %s17, 1
      %s346 = smul.u32 2, %s22
      %p347 = scmp.lt.s32.totalorder %s346, 3
      %s348 = scalar_select %p347, %s346, 3
      %s349 = smul.addr %s348, 8
      %s350 = scalar_lea.vmem %s0, %s349
      %p351 = pneg %p43
      %p352 = pneg %p40
      %s353 = smul.u32 2, %s22
      %p354 = scmp.lt.s32.totalorder %s353, 3
      %s355 = scalar_select %p354, %s353, 3
      %s356 = smul.addr %s355, 2
      %s357 = smul.addr %s356, 8
      %s358 = scalar_lea.vmem %s1, %s357
      %p359 = pneg %p69
      %p360 = pneg %p66
      %s361 = smul.u32 2, %s22
      %p362 = scmp.lt.s32.totalorder %s361, 3
      %s363 = scalar_select %p362, %s361, 3
      %s364 = smul.addr %s363, 2
      %s365 = smul.addr %s364, 8
      %s366 = scalar_lea.vmem %s2, %s365
      %p367 = pneg %p95
      %p368 = pneg %p92
      %p369 = pneg %p116
      %p370 = pneg %p113
      %p371 = pneg %p137
      %p372 = pneg %p134
      %p373 = pneg %p158
      %p374 = pneg %p155
      %p375 = pneg %p179
      %p376 = pneg %p176
      %p377 = pneg %p200
      %p378 = pneg %p197
      %p379 = pneg %p221
      %p380 = pneg %p218
      %p381 = pneg %p247
      %p382 = pneg %p244
      %s383 = smul.u32 2, %s22
      %p384 = scmp.lt.s32.totalorder %s383, 3
      %s385 = scalar_select %p384, %s383, 3
      %s386 = smul.addr %s385, 2
      %s387 = smul.addr %s386, 8
      %s388 = scalar_lea.vmem %s9, %s387
      %p389 = pneg %p273
      %p390 = pneg %p270
      %s391 = smul.u32 2, %s22
      %p392 = scmp.lt.s32.totalorder %s391, 3
      %s393 = scalar_select %p392, %s391, 3
      %s394 = smul.addr %s393, 2
      %s395 = smul.addr %s394, 8
      %s396 = scalar_lea.vmem %s10, %s395
      %s397 = smul.u32 2, %s22
      %p398 = scmp.lt.s32.totalorder %s397, 3
      %s399 = scalar_select %p398, %s397, 3
      %s400 = smul.addr %s399, 8
      %s401 = scalar_lea.vmem %s0, %s400
      %s402 = smul.u32 2, %s22
      %s403 = smul.u32 2, %s22
      %p404 = scmp.lt.s32.totalorder %s403, 3
      %s405 = scalar_select %p404, %s403, 3
      %s406 = smul.addr %s405, 2
      %s407 = smul.addr %s406, 8
      %s408 = scalar_lea.vmem %s1, %s407
      %s409 = smul.u32 2, %s22
      %s410 = smul.u32 2, %s22
      %p411 = scmp.lt.s32.totalorder %s410, 3
      %s412 = scalar_select %p411, %s410, 3
      %s413 = smul.addr %s412, 2
      %s414 = smul.addr %s413, 8
      %s415 = scalar_lea.vmem %s2, %s414
      %s416 = smul.u32 2, %s22
      %s417 = smul.u32 2, %s22
      %p418 = scmp.lt.s32.totalorder %s417, 3
      %s419 = scalar_select %p418, %s417, 3
      %s420 = smul.addr %s419, 2
      %s421 = smul.addr %s420, 8
      %s422 = scalar_lea.vmem %s9, %s421
      %s423 = smul.u32 2, %s22
      %s424 = smul.u32 2, %s22
      %p425 = scmp.lt.s32.totalorder %s424, 3
      %s426 = scalar_select %p425, %s424, 3
      %s427 = smul.addr %s426, 2
      %s428 = smul.addr %s427, 8
      %s429 = scalar_lea.vmem %s10, %s428
      %s430 = smul.u32 2, %s22
      %v432 = vld [vmem:[%s401] sm:$0xff]
      %v433 = vld [vmem:[%s401 + $0x8] sm:$0xff]
      %v434 = vpack.c.bf16 %v432, %v432
      %v435 = vpack.c.bf16 %v433, %v433
      %438 = vrot.lane.b32.xlu0 %v434, 64
      %v439 = vpop.permute.xlu0 %438
      %440 = vrot.lane.b32.xlu0 %v435, 64
      %v441 = vpop.permute.xlu0 %440
      %vm444 = vcmask 1043968
      %445 = vst.msk [vmem:[#allocation2] sm:$0xf] %vm444, %v439
      %446 = vst.msk [vmem:[#allocation2 + $0x8] sm:$0xf] %vm444, %v441
      %vm447 = vsmask.f32 256
      %vm448 = vsmask.f32 4368
      %vm449 = vmor %vm447, %vm448
      %v451 = vshrl.u32 %v434, 16
      %v453 = vrot.slane %v451, 7
      %v454 = vshll.u32 %v434, 16
      %v456 = vor.u32 %v453, %v454
      %v457 = vrot.slane %v453, 4
      %v459 = vshrl.u32 %v435, 16
      %v461 = vrot.slane %v459, 7
      %v462 = vshll.u32 %v435, 16
      %v464 = vor.u32 %v461, %v462
      %v465 = vsel %vm449, %v457, %v464
      %vm468 = vcmask 519168
      %vm469 = vsmask.f32 7938
      %vm470 = vmand %vm468, %vm469
      %v471 = vld [vmem:[#allocation2] sm:$0xf]
      %v472 = vsel %vm470, %v456, %v471
      %473 = vst [vmem:[#allocation2] sm:$0xf] %v472
      %vm474 = vcmask 519168
      %475 = vst.msk [vmem:[#allocation2 + $0x8] sm:$0xf] %vm474, %v465
      %vm476 = vcmask 516096
      %vm477 = vmand %vm476, %vm447
      %v478 = vld [vmem:[#allocation2] sm:$0x1]
      %v479 = vsel %vm477, 0, %v478
      %480 = vst [vmem:[#allocation2] sm:$0x1] %v479
      %vm481 = vsmask.f32 3328
      %vm482 = vsmask.f32 7440
      %vm483 = vmor %vm481, %vm482
      %v484 = vrot.slane %v451, 4
      %v485 = vrot.slane %v454, 5
      %v486 = vor.u32 %v484, %v485
      %v487 = vrot.slane %v486, 4
      %v488 = vrot.slane %v462, 5
      %v489 = vsel %vm483, %v487, %v488
      %v490 = vrot.slane %v459, 4
      %v491 = vor.u32 %v490, %v488
      %v492 = vrot.slane %v491, 4
      %495 = vst.msk [vmem:[#allocation2 + $0x4] sm:$0xf] %vm474, %v489
      %vm496 = vmand %vm468, %vm481
      %v497 = vld [vmem:[#allocation2 + $0xc] sm:$0xf]
      %v498 = vsel %vm496, %v492, %v497
      %499 = vst [vmem:[#allocation2 + $0xc] sm:$0xf] %v498
      %vm500 = vcmask 519171
      %vm501 = vsmask.f32 7950
      %vm502 = vmand %vm500, %vm501
      %v503 = vld [vmem:[#allocation2 + $0xc] sm:$0x8]
      %v504 = vsel %vm502, 0, %v503
      %505 = vst [vmem:[#allocation2 + $0xc] sm:$0x8] %v504
      %v506 = vld [vmem:[#allocation2] sm:$0xff]
      %v507 = vld [vmem:[#allocation2 + $0x8] sm:$0xff]
      %v508 = vld [vmem:[%s3] sm:$0xff]
      %v509 = vld [vmem:[%s3 + $0x8] sm:$0xff]
      %v510 = vld [vmem:[%s3 + $0x10] sm:$0xff]
      %v511 = vld [vmem:[%s3 + $0x18] sm:$0xff]
      %v512 = vld [vmem:[%s3 + $0x20] sm:$0xff]
      %v513 = vld [vmem:[%s3 + $0x28] sm:$0xff]
      %v514 = vld [vmem:[%s3 + $0x30] sm:$0xff]
      %v515 = vld [vmem:[%s3 + $0x38] sm:$0xff]
      %v516 = vld [vmem:[%s3 + $0x40] sm:$0xff]
      %v517 = vld [vmem:[%s3 + $0x48] sm:$0xff]
      %v518 = vld [vmem:[%s3 + $0x50] sm:$0xff]
      %v519 = vld [vmem:[%s3 + $0x58] sm:$0xff]
      %v520 = vld [vmem:[%s3 + $0x60] sm:$0xff]
      %v521 = vld [vmem:[%s3 + $0x68] sm:$0xff]
      %v522 = vld [vmem:[%s3 + $0x70] sm:$0xff]
      %v523 = vld [vmem:[%s3 + $0x78] sm:$0xff]
      %v524 = vld [vmem:[%s3 + $0x80] sm:$0xff]
      %v525 = vld [vmem:[%s3 + $0x88] sm:$0xff]
      %v526 = vld [vmem:[%s3 + $0x90] sm:$0xff]
      %v527 = vld [vmem:[%s3 + $0x98] sm:$0xff]
      %v528 = vld [vmem:[%s3 + $0xa0] sm:$0xff]
      %v529 = vld [vmem:[%s3 + $0xa8] sm:$0xff]
      %v530 = vld [vmem:[%s3 + $0xb0] sm:$0xff]
      %v531 = vld [vmem:[%s3 + $0xb8] sm:$0xff]
      %v532 = vld [vmem:[%s6] sm:$0x3]
      %v534 = vperm.slane %v532, 0
      %v535 = vperm.slane %v532, 1
      %v540 = vunpack.c.l.b16 %v506
      %v541 = vunpack.c.h.b16 %v506
      %v542 = vunpack.c.l.b16 %v507
      %v543 = vunpack.c.h.b16 %v507
      %v544 = vpack.c.b16 %v542, %v540
      %v545 = vpack.c.b16 %v543, %v541
      %v571 = vunpack.c.l.b16 %v508
      %v572 = vunpack.c.h.b16 %v508
      %v573 = vunpack.c.l.b16 %v509
      %v574 = vunpack.c.h.b16 %v509
      %v575 = vunpack.c.l.b16 %v510
      %v576 = vunpack.c.h.b16 %v510
      %v577 = vunpack.c.l.b16 %v511
      %v578 = vunpack.c.h.b16 %v511
      %v579 = vunpack.c.l.b16 %v512
      %v580 = vunpack.c.h.b16 %v512
      %v581 = vunpack.c.l.b16 %v513
      %v582 = vunpack.c.h.b16 %v513
      %v583 = vunpack.c.l.b16 %v514
      %v584 = vunpack.c.h.b16 %v514
      %v585 = vunpack.c.l.b16 %v515
      %v586 = vunpack.c.h.b16 %v515
      %v587 = vunpack.c.l.b16 %v516
      %v588 = vunpack.c.h.b16 %v516
      %v589 = vunpack.c.l.b16 %v517
      %v590 = vunpack.c.h.b16 %v517
      %v591 = vunpack.c.l.b16 %v518
      %v592 = vunpack.c.h.b16 %v518
      %v593 = vunpack.c.l.b16 %v519
      %v594 = vunpack.c.h.b16 %v519
      %v595 = vunpack.c.l.b16 %v520
      %v596 = vunpack.c.h.b16 %v520
      %v597 = vunpack.c.l.b16 %v521
      %v598 = vunpack.c.h.b16 %v521
      %v599 = vunpack.c.l.b16 %v522
      %v600 = vunpack.c.h.b16 %v522
      %v601 = vunpack.c.l.b16 %v523
      %v602 = vunpack.c.h.b16 %v523
      %v603 = vunpack.c.l.b16 %v524
      %v604 = vunpack.c.h.b16 %v524
      %v605 = vunpack.c.l.b16 %v525
      %v606 = vunpack.c.h.b16 %v525
      %v607 = vunpack.c.l.b16 %v526
      %v608 = vunpack.c.h.b16 %v526
      %v609 = vunpack.c.l.b16 %v527
      %v610 = vunpack.c.h.b16 %v527
      %v611 = vunpack.c.l.b16 %v528
      %v612 = vunpack.c.h.b16 %v528
      %v613 = vunpack.c.l.b16 %v529
      %v614 = vunpack.c.h.b16 %v529
      %v615 = vunpack.c.l.b16 %v530
      %v616 = vunpack.c.h.b16 %v530
      %v617 = vunpack.c.l.b16 %v531
      %v618 = vunpack.c.h.b16 %v531
      %v619 = vpack.c.b16 %v573, %v571
      %v620 = vpack.c.b16 %v574, %v572
      %v621 = vpack.c.b16 %v577, %v575
      %v622 = vpack.c.b16 %v578, %v576
      %v623 = vpack.c.b16 %v581, %v579
      %v624 = vpack.c.b16 %v582, %v580
      %v625 = vpack.c.b16 %v585, %v583
      %v626 = vpack.c.b16 %v586, %v584
      %v627 = vpack.c.b16 %v589, %v587
      %v628 = vpack.c.b16 %v590, %v588
      %v629 = vpack.c.b16 %v593, %v591
      %v630 = vpack.c.b16 %v594, %v592
      %v631 = vpack.c.b16 %v597, %v595
      %v632 = vpack.c.b16 %v598, %v596
      %v633 = vpack.c.b16 %v601, %v599
      %v634 = vpack.c.b16 %v602, %v600
      %v635 = vpack.c.b16 %v605, %v603
      %v636 = vpack.c.b16 %v606, %v604
      %v637 = vpack.c.b16 %v609, %v607
      %v638 = vpack.c.b16 %v610, %v608
      %v639 = vpack.c.b16 %v613, %v611
      %v640 = vpack.c.b16 %v614, %v612
      %v641 = vpack.c.b16 %v617, %v615
      %v642 = vpack.c.b16 %v618, %v616
      %vm667 = vcmask 523264
      %v669 = vsel %vm667, %v545, 0
      %671 = vmatpush.bf16.msra.mxu0 %v633
      %672 = vmatpush.bf16.msra.mxu0 %v631
      %673 = vmatpush.bf16.msra.mxu0 %v629
      %674 = vmatpush.bf16.msra.mxu0 %v627
      %675 = vmatpush.bf16.msra.mxu0 %v625
      %676 = vmatpush.bf16.msra.mxu0 %v623
      %677 = vmatpush.bf16.msra.mxu0 %v621
      %678 = vmatpush.bf16.msra.mxu0 %v619
      %679 = vmatmul.bf16.gmra.mxu0 %v544
      %v680 = vpop.f32.mrf.mxu0
      %v681 = vadd.f32 %v534, %v680
      %v682 = vpop.f32.mrf.mxu0
      %v683 = vadd.f32 %v534, %v682
      %684 = vdwg.mxu0
      %685 = vmatpush.bf16.msra.mxu0 0
      %686 = vmatpush.bf16.msra.mxu0 0
      %687 = vmatpush.bf16.msra.mxu0 0
      %688 = vmatpush.bf16.msra.mxu0 0
      %689 = vmatpush.bf16.msra.mxu0 %v641
      %690 = vmatpush.bf16.msra.mxu0 %v639
      %691 = vmatpush.bf16.msra.mxu0 %v637
      %692 = vmatpush.bf16.msra.mxu0 %v635
      %693 = vmatmul.bf16.gmra.mxu0 %v669
      %v694 = vpop.f32.mrf.mxu0
      %v695 = vadd.f32 %v681, %v694
      %v696 = vpop.f32.mrf.mxu0
      %v697 = vadd.f32 %v683, %v696
      %698 = vdwg.mxu0
      %699 = vmatpush.bf16.msra.mxu0 %v634
      %700 = vmatpush.bf16.msra.mxu0 %v632
      %701 = vmatpush.bf16.msra.mxu0 %v630
      %702 = vmatpush.bf16.msra.mxu0 %v628
      %703 = vmatpush.bf16.msra.mxu0 %v626
      %704 = vmatpush.bf16.msra.mxu0 %v624
      %705 = vmatpush.bf16.msra.mxu0 %v622
      %706 = vmatpush.bf16.msra.mxu0 %v620
      %707 = vmatmul.bf16.gmra.mxu0 %v544
      %v708 = vpop.f32.mrf.mxu0
      %v709 = vadd.f32 %v535, %v708
      %v710 = vpop.f32.mrf.mxu0
      %v711 = vadd.f32 %v535, %v710
      %712 = vdwg.mxu0
      %713 = vmatpush.bf16.msra.mxu0 0
      %714 = vmatpush.bf16.msra.mxu0 0
      %715 = vmatpush.bf16.msra.mxu0 0
      %716 = vmatpush.bf16.msra.mxu0 0
      %717 = vmatpush.bf16.msra.mxu0 %v642
      %718 = vmatpush.bf16.msra.mxu0 %v640
      %719 = vmatpush.bf16.msra.mxu0 %v638
      %720 = vmatpush.bf16.msra.mxu0 %v636
      %721 = vmatmul.bf16.gmra.mxu0 %v669
      %v722 = vpop.f32.mrf.mxu0
      %v723 = vadd.f32 %v709, %v722
      %v724 = vpop.f32.mrf.mxu0
      %v725 = vadd.f32 %v711, %v724
      %726 = vdwg.mxu0
      %vm727 = vcmp.ge.f32.partialorder %v695, 0.0
      %vm728 = vcmp.ge.f32.partialorder %v723, 0.0
      %vm729 = vcmp.ge.f32.partialorder %v697, 0.0
      %vm730 = vcmp.ge.f32.partialorder %v725, 0.0
      %v731 = vmul.f32 %v695, 0.1
      %v732 = vmul.f32 %v723, 0.1
      %v733 = vmul.f32 %v697, 0.1
      %v734 = vmul.f32 %v725, 0.1
      %v735 = vsel %vm727, %v695, %v731
      %v736 = vsel %vm728, %v723, %v732
      %v737 = vsel %vm729, %v697, %v733
      %v738 = vsel %vm730, %v725, %v734
      %v739 = vpack.c.bf16 %v736, %v735
      %v740 = vpack.c.bf16 %v738, %v737
      %v742 = vshrl.u32 %v739, 16
      %v744 = vrot.slane %v742, 7
      %v745 = vshll.u32 %v739, 16
      %v747 = vor.u32 %v744, %v745
      %v748 = vrot.slane %v744, 4
      %v750 = vshrl.u32 %v740, 16
      %v752 = vrot.slane %v750, 7
      %v753 = vshll.u32 %v740, 16
      %v755 = vor.u32 %v752, %v753
      %v756 = vsel %vm449, %v748, %v755
      %v757 = vrot.slane %v747, 4
      %v758 = vrot.slane %v756, 4
      %vm761 = vcmask 1043456
      %vm762 = vmand %vm761, %vm469
      %v763 = vld [vmem:[#allocation3] sm:$0xf]
      %v764 = vsel %vm762, %v757, %v763
      %765 = vst [vmem:[#allocation3] sm:$0xf] %v764
      %766 = vst [vmem:[#allocation3 + $0xc] sm:$0xf] %v758
      %vm767 = vcmask 1040384
      %vm768 = vmand %vm767, %vm447
      %v769 = vld [vmem:[#allocation3] sm:$0x1]
      %v770 = vsel %vm768, 0, %v769
      %771 = vst [vmem:[#allocation3] sm:$0x1] %v770
      %772 = vst [vmem:[#allocation3 + $0x4] sm:$0xf] %v739
      %773 = vst [vmem:[#allocation3 + $0x10] sm:$0xf] %v740
      %v776 = vrot.slane %v739, 4
      %v777 = vrot.slane %v740, 4
      %780 = vst [vmem:[#allocation3 + $0x8] sm:$0xf] %v776
      %781 = vst [vmem:[#allocation3 + $0x14] sm:$0xf] %v777
      %782 = vst [vmem:[#allocation3 + $0x18] sm:$0xf] %v739
      %783 = vst [vmem:[#allocation3 + $0x24] sm:$0xf] %v740
      %784 = vst [vmem:[#allocation3 + $0x1c] sm:$0xf] %v776
      %785 = vst [vmem:[#allocation3 + $0x28] sm:$0xf] %v777
      %v786 = vrot.slane %v742, 4
      %v787 = vrot.slane %v745, 5
      %v788 = vor.u32 %v786, %v787
      %v789 = vrot.slane %v788, 4
      %v790 = vrot.slane %v753, 5
      %v791 = vsel %vm483, %v789, %v790
      %v792 = vrot.slane %v750, 4
      %v793 = vor.u32 %v792, %v790
      %v794 = vrot.slane %v793, 4
      %797 = vst [vmem:[#allocation3 + $0x20] sm:$0xf] %v791
      %vm798 = vmand %vm761, %vm481
      %v799 = vld [vmem:[#allocation3 + $0x2c] sm:$0xf]
      %v800 = vsel %vm798, %v794, %v799
      %801 = vst [vmem:[#allocation3 + $0x2c] sm:$0xf] %v800
      %vm802 = vcmask 1043459
      %vm803 = vmand %vm802, %vm501
      %v804 = vld [vmem:[#allocation3 + $0x2c] sm:$0x8]
      %v805 = vsel %vm803, 0, %v804
      %806 = vst [vmem:[#allocation3 + $0x2c] sm:$0x8] %v805
      %v807 = vld [vmem:[#allocation3] sm:$0xff]
      %v808 = vld [vmem:[#allocation3 + $0x8] sm:$0xf]
      %v809 = vld [vmem:[#allocation3 + $0xc] sm:$0xff]
      %v810 = vld [vmem:[#allocation3 + $0x14] sm:$0xf]
      %v811 = vld [vmem:[#allocation3 + $0x18] sm:$0xff]
      %v812 = vld [vmem:[#allocation3 + $0x20] sm:$0xf]
      %v813 = vld [vmem:[#allocation3 + $0x24] sm:$0xff]
      %v814 = vld [vmem:[#allocation3 + $0x2c] sm:$0xf]
      %v815 = vld [vmem:[%s4] sm:$0xff]
      %v816 = vld [vmem:[%s4 + $0x8] sm:$0xff]
      %v817 = vld [vmem:[%s4 + $0x10] sm:$0xff]
      %v818 = vld [vmem:[%s4 + $0x18] sm:$0xff]
      %v819 = vld [vmem:[%s4 + $0x20] sm:$0xff]
      %v820 = vld [vmem:[%s4 + $0x28] sm:$0xff]
      %v821 = vld [vmem:[%s4 + $0x30] sm:$0xff]
      %v822 = vld [vmem:[%s4 + $0x38] sm:$0xff]
      %v823 = vld [vmem:[%s4 + $0x40] sm:$0xff]
      %v824 = vld [vmem:[%s4 + $0x48] sm:$0xff]
      %v825 = vld [vmem:[%s4 + $0x50] sm:$0xff]
      %v826 = vld [vmem:[%s4 + $0x58] sm:$0xff]
      %v827 = vld [vmem:[%s4 + $0x60] sm:$0xff]
      %v828 = vld [vmem:[%s4 + $0x68] sm:$0xff]
      %v829 = vld [vmem:[%s4 + $0x70] sm:$0xff]
      %v830 = vld [vmem:[%s4 + $0x78] sm:$0xff]
      %v831 = vld [vmem:[%s4 + $0x80] sm:$0xff]
      %v832 = vld [vmem:[%s4 + $0x88] sm:$0xff]
      %v833 = vld [vmem:[%s4 + $0x90] sm:$0xff]
      %v834 = vld [vmem:[%s4 + $0x98] sm:$0xff]
      %v835 = vld [vmem:[%s4 + $0xa0] sm:$0xff]
      %v836 = vld [vmem:[%s4 + $0xa8] sm:$0xff]
      %v837 = vld [vmem:[%s4 + $0xb0] sm:$0xff]
      %v838 = vld [vmem:[%s4 + $0xb8] sm:$0xff]
      %v839 = vld [vmem:[%s4 + $0xc0] sm:$0xff]
      %v840 = vld [vmem:[%s4 + $0xc8] sm:$0xff]
      %v841 = vld [vmem:[%s4 + $0xd0] sm:$0xff]
      %v842 = vld [vmem:[%s4 + $0xd8] sm:$0xff]
      %v843 = vld [vmem:[%s4 + $0xe0] sm:$0xff]
      %v844 = vld [vmem:[%s4 + $0xe8] sm:$0xff]
      %v845 = vld [vmem:[%s4 + $0xf0] sm:$0xff]
      %v846 = vld [vmem:[%s4 + $0xf8] sm:$0xff]
      %v847 = vld [vmem:[%s4 + $0x100] sm:$0xff]
      %v848 = vld [vmem:[%s4 + $0x108] sm:$0xff]
      %v849 = vld [vmem:[%s4 + $0x110] sm:$0xff]
      %v850 = vld [vmem:[%s4 + $0x118] sm:$0xff]
      %v851 = vld [vmem:[%s4 + $0x120] sm:$0xff]
      %v852 = vld [vmem:[%s4 + $0x128] sm:$0xff]
      %v853 = vld [vmem:[%s4 + $0x130] sm:$0xff]
      %v854 = vld [vmem:[%s4 + $0x138] sm:$0xff]
      %v855 = vld [vmem:[%s4 + $0x140] sm:$0xff]
      %v856 = vld [vmem:[%s4 + $0x148] sm:$0xff]
      %v857 = vld [vmem:[%s4 + $0x150] sm:$0xff]
      %v858 = vld [vmem:[%s4 + $0x158] sm:$0xff]
      %v859 = vld [vmem:[%s4 + $0x160] sm:$0xff]
      %v860 = vld [vmem:[%s4 + $0x168] sm:$0xff]
      %v861 = vld [vmem:[%s4 + $0x170] sm:$0xff]
      %v862 = vld [vmem:[%s4 + $0x178] sm:$0xff]
      %v863 = vld [vmem:[%s7] sm:$0x3]
      %v865 = vperm.slane %v863, 0
      %v866 = vperm.slane %v863, 1
      %v877 = vunpack.c.l.b16 %v807
      %v878 = vunpack.c.h.b16 %v807
      %v879 = vunpack.c.l.b16 %v808
      %v880 = vunpack.c.l.b16 %v809
      %v881 = vunpack.c.h.b16 %v809
      %v882 = vunpack.c.l.b16 %v810
      %v883 = vunpack.c.l.b16 %v811
      %v884 = vunpack.c.h.b16 %v811
      %v885 = vunpack.c.l.b16 %v812
      %v886 = vunpack.c.l.b16 %v813
      %v887 = vunpack.c.h.b16 %v813
      %v888 = vunpack.c.l.b16 %v814
      %v889 = vpack.c.b16 %v880, %v877
      %v890 = vpack.c.b16 %v881, %v878
      %v891 = vpack.c.b16 %v882, %v879
      %v892 = vpack.c.b16 %v886, %v883
      %v893 = vpack.c.b16 %v887, %v884
      %v894 = vpack.c.b16 %v888, %v885
      %v949 = vunpack.c.l.b16 %v815
      %v950 = vunpack.c.h.b16 %v815
      %v951 = vunpack.c.l.b16 %v816
      %v952 = vunpack.c.h.b16 %v816
      %v953 = vunpack.c.l.b16 %v817
      %v954 = vunpack.c.h.b16 %v817
      %v955 = vunpack.c.l.b16 %v818
      %v956 = vunpack.c.h.b16 %v818
      %v957 = vunpack.c.l.b16 %v819
      %v958 = vunpack.c.h.b16 %v819
      %v959 = vunpack.c.l.b16 %v820
      %v960 = vunpack.c.h.b16 %v820
      %v961 = vunpack.c.l.b16 %v821
      %v962 = vunpack.c.h.b16 %v821
      %v963 = vunpack.c.l.b16 %v822
      %v964 = vunpack.c.h.b16 %v822
      %v965 = vunpack.c.l.b16 %v823
      %v966 = vunpack.c.h.b16 %v823
      %v967 = vunpack.c.l.b16 %v824
      %v968 = vunpack.c.h.b16 %v824
      %v969 = vunpack.c.l.b16 %v825
      %v970 = vunpack.c.h.b16 %v825
      %v971 = vunpack.c.l.b16 %v826
      %v972 = vunpack.c.h.b16 %v826
      %v973 = vunpack.c.l.b16 %v827
      %v974 = vunpack.c.h.b16 %v827
      %v975 = vunpack.c.l.b16 %v828
      %v976 = vunpack.c.h.b16 %v828
      %v977 = vunpack.c.l.b16 %v829
      %v978 = vunpack.c.h.b16 %v829
      %v979 = vunpack.c.l.b16 %v830
      %v980 = vunpack.c.h.b16 %v830
      %v981 = vunpack.c.l.b16 %v831
      %v982 = vunpack.c.h.b16 %v831
      %v983 = vunpack.c.l.b16 %v832
      %v984 = vunpack.c.h.b16 %v832
      %v985 = vunpack.c.l.b16 %v833
      %v986 = vunpack.c.h.b16 %v833
      %v987 = vunpack.c.l.b16 %v834
      %v988 = vunpack.c.h.b16 %v834
      %v989 = vunpack.c.l.b16 %v835
      %v990 = vunpack.c.h.b16 %v835
      %v991 = vunpack.c.l.b16 %v836
      %v992 = vunpack.c.h.b16 %v836
      %v993 = vunpack.c.l.b16 %v837
      %v994 = vunpack.c.h.b16 %v837
      %v995 = vunpack.c.l.b16 %v838
      %v996 = vunpack.c.h.b16 %v838
      %v997 = vunpack.c.l.b16 %v839
      %v998 = vunpack.c.h.b16 %v839
      %v999 = vunpack.c.l.b16 %v840
      %v1000 = vunpack.c.h.b16 %v840
      %v1001 = vunpack.c.l.b16 %v841
      %v1002 = vunpack.c.h.b16 %v841
      %v1003 = vunpack.c.l.b16 %v842
      %v1004 = vunpack.c.h.b16 %v842
      %v1005 = vunpack.c.l.b16 %v843
      %v1006 = vunpack.c.h.b16 %v843
      %v1007 = vunpack.c.l.b16 %v844
      %v1008 = vunpack.c.h.b16 %v844
      %v1009 = vunpack.c.l.b16 %v845
      %v1010 = vunpack.c.h.b16 %v845
      %v1011 = vunpack.c.l.b16 %v846
      %v1012 = vunpack.c.h.b16 %v846
      %v1013 = vunpack.c.l.b16 %v847
      %v1014 = vunpack.c.h.b16 %v847
      %v1015 = vunpack.c.l.b16 %v848
      %v1016 = vunpack.c.h.b16 %v848
      %v1017 = vunpack.c.l.b16 %v849
      %v1018 = vunpack.c.h.b16 %v849
      %v1019 = vunpack.c.l.b16 %v850
      %v1020 = vunpack.c.h.b16 %v850
      %v1021 = vunpack.c.l.b16 %v851
      %v1022 = vunpack.c.h.b16 %v851
      %v1023 = vunpack.c.l.b16 %v852
      %v1024 = vunpack.c.h.b16 %v852
      %v1025 = vunpack.c.l.b16 %v853
      %v1026 = vunpack.c.h.b16 %v853
      %v1027 = vunpack.c.l.b16 %v854
      %v1028 = vunpack.c.h.b16 %v854
      %v1029 = vunpack.c.l.b16 %v855
      %v1030 = vunpack.c.h.b16 %v855
      %v1031 = vunpack.c.l.b16 %v856
      %v1032 = vunpack.c.h.b16 %v856
      %v1033 = vunpack.c.l.b16 %v857
      %v1034 = vunpack.c.h.b16 %v857
      %v1035 = vunpack.c.l.b16 %v858
      %v1036 = vunpack.c.h.b16 %v858
      %v1037 = vunpack.c.l.b16 %v859
      %v1038 = vunpack.c.h.b16 %v859
      %v1039 = vunpack.c.l.b16 %v860
      %v1040 = vunpack.c.h.b16 %v860
      %v1041 = vunpack.c.l.b16 %v861
      %v1042 = vunpack.c.h.b16 %v861
      %v1043 = vunpack.c.l.b16 %v862
      %v1044 = vunpack.c.h.b16 %v862
      %v1045 = vpack.c.b16 %v951, %v949
      %v1046 = vpack.c.b16 %v952, %v950
      %v1047 = vpack.c.b16 %v955, %v953
      %v1048 = vpack.c.b16 %v956, %v954
      %v1049 = vpack.c.b16 %v959, %v957
      %v1050 = vpack.c.b16 %v960, %v958
      %v1051 = vpack.c.b16 %v963, %v961
      %v1052 = vpack.c.b16 %v964, %v962
      %v1053 = vpack.c.b16 %v967, %v965
      %v1054 = vpack.c.b16 %v968, %v966
      %v1055 = vpack.c.b16 %v971, %v969
      %v1056 = vpack.c.b16 %v972, %v970
      %v1057 = vpack.c.b16 %v975, %v973
      %v1058 = vpack.c.b16 %v976, %v974
      %v1059 = vpack.c.b16 %v979, %v977
      %v1060 = vpack.c.b16 %v980, %v978
      %v1061 = vpack.c.b16 %v983, %v981
      %v1062 = vpack.c.b16 %v984, %v982
      %v1063 = vpack.c.b16 %v987, %v985
      %v1064 = vpack.c.b16 %v988, %v986
      %v1065 = vpack.c.b16 %v991, %v989
      %v1066 = vpack.c.b16 %v992, %v990
      %v1067 = vpack.c.b16 %v995, %v993
      %v1068 = vpack.c.b16 %v996, %v994
      %v1069 = vpack.c.b16 %v999, %v997
      %v1070 = vpack.c.b16 %v1000, %v998
      %v1071 = vpack.c.b16 %v1003, %v1001
      %v1072 = vpack.c.b16 %v1004, %v1002
      %v1073 = vpack.c.b16 %v1007, %v1005
      %v1074 = vpack.c.b16 %v1008, %v1006
      %v1075 = vpack.c.b16 %v1011, %v1009
      %v1076 = vpack.c.b16 %v1012, %v1010
      %v1077 = vpack.c.b16 %v1015, %v1013
      %v1078 = vpack.c.b16 %v1016, %v1014
      %v1079 = vpack.c.b16 %v1019, %v1017
      %v1080 = vpack.c.b16 %v1020, %v1018
      %v1081 = vpack.c.b16 %v1023, %v1021
      %v1082 = vpack.c.b16 %v1024, %v1022
      %v1083 = vpack.c.b16 %v1027, %v1025
      %v1084 = vpack.c.b16 %v1028, %v1026
      %v1085 = vpack.c.b16 %v1031, %v1029
      %v1086 = vpack.c.b16 %v1032, %v1030
      %v1087 = vpack.c.b16 %v1035, %v1033
      %v1088 = vpack.c.b16 %v1036, %v1034
      %v1089 = vpack.c.b16 %v1039, %v1037
      %v1090 = vpack.c.b16 %v1040, %v1038
      %v1091 = vpack.c.b16 %v1043, %v1041
      %v1092 = vpack.c.b16 %v1044, %v1042
      %1141 = vmatpush.bf16.msra.mxu0 %v1059
      %1142 = vmatpush.bf16.msra.mxu0 %v1057
      %1143 = vmatpush.bf16.msra.mxu0 %v1055
      %1144 = vmatpush.bf16.msra.mxu0 %v1053
      %1145 = vmatpush.bf16.msra.mxu0 %v1051
      %1146 = vmatpush.bf16.msra.mxu0 %v1049
      %1147 = vmatpush.bf16.msra.mxu0 %v1047
      %1148 = vmatpush.bf16.msra.mxu0 %v1045
      %1149 = vmatmul.bf16.gmra.mxu0 %v889
      %v1150 = vpop.f32.mrf.mxu0
      %v1151 = vadd.f32 %v865, %v1150
      %v1152 = vpop.f32.mrf.mxu0
      %v1153 = vadd.f32 %v865, %v1152
      %1154 = vmatmul.bf16.gmra.mxu0 %v892
      %v1155 = vpop.f32.mrf.mxu0
      %v1156 = vadd.f32 %v865, %v1155
      %v1157 = vpop.f32.mrf.mxu0
      %v1158 = vadd.f32 %v865, %v1157
      %1159 = vdwg.mxu0
      %1160 = vmatpush.bf16.msra.mxu0 %v1075
      %1161 = vmatpush.bf16.msra.mxu0 %v1073
      %1162 = vmatpush.bf16.msra.mxu0 %v1071
      %1163 = vmatpush.bf16.msra.mxu0 %v1069
      %1164 = vmatpush.bf16.msra.mxu0 %v1067
      %1165 = vmatpush.bf16.msra.mxu0 %v1065
      %1166 = vmatpush.bf16.msra.mxu0 %v1063
      %1167 = vmatpush.bf16.msra.mxu0 %v1061
      %1168 = vmatmul.bf16.gmra.mxu0 %v890
      %v1169 = vpop.f32.mrf.mxu0
      %v1170 = vadd.f32 %v1151, %v1169
      %v1171 = vpop.f32.mrf.mxu0
      %v1172 = vadd.f32 %v1153, %v1171
      %1173 = vmatmul.bf16.gmra.mxu0 %v893
      %v1174 = vpop.f32.mrf.mxu0
      %v1175 = vadd.f32 %v1156, %v1174
      %v1176 = vpop.f32.mrf.mxu0
      %v1177 = vadd.f32 %v1158, %v1176
      %1178 = vdwg.mxu0
      %1179 = vmatpush.bf16.msra.mxu0 %v1091
      %1180 = vmatpush.bf16.msra.mxu0 %v1089
      %1181 = vmatpush.bf16.msra.mxu0 %v1087
      %1182 = vmatpush.bf16.msra.mxu0 %v1085
      %1183 = vmatpush.bf16.msra.mxu0 %v1083
      %1184 = vmatpush.bf16.msra.mxu0 %v1081
      %1185 = vmatpush.bf16.msra.mxu0 %v1079
      %1186 = vmatpush.bf16.msra.mxu0 %v1077
      %1187 = vmatmul.bf16.gmra.mxu0 %v891
      %v1188 = vpop.f32.mrf.mxu0
      %v1189 = vadd.f32 %v1170, %v1188
      %v1190 = vpop.f32.mrf.mxu0
      %v1191 = vadd.f32 %v1172, %v1190
      %1192 = vmatmul.bf16.gmra.mxu0 %v894
      %v1193 = vpop.f32.mrf.mxu0
      %v1194 = vadd.f32 %v1175, %v1193
      %v1195 = vpop.f32.mrf.mxu0
      %v1196 = vadd.f32 %v1177, %v1195
      %1197 = vdwg.mxu0
      %1198 = vmatpush.bf16.msra.mxu0 %v1060
      %1199 = vmatpush.bf16.msra.mxu0 %v1058
      %1200 = vmatpush.bf16.msra.mxu0 %v1056
      %1201 = vmatpush.bf16.msra.mxu0 %v1054
      %1202 = vmatpush.bf16.msra.mxu0 %v1052
      %1203 = vmatpush.bf16.msra.mxu0 %v1050
      %1204 = vmatpush.bf16.msra.mxu0 %v1048
      %1205 = vmatpush.bf16.msra.mxu0 %v1046
      %1206 = vmatmul.bf16.gmra.mxu0 %v889
      %v1207 = vpop.f32.mrf.mxu0
      %v1208 = vadd.f32 %v866, %v1207
      %v1209 = vpop.f32.mrf.mxu0
      %v1210 = vadd.f32 %v866, %v1209
      %1211 = vmatmul.bf16.gmra.mxu0 %v892
      %v1212 = vpop.f32.mrf.mxu0
      %v1213 = vadd.f32 %v866, %v1212
      %v1214 = vpop.f32.mrf.mxu0
      %v1215 = vadd.f32 %v866, %v1214
      %1216 = vdwg.mxu0
      %1217 = vmatpush.bf16.msra.mxu0 %v1076
      %1218 = vmatpush.bf16.msra.mxu0 %v1074
      %1219 = vmatpush.bf16.msra.mxu0 %v1072
      %1220 = vmatpush.bf16.msra.mxu0 %v1070
      %1221 = vmatpush.bf16.msra.mxu0 %v1068
      %1222 = vmatpush.bf16.msra.mxu0 %v1066
      %1223 = vmatpush.bf16.msra.mxu0 %v1064
      %1224 = vmatpush.bf16.msra.mxu0 %v1062
      %1225 = vmatmul.bf16.gmra.mxu0 %v890
      %v1226 = vpop.f32.mrf.mxu0
      %v1227 = vadd.f32 %v1208, %v1226
      %v1228 = vpop.f32.mrf.mxu0
      %v1229 = vadd.f32 %v1210, %v1228
      %1230 = vmatmul.bf16.gmra.mxu0 %v893
      %v1231 = vpop.f32.mrf.mxu0
      %v1232 = vadd.f32 %v1213, %v1231
      %v1233 = vpop.f32.mrf.mxu0
      %v1234 = vadd.f32 %v1215, %v1233
      %1235 = vdwg.mxu0
      %1236 = vmatpush.bf16.msra.mxu0 %v1092
      %1237 = vmatpush.bf16.msra.mxu0 %v1090
      %1238 = vmatpush.bf16.msra.mxu0 %v1088
      %1239 = vmatpush.bf16.msra.mxu0 %v1086
      %1240 = vmatpush.bf16.msra.mxu0 %v1084
      %1241 = vmatpush.bf16.msra.mxu0 %v1082
      %1242 = vmatpush.bf16.msra.mxu0 %v1080
      %1243 = vmatpush.bf16.msra.mxu0 %v1078
      %1244 = vmatmul.bf16.gmra.mxu0 %v891
      %v1245 = vpop.f32.mrf.mxu0
      %v1246 = vadd.f32 %v1227, %v1245
      %v1247 = vpop.f32.mrf.mxu0
      %v1248 = vadd.f32 %v1229, %v1247
      %1249 = vmatmul.bf16.gmra.mxu0 %v894
      %v1250 = vpop.f32.mrf.mxu0
      %v1251 = vadd.f32 %v1232, %v1250
      %v1252 = vpop.f32.mrf.mxu0
      %v1253 = vadd.f32 %v1234, %v1252
      %1254 = vdwg.mxu0
      %vm1255 = vcmp.ge.f32.partialorder %v1189, 0.0
      %vm1256 = vcmp.ge.f32.partialorder %v1246, 0.0
      %vm1257 = vcmp.ge.f32.partialorder %v1191, 0.0
      %vm1258 = vcmp.ge.f32.partialorder %v1248, 0.0
      %vm1259 = vcmp.ge.f32.partialorder %v1194, 0.0
      %vm1260 = vcmp.ge.f32.partialorder %v1251, 0.0
      %vm1261 = vcmp.ge.f32.partialorder %v1196, 0.0
      %vm1262 = vcmp.ge.f32.partialorder %v1253, 0.0
      %v1263 = vmul.f32 %v1189, 0.1
      %v1264 = vmul.f32 %v1246, 0.1
      %v1265 = vmul.f32 %v1191, 0.1
      %v1266 = vmul.f32 %v1248, 0.1
      %v1267 = vmul.f32 %v1194, 0.1
      %v1268 = vmul.f32 %v1251, 0.1
      %v1269 = vmul.f32 %v1196, 0.1
      %v1270 = vmul.f32 %v1253, 0.1
      %v1271 = vsel %vm1255, %v1189, %v1263
      %v1272 = vsel %vm1256, %v1246, %v1264
      %v1273 = vsel %vm1257, %v1191, %v1265
      %v1274 = vsel %vm1258, %v1248, %v1266
      %v1275 = vsel %vm1259, %v1194, %v1267
      %v1276 = vsel %vm1260, %v1251, %v1268
      %v1277 = vsel %vm1261, %v1196, %v1269
      %v1278 = vsel %vm1262, %v1253, %v1270
      %v1279 = vpack.c.bf16 %v1272, %v1271
      %v1280 = vpack.c.bf16 %v1274, %v1273
      %v1281 = vpack.c.bf16 %v1276, %v1275
      %v1282 = vpack.c.bf16 %v1278, %v1277
      %v1283 = vld [vmem:[%s408] sm:$0xff]
      %v1284 = vld [vmem:[%s408 + $0x8] sm:$0xff]
      %v1285 = vld [vmem:[%s408 + $0x10] sm:$0xff]
      %v1286 = vld [vmem:[%s408 + $0x18] sm:$0xff]
      %v1287 = vpack.c.bf16 %v1284, %v1283
      %v1288 = vpack.c.bf16 %v1286, %v1285
      %v1289 = vld [vmem:[%s415] sm:$0xff]
      %v1290 = vld [vmem:[%s415 + $0x8] sm:$0xff]
      %v1291 = vld [vmem:[%s415 + $0x10] sm:$0xff]
      %v1292 = vld [vmem:[%s415 + $0x18] sm:$0xff]
      %v1293 = vpack.c.bf16 %v1290, %v1289
      %v1294 = vpack.c.bf16 %v1292, %v1291
      %v1296 = vshrl.u32 %v1281, 16
      %v1298 = vrot.slane %v1296, 7
      %v1299 = vshll.u32 %v1281, 16
      %v1301 = vor.u32 %v1298, %v1299
      %v1302 = vrot.slane %v1298, 4
      %v1304 = vshrl.u32 %v1282, 16
      %v1306 = vrot.slane %v1304, 7
      %v1307 = vshll.u32 %v1282, 16
      %v1309 = vor.u32 %v1306, %v1307
      %v1310 = vsel %vm449, %v1302, %v1309
      %vm1313 = vcmask 1047556
      %vm1314 = vsmask.f32 7954
      %vm1315 = vmand %vm1313, %vm1314
      %vm1316 = vmor %vm1315, %vm762
      %v1317 = vld [vmem:[#allocation4] sm:$0xff]
      %v1318 = vsel %vm1316, %v1301, %v1317
      %1319 = vst [vmem:[#allocation4] sm:$0xff] %v1318
      %1320 = vst [vmem:[#allocation4 + $0x30] sm:$0xff] %v1310
      %vm1321 = vcmask 1044484
      %vm1322 = vsmask.f32 4352
      %vm1323 = vmand %vm1321, %vm1322
      %vm1324 = vmor %vm1323, %vm768
      %v1325 = vld [vmem:[#allocation4] sm:$0x11]
      %v1326 = vsel %vm1324, 0, %v1325
      %1327 = vst [vmem:[#allocation4] sm:$0x11] %v1326
      %1328 = vst [vmem:[#allocation4 + $0x8] sm:$0xff] %v1279
      %1329 = vst [vmem:[#allocation4 + $0x38] sm:$0xff] %v1280
      %1330 = vst [vmem:[#allocation4 + $0x10] sm:$0xff] %v1281
      %1331 = vst [vmem:[#allocation4 + $0x40] sm:$0xff] %v1282
      %v1333 = vshrl.u32 %v1293, 16
      %v1335 = vrot.slane %v1333, 7
      %v1336 = vshll.u32 %v1293, 16
      %v1338 = vor.u32 %v1335, %v1336
      %v1339 = vrot.slane %v1335, 4
      %v1341 = vshrl.u32 %v1294, 16
      %v1343 = vrot.slane %v1341, 7
      %v1344 = vshll.u32 %v1294, 16
      %v1346 = vor.u32 %v1343, %v1344
      %v1347 = vsel %vm449, %v1339, %v1346
      %v1350 = vld [vmem:[#allocation4 + $0x18] sm:$0xff]
      %v1351 = vsel %vm1316, %v1338, %v1350
      %1352 = vst [vmem:[#allocation4 + $0x18] sm:$0xff] %v1351
      %1353 = vst [vmem:[#allocation4 + $0x48] sm:$0xff] %v1347
      %v1354 = vld [vmem:[#allocation4 + $0x18] sm:$0x11]
      %v1355 = vsel %vm1324, 0, %v1354
      %1356 = vst [vmem:[#allocation4 + $0x18] sm:$0x11] %v1355
      %1357 = vst [vmem:[#allocation4 + $0x20] sm:$0xff] %v1287
      %1358 = vst [vmem:[#allocation4 + $0x50] sm:$0xff] %v1288
      %1359 = vst [vmem:[#allocation4 + $0x28] sm:$0xff] %v1293
      %1360 = vst [vmem:[#allocation4 + $0x58] sm:$0xff] %v1294
      %1361 = vst [vmem:[#allocation4 + $0x60] sm:$0xff] %v1279
      %1362 = vst [vmem:[#allocation4 + $0x90] sm:$0xff] %v1280
      %1363 = vst [vmem:[#allocation4 + $0x68] sm:$0xff] %v1281
      %1364 = vst [vmem:[#allocation4 + $0x98] sm:$0xff] %v1282
      %v1366 = vshrl.u32 %v1279, 16
      %v1368 = vrot.slane %v1366, 4
      %v1369 = vshll.u32 %v1279, 16
      %v1371 = vrot.slane %v1369, 5
      %v1372 = vor.u32 %v1368, %v1371
      %v1373 = vrot.slane %v1372, 4
      %v1375 = vshll.u32 %v1280, 16
      %v1377 = vrot.slane %v1375, 5
      %v1378 = vsel %vm483, %v1373, %v1377
      %v1379 = vshrl.u32 %v1280, 16
      %v1381 = vrot.slane %v1379, 4
      %v1382 = vor.u32 %v1381, %v1377
      %v1383 = vrot.slane %v1382, 4
      %1386 = vst [vmem:[#allocation4 + $0x70] sm:$0xff] %v1378
      %vm1387 = vsmask.f32 7424
      %vm1388 = vmand %vm1313, %vm1387
      %vm1389 = vmor %vm1388, %vm798
      %v1390 = vld [vmem:[#allocation4 + $0xa0] sm:$0xff]
      %v1391 = vsel %vm1389, %v1383, %v1390
      %1392 = vst [vmem:[#allocation4 + $0xa0] sm:$0xff] %v1391
      %vm1393 = vcmask 1047559
      %vm1394 = vsmask.f32 7966
      %vm1395 = vmand %vm1393, %vm1394
      %vm1396 = vmor %vm1395, %vm803
      %v1397 = vld [vmem:[#allocation4 + $0xa0] sm:$0x88]
      %v1398 = vsel %vm1396, 0, %v1397
      %1399 = vst [vmem:[#allocation4 + $0xa0] sm:$0x88] %v1398
      %1400 = vst [vmem:[#allocation4 + $0x78] sm:$0xff] %v1287
      %1401 = vst [vmem:[#allocation4 + $0xa8] sm:$0xff] %v1288
      %1402 = vst [vmem:[#allocation4 + $0x80] sm:$0xff] %v1293
      %1403 = vst [vmem:[#allocation4 + $0xb0] sm:$0xff] %v1294
      %v1405 = vshrl.u32 %v1287, 16
      %v1407 = vrot.slane %v1405, 4
      %v1408 = vshll.u32 %v1287, 16
      %v1410 = vrot.slane %v1408, 5
      %v1411 = vor.u32 %v1407, %v1410
      %v1412 = vrot.slane %v1411, 4
      %v1414 = vshll.u32 %v1288, 16
      %v1416 = vrot.slane %v1414, 5
      %v1417 = vsel %vm483, %v1412, %v1416
      %v1418 = vshrl.u32 %v1288, 16
      %v1420 = vrot.slane %v1418, 4
      %v1421 = vor.u32 %v1420, %v1416
      %v1422 = vrot.slane %v1421, 4
      %1425 = vst [vmem:[#allocation4 + $0x88] sm:$0xff] %v1417
      %v1426 = vld [vmem:[#allocation4 + $0xb8] sm:$0xff]
      %v1427 = vsel %vm1389, %v1422, %v1426
      %1428 = vst [vmem:[#allocation4 + $0xb8] sm:$0xff] %v1427
      %v1429 = vld [vmem:[#allocation4 + $0xb8] sm:$0x88]
      %v1430 = vsel %vm1396, 0, %v1429
      %1431 = vst [vmem:[#allocation4 + $0xb8] sm:$0x88] %v1430
      %v1432 = vld [vmem:[#allocation4] sm:$0xff]
      %v1433 = vld [vmem:[#allocation4 + $0x8] sm:$0xff]
      %v1434 = vld [vmem:[#allocation4 + $0x10] sm:$0xff]
      %v1435 = vld [vmem:[#allocation4 + $0x18] sm:$0xff]
      %v1436 = vld [vmem:[#allocation4 + $0x20] sm:$0xff]
      %v1437 = vld [vmem:[#allocation4 + $0x28] sm:$0xff]
      %v1438 = vld [vmem:[#allocation4 + $0x30] sm:$0xff]
      %v1439 = vld [vmem:[#allocation4 + $0x38] sm:$0xff]
      %v1440 = vld [vmem:[#allocation4 + $0x40] sm:$0xff]
      %v1441 = vld [vmem:[#allocation4 + $0x48] sm:$0xff]
      %v1442 = vld [vmem:[#allocation4 + $0x50] sm:$0xff]
      %v1443 = vld [vmem:[#allocation4 + $0x58] sm:$0xff]
      %v1444 = vld [vmem:[#allocation4 + $0x60] sm:$0xff]
      %v1445 = vld [vmem:[#allocation4 + $0x68] sm:$0xff]
      %v1446 = vld [vmem:[#allocation4 + $0x70] sm:$0xff]
      %v1447 = vld [vmem:[#allocation4 + $0x78] sm:$0xff]
      %v1448 = vld [vmem:[#allocation4 + $0x80] sm:$0xff]
      %v1449 = vld [vmem:[#allocation4 + $0x88] sm:$0xff]
      %v1450 = vld [vmem:[#allocation4 + $0x90] sm:$0xff]
      %v1451 = vld [vmem:[#allocation4 + $0x98] sm:$0xff]
      %v1452 = vld [vmem:[#allocation4 + $0xa0] sm:$0xff]
      %v1453 = vld [vmem:[#allocation4 + $0xa8] sm:$0xff]
      %v1454 = vld [vmem:[#allocation4 + $0xb0] sm:$0xff]
      %v1455 = vld [vmem:[#allocation4 + $0xb8] sm:$0xff]
      %v1456 = vld [vmem:[%s5] sm:$0xff]
      %v1457 = vld [vmem:[%s5 + $0x8] sm:$0xff]
      %v1458 = vld [vmem:[%s5 + $0x10] sm:$0xff]
      %v1459 = vld [vmem:[%s5 + $0x18] sm:$0xff]
      %v1460 = vld [vmem:[%s5 + $0x20] sm:$0xff]
      %v1461 = vld [vmem:[%s5 + $0x28] sm:$0xff]
      %v1462 = vld [vmem:[%s5 + $0x30] sm:$0xff]
      %v1463 = vld [vmem:[%s5 + $0x38] sm:$0xff]
      %v1464 = vld [vmem:[%s5 + $0x40] sm:$0xff]
      %v1465 = vld [vmem:[%s5 + $0x48] sm:$0xff]
      %v1466 = vld [vmem:[%s5 + $0x50] sm:$0xff]
      %v1467 = vld [vmem:[%s5 + $0x58] sm:$0xff]
      %v1468 = vld [vmem:[%s5 + $0x60] sm:$0xff]
      %v1469 = vld [vmem:[%s5 + $0x68] sm:$0xff]
      %v1470 = vld [vmem:[%s5 + $0x70] sm:$0xff]
      %v1471 = vld [vmem:[%s5 + $0x78] sm:$0xff]
      %v1472 = vld [vmem:[%s5 + $0x80] sm:$0xff]
      %v1473 = vld [vmem:[%s5 + $0x88] sm:$0xff]
      %v1474 = vld [vmem:[%s5 + $0x90] sm:$0xff]
      %v1475 = vld [vmem:[%s5 + $0x98] sm:$0xff]
      %v1476 = vld [vmem:[%s5 + $0xa0] sm:$0xff]
      %v1477 = vld [vmem:[%s5 + $0xa8] sm:$0xff]
      %v1478 = vld [vmem:[%s5 + $0xb0] sm:$0xff]
      %v1479 = vld [vmem:[%s5 + $0xb8] sm:$0xff]
      %v1480 = vld [vmem:[%s5 + $0xc0] sm:$0xff]
      %v1481 = vld [vmem:[%s5 + $0xc8] sm:$0xff]
      %v1482 = vld [vmem:[%s5 + $0xd0] sm:$0xff]
      %v1483 = vld [vmem:[%s5 + $0xd8] sm:$0xff]
      %v1484 = vld [vmem:[%s5 + $0xe0] sm:$0xff]
      %v1485 = vld [vmem:[%s5 + $0xe8] sm:$0xff]
      %v1486 = vld [vmem:[%s5 + $0xf0] sm:$0xff]
      %v1487 = vld [vmem:[%s5 + $0xf8] sm:$0xff]
      %v1488 = vld [vmem:[%s5 + $0x100] sm:$0xff]
      %v1489 = vld [vmem:[%s5 + $0x108] sm:$0xff]
      %v1490 = vld [vmem:[%s5 + $0x110] sm:$0xff]
      %v1491 = vld [vmem:[%s5 + $0x118] sm:$0xff]
      %v1492 = vld [vmem:[%s5 + $0x120] sm:$0xff]
      %v1493 = vld [vmem:[%s5 + $0x128] sm:$0xff]
      %v1494 = vld [vmem:[%s5 + $0x130] sm:$0xff]
      %v1495 = vld [vmem:[%s5 + $0x138] sm:$0xff]
      %v1496 = vld [vmem:[%s5 + $0x140] sm:$0xff]
      %v1497 = vld [vmem:[%s5 + $0x148] sm:$0xff]
      %v1498 = vld [vmem:[%s5 + $0x150] sm:$0xff]
      %v1499 = vld [vmem:[%s5 + $0x158] sm:$0xff]
      %v1500 = vld [vmem:[%s5 + $0x160] sm:$0xff]
      %v1501 = vld [vmem:[%s5 + $0x168] sm:$0xff]
      %v1502 = vld [vmem:[%s5 + $0x170] sm:$0xff]
      %v1503 = vld [vmem:[%s5 + $0x178] sm:$0xff]
      %v1504 = vld [vmem:[%s5 + $0x180] sm:$0xff]
      %v1505 = vld [vmem:[%s5 + $0x188] sm:$0xff]
      %v1506 = vld [vmem:[%s5 + $0x190] sm:$0xff]
      %v1507 = vld [vmem:[%s5 + $0x198] sm:$0xff]
      %v1508 = vld [vmem:[%s5 + $0x1a0] sm:$0xff]
      %v1509 = vld [vmem:[%s5 + $0x1a8] sm:$0xff]
      %v1510 = vld [vmem:[%s5 + $0x1b0] sm:$0xff]
      %v1511 = vld [vmem:[%s5 + $0x1b8] sm:$0xff]
      %v1512 = vld [vmem:[%s5 + $0x1c0] sm:$0xff]
      %v1513 = vld [vmem:[%s5 + $0x1c8] sm:$0xff]
      %v1514 = vld [vmem:[%s5 + $0x1d0] sm:$0xff]
      %v1515 = vld [vmem:[%s5 + $0x1d8] sm:$0xff]
      %v1516 = vld [vmem:[%s5 + $0x1e0] sm:$0xff]
      %v1517 = vld [vmem:[%s5 + $0x1e8] sm:$0xff]
      %v1518 = vld [vmem:[%s5 + $0x1f0] sm:$0xff]
      %v1519 = vld [vmem:[%s5 + $0x1f8] sm:$0xff]
      %v1520 = vld [vmem:[%s5 + $0x200] sm:$0xff]
      %v1521 = vld [vmem:[%s5 + $0x208] sm:$0xff]
      %v1522 = vld [vmem:[%s5 + $0x210] sm:$0xff]
      %v1523 = vld [vmem:[%s5 + $0x218] sm:$0xff]
      %v1524 = vld [vmem:[%s5 + $0x220] sm:$0xff]
      %v1525 = vld [vmem:[%s5 + $0x228] sm:$0xff]
      %v1526 = vld [vmem:[%s5 + $0x230] sm:$0xff]
      %v1527 = vld [vmem:[%s5 + $0x238] sm:$0xff]
      %v1528 = vld [vmem:[%s5 + $0x240] sm:$0xff]
      %v1529 = vld [vmem:[%s5 + $0x248] sm:$0xff]
      %v1530 = vld [vmem:[%s5 + $0x250] sm:$0xff]
      %v1531 = vld [vmem:[%s5 + $0x258] sm:$0xff]
      %v1532 = vld [vmem:[%s5 + $0x260] sm:$0xff]
      %v1533 = vld [vmem:[%s5 + $0x268] sm:$0xff]
      %v1534 = vld [vmem:[%s5 + $0x270] sm:$0xff]
      %v1535 = vld [vmem:[%s5 + $0x278] sm:$0xff]
      %v1536 = vld [vmem:[%s5 + $0x280] sm:$0xff]
      %v1537 = vld [vmem:[%s5 + $0x288] sm:$0xff]
      %v1538 = vld [vmem:[%s5 + $0x290] sm:$0xff]
      %v1539 = vld [vmem:[%s5 + $0x298] sm:$0xff]
      %v1540 = vld [vmem:[%s5 + $0x2a0] sm:$0xff]
      %v1541 = vld [vmem:[%s5 + $0x2a8] sm:$0xff]
      %v1542 = vld [vmem:[%s5 + $0x2b0] sm:$0xff]
      %v1543 = vld [vmem:[%s5 + $0x2b8] sm:$0xff]
      %v1544 = vld [vmem:[%s5 + $0x2c0] sm:$0xff]
      %v1545 = vld [vmem:[%s5 + $0x2c8] sm:$0xff]
      %v1546 = vld [vmem:[%s5 + $0x2d0] sm:$0xff]
      %v1547 = vld [vmem:[%s5 + $0x2d8] sm:$0xff]
      %v1548 = vld [vmem:[%s5 + $0x2e0] sm:$0xff]
      %v1549 = vld [vmem:[%s5 + $0x2e8] sm:$0xff]
      %v1550 = vld [vmem:[%s5 + $0x2f0] sm:$0xff]
      %v1551 = vld [vmem:[%s5 + $0x2f8] sm:$0xff]
      %v1552 = vld [vmem:[%s5 + $0x300] sm:$0xff]
      %v1553 = vld [vmem:[%s5 + $0x308] sm:$0xff]
      %v1554 = vld [vmem:[%s5 + $0x310] sm:$0xff]
      %v1555 = vld [vmem:[%s5 + $0x318] sm:$0xff]
      %v1556 = vld [vmem:[%s5 + $0x320] sm:$0xff]
      %v1557 = vld [vmem:[%s5 + $0x328] sm:$0xff]
      %v1558 = vld [vmem:[%s5 + $0x330] sm:$0xff]
      %v1559 = vld [vmem:[%s5 + $0x338] sm:$0xff]
      %v1560 = vld [vmem:[%s5 + $0x340] sm:$0xff]
      %v1561 = vld [vmem:[%s5 + $0x348] sm:$0xff]
      %v1562 = vld [vmem:[%s5 + $0x350] sm:$0xff]
      %v1563 = vld [vmem:[%s5 + $0x358] sm:$0xff]
      %v1564 = vld [vmem:[%s5 + $0x360] sm:$0xff]
      %v1565 = vld [vmem:[%s5 + $0x368] sm:$0xff]
      %v1566 = vld [vmem:[%s5 + $0x370] sm:$0xff]
      %v1567 = vld [vmem:[%s5 + $0x378] sm:$0xff]
      %v1568 = vld [vmem:[%s5 + $0x380] sm:$0xff]
      %v1569 = vld [vmem:[%s5 + $0x388] sm:$0xff]
      %v1570 = vld [vmem:[%s5 + $0x390] sm:$0xff]
      %v1571 = vld [vmem:[%s5 + $0x398] sm:$0xff]
      %v1572 = vld [vmem:[%s5 + $0x3a0] sm:$0xff]
      %v1573 = vld [vmem:[%s5 + $0x3a8] sm:$0xff]
      %v1574 = vld [vmem:[%s5 + $0x3b0] sm:$0xff]
      %v1575 = vld [vmem:[%s5 + $0x3b8] sm:$0xff]
      %v1576 = vld [vmem:[%s5 + $0x3c0] sm:$0xff]
      %v1577 = vld [vmem:[%s5 + $0x3c8] sm:$0xff]
      %v1578 = vld [vmem:[%s5 + $0x3d0] sm:$0xff]
      %v1579 = vld [vmem:[%s5 + $0x3d8] sm:$0xff]
      %v1580 = vld [vmem:[%s5 + $0x3e0] sm:$0xff]
      %v1581 = vld [vmem:[%s5 + $0x3e8] sm:$0xff]
      %v1582 = vld [vmem:[%s5 + $0x3f0] sm:$0xff]
      %v1583 = vld [vmem:[%s5 + $0x3f8] sm:$0xff]
      %v1584 = vld [vmem:[%s5 + $0x400] sm:$0xff]
      %v1585 = vld [vmem:[%s5 + $0x408] sm:$0xff]
      %v1586 = vld [vmem:[%s5 + $0x410] sm:$0xff]
      %v1587 = vld [vmem:[%s5 + $0x418] sm:$0xff]
      %v1588 = vld [vmem:[%s5 + $0x420] sm:$0xff]
      %v1589 = vld [vmem:[%s5 + $0x428] sm:$0xff]
      %v1590 = vld [vmem:[%s5 + $0x430] sm:$0xff]
      %v1591 = vld [vmem:[%s5 + $0x438] sm:$0xff]
      %v1592 = vld [vmem:[%s5 + $0x440] sm:$0xff]
      %v1593 = vld [vmem:[%s5 + $0x448] sm:$0xff]
      %v1594 = vld [vmem:[%s5 + $0x450] sm:$0xff]
      %v1595 = vld [vmem:[%s5 + $0x458] sm:$0xff]
      %v1596 = vld [vmem:[%s5 + $0x460] sm:$0xff]
      %v1597 = vld [vmem:[%s5 + $0x468] sm:$0xff]
      %v1598 = vld [vmem:[%s5 + $0x470] sm:$0xff]
      %v1599 = vld [vmem:[%s5 + $0x478] sm:$0xff]
      %v1600 = vld [vmem:[%s5 + $0x480] sm:$0xff]
      %v1601 = vld [vmem:[%s5 + $0x488] sm:$0xff]
      %v1602 = vld [vmem:[%s5 + $0x490] sm:$0xff]
      %v1603 = vld [vmem:[%s5 + $0x498] sm:$0xff]
      %v1604 = vld [vmem:[%s5 + $0x4a0] sm:$0xff]
      %v1605 = vld [vmem:[%s5 + $0x4a8] sm:$0xff]
      %v1606 = vld [vmem:[%s5 + $0x4b0] sm:$0xff]
      %v1607 = vld [vmem:[%s5 + $0x4b8] sm:$0xff]
      %v1608 = vld [vmem:[%s5 + $0x4c0] sm:$0xff]
      %v1609 = vld [vmem:[%s5 + $0x4c8] sm:$0xff]
      %v1610 = vld [vmem:[%s5 + $0x4d0] sm:$0xff]
      %v1611 = vld [vmem:[%s5 + $0x4d8] sm:$0xff]
      %v1612 = vld [vmem:[%s5 + $0x4e0] sm:$0xff]
      %v1613 = vld [vmem:[%s5 + $0x4e8] sm:$0xff]
      %v1614 = vld [vmem:[%s5 + $0x4f0] sm:$0xff]
      %v1615 = vld [vmem:[%s5 + $0x4f8] sm:$0xff]
      %v1616 = vld [vmem:[%s5 + $0x500] sm:$0xff]
      %v1617 = vld [vmem:[%s5 + $0x508] sm:$0xff]
      %v1618 = vld [vmem:[%s5 + $0x510] sm:$0xff]
      %v1619 = vld [vmem:[%s5 + $0x518] sm:$0xff]
      %v1620 = vld [vmem:[%s5 + $0x520] sm:$0xff]
      %v1621 = vld [vmem:[%s5 + $0x528] sm:$0xff]
      %v1622 = vld [vmem:[%s5 + $0x530] sm:$0xff]
      %v1623 = vld [vmem:[%s5 + $0x538] sm:$0xff]
      %v1624 = vld [vmem:[%s5 + $0x540] sm:$0xff]
      %v1625 = vld [vmem:[%s5 + $0x548] sm:$0xff]
      %v1626 = vld [vmem:[%s5 + $0x550] sm:$0xff]
      %v1627 = vld [vmem:[%s5 + $0x558] sm:$0xff]
      %v1628 = vld [vmem:[%s5 + $0x560] sm:$0xff]
      %v1629 = vld [vmem:[%s5 + $0x568] sm:$0xff]
      %v1630 = vld [vmem:[%s5 + $0x570] sm:$0xff]
      %v1631 = vld [vmem:[%s5 + $0x578] sm:$0xff]
      %v1632 = vld [vmem:[%s5 + $0x580] sm:$0xff]
      %v1633 = vld [vmem:[%s5 + $0x588] sm:$0xff]
      %v1634 = vld [vmem:[%s5 + $0x590] sm:$0xff]
      %v1635 = vld [vmem:[%s5 + $0x598] sm:$0xff]
      %v1636 = vld [vmem:[%s5 + $0x5a0] sm:$0xff]
      %v1637 = vld [vmem:[%s5 + $0x5a8] sm:$0xff]
      %v1638 = vld [vmem:[%s5 + $0x5b0] sm:$0xff]
      %v1639 = vld [vmem:[%s5 + $0x5b8] sm:$0xff]
      %v1640 = vld [vmem:[%s5 + $0x5c0] sm:$0xff]
      %v1641 = vld [vmem:[%s5 + $0x5c8] sm:$0xff]
      %v1642 = vld [vmem:[%s5 + $0x5d0] sm:$0xff]
      %v1643 = vld [vmem:[%s5 + $0x5d8] sm:$0xff]
      %v1644 = vld [vmem:[%s5 + $0x5e0] sm:$0xff]
      %v1645 = vld [vmem:[%s5 + $0x5e8] sm:$0xff]
      %v1646 = vld [vmem:[%s5 + $0x5f0] sm:$0xff]
      %v1647 = vld [vmem:[%s5 + $0x5f8] sm:$0xff]
      %v1648 = vld [vmem:[%s8] sm:$0x3]
      %v1650 = vperm.slane %v1648, 0
      %v1651 = vperm.slane %v1648, 1
      %v1678 = vunpack.c.l.b16 %v1432
      %v1679 = vunpack.c.h.b16 %v1432
      %v1680 = vunpack.c.l.b16 %v1433
      %v1681 = vunpack.c.h.b16 %v1433
      %v1682 = vunpack.c.l.b16 %v1434
      %v1683 = vunpack.c.h.b16 %v1434
      %v1684 = vunpack.c.l.b16 %v1435
      %v1685 = vunpack.c.h.b16 %v1435
      %v1686 = vunpack.c.l.b16 %v1436
      %v1687 = vunpack.c.h.b16 %v1436
      %v1688 = vunpack.c.l.b16 %v1437
      %v1689 = vunpack.c.h.b16 %v1437
      %v1690 = vunpack.c.l.b16 %v1438
      %v1691 = vunpack.c.h.b16 %v1438
      %v1692 = vunpack.c.l.b16 %v1439
      %v1693 = vunpack.c.h.b16 %v1439
      %v1694 = vunpack.c.l.b16 %v1440
      %v1695 = vunpack.c.h.b16 %v1440
      %v1696 = vunpack.c.l.b16 %v1441
      %v1697 = vunpack.c.h.b16 %v1441
      %v1698 = vunpack.c.l.b16 %v1442
      %v1699 = vunpack.c.h.b16 %v1442
      %v1700 = vunpack.c.l.b16 %v1443
      %v1701 = vunpack.c.h.b16 %v1443
      %v1702 = vunpack.c.l.b16 %v1444
      %v1703 = vunpack.c.h.b16 %v1444
      %v1704 = vunpack.c.l.b16 %v1445
      %v1705 = vunpack.c.h.b16 %v1445
      %v1706 = vunpack.c.l.b16 %v1446
      %v1707 = vunpack.c.h.b16 %v1446
      %v1708 = vunpack.c.l.b16 %v1447
      %v1709 = vunpack.c.h.b16 %v1447
      %v1710 = vunpack.c.l.b16 %v1448
      %v1711 = vunpack.c.h.b16 %v1448
      %v1712 = vunpack.c.l.b16 %v1449
      %v1713 = vunpack.c.h.b16 %v1449
      %v1714 = vunpack.c.l.b16 %v1450
      %v1715 = vunpack.c.h.b16 %v1450
      %v1716 = vunpack.c.l.b16 %v1451
      %v1717 = vunpack.c.h.b16 %v1451
      %v1718 = vunpack.c.l.b16 %v1452
      %v1719 = vunpack.c.h.b16 %v1452
      %v1720 = vunpack.c.l.b16 %v1453
      %v1721 = vunpack.c.h.b16 %v1453
      %v1722 = vunpack.c.l.b16 %v1454
      %v1723 = vunpack.c.h.b16 %v1454
      %v1724 = vunpack.c.l.b16 %v1455
      %v1725 = vunpack.c.h.b16 %v1455
      %v1726 = vpack.c.b16 %v1690, %v1678
      %v1727 = vpack.c.b16 %v1691, %v1679
      %v1728 = vpack.c.b16 %v1692, %v1680
      %v1729 = vpack.c.b16 %v1693, %v1681
      %v1730 = vpack.c.b16 %v1694, %v1682
      %v1731 = vpack.c.b16 %v1695, %v1683
      %v1732 = vpack.c.b16 %v1696, %v1684
      %v1733 = vpack.c.b16 %v1697, %v1685
      %v1734 = vpack.c.b16 %v1698, %v1686
      %v1735 = vpack.c.b16 %v1699, %v1687
      %v1736 = vpack.c.b16 %v1700, %v1688
      %v1737 = vpack.c.b16 %v1701, %v1689
      %v1738 = vpack.c.b16 %v1714, %v1702
      %v1739 = vpack.c.b16 %v1715, %v1703
      %v1740 = vpack.c.b16 %v1716, %v1704
      %v1741 = vpack.c.b16 %v1717, %v1705
      %v1742 = vpack.c.b16 %v1718, %v1706
      %v1743 = vpack.c.b16 %v1719, %v1707
      %v1744 = vpack.c.b16 %v1720, %v1708
      %v1745 = vpack.c.b16 %v1721, %v1709
      %v1746 = vpack.c.b16 %v1722, %v1710
      %v1747 = vpack.c.b16 %v1723, %v1711
      %v1748 = vpack.c.b16 %v1724, %v1712
      %v1749 = vpack.c.b16 %v1725, %v1713
      %v1966 = vunpack.c.l.b16 %v1456
      %v1967 = vunpack.c.h.b16 %v1456
      %v1968 = vunpack.c.l.b16 %v1457
      %v1969 = vunpack.c.h.b16 %v1457
      %v1970 = vunpack.c.l.b16 %v1458
      %v1971 = vunpack.c.h.b16 %v1458
      %v1972 = vunpack.c.l.b16 %v1459
      %v1973 = vunpack.c.h.b16 %v1459
      %v1974 = vunpack.c.l.b16 %v1460
      %v1975 = vunpack.c.h.b16 %v1460
      %v1976 = vunpack.c.l.b16 %v1461
      %v1977 = vunpack.c.h.b16 %v1461
      %v1978 = vunpack.c.l.b16 %v1462
      %v1979 = vunpack.c.h.b16 %v1462
      %v1980 = vunpack.c.l.b16 %v1463
      %v1981 = vunpack.c.h.b16 %v1463
      %v1982 = vunpack.c.l.b16 %v1464
      %v1983 = vunpack.c.h.b16 %v1464
      %v1984 = vunpack.c.l.b16 %v1465
      %v1985 = vunpack.c.h.b16 %v1465
      %v1986 = vunpack.c.l.b16 %v1466
      %v1987 = vunpack.c.h.b16 %v1466
      %v1988 = vunpack.c.l.b16 %v1467
      %v1989 = vunpack.c.h.b16 %v1467
      %v1990 = vunpack.c.l.b16 %v1468
      %v1991 = vunpack.c.h.b16 %v1468
      %v1992 = vunpack.c.l.b16 %v1469
      %v1993 = vunpack.c.h.b16 %v1469
      %v1994 = vunpack.c.l.b16 %v1470
      %v1995 = vunpack.c.h.b16 %v1470
      %v1996 = vunpack.c.l.b16 %v1471
      %v1997 = vunpack.c.h.b16 %v1471
      %v1998 = vunpack.c.l.b16 %v1472
      %v1999 = vunpack.c.h.b16 %v1472
      %v2000 = vunpack.c.l.b16 %v1473
      %v2001 = vunpack.c.h.b16 %v1473
      %v2002 = vunpack.c.l.b16 %v1474
      %v2003 = vunpack.c.h.b16 %v1474
      %v2004 = vunpack.c.l.b16 %v1475
      %v2005 = vunpack.c.h.b16 %v1475
      %v2006 = vunpack.c.l.b16 %v1476
      %v2007 = vunpack.c.h.b16 %v1476
      %v2008 = vunpack.c.l.b16 %v1477
      %v2009 = vunpack.c.h.b16 %v1477
      %v2010 = vunpack.c.l.b16 %v1478
      %v2011 = vunpack.c.h.b16 %v1478
      %v2012 = vunpack.c.l.b16 %v1479
      %v2013 = vunpack.c.h.b16 %v1479
      %v2014 = vunpack.c.l.b16 %v1480
      %v2015 = vunpack.c.h.b16 %v1480
      %v2016 = vunpack.c.l.b16 %v1481
      %v2017 = vunpack.c.h.b16 %v1481
      %v2018 = vunpack.c.l.b16 %v1482
      %v2019 = vunpack.c.h.b16 %v1482
      %v2020 = vunpack.c.l.b16 %v1483
      %v2021 = vunpack.c.h.b16 %v1483
      %v2022 = vunpack.c.l.b16 %v1484
      %v2023 = vunpack.c.h.b16 %v1484
      %v2024 = vunpack.c.l.b16 %v1485
      %v2025 = vunpack.c.h.b16 %v1485
      %v2026 = vunpack.c.l.b16 %v1486
      %v2027 = vunpack.c.h.b16 %v1486
      %v2028 = vunpack.c.l.b16 %v1487
      %v2029 = vunpack.c.h.b16 %v1487
      %v2030 = vunpack.c.l.b16 %v1488
      %v2031 = vunpack.c.h.b16 %v1488
      %v2032 = vunpack.c.l.b16 %v1489
      %v2033 = vunpack.c.h.b16 %v1489
      %v2034 = vunpack.c.l.b16 %v1490
      %v2035 = vunpack.c.h.b16 %v1490
      %v2036 = vunpack.c.l.b16 %v1491
      %v2037 = vunpack.c.h.b16 %v1491
      %v2038 = vunpack.c.l.b16 %v1492
      %v2039 = vunpack.c.h.b16 %v1492
      %v2040 = vunpack.c.l.b16 %v1493
      %v2041 = vunpack.c.h.b16 %v1493
      %v2042 = vunpack.c.l.b16 %v1494
      %v2043 = vunpack.c.h.b16 %v1494
      %v2044 = vunpack.c.l.b16 %v1495
      %v2045 = vunpack.c.h.b16 %v1495
      %v2046 = vunpack.c.l.b16 %v1496
      %v2047 = vunpack.c.h.b16 %v1496
      %v2048 = vunpack.c.l.b16 %v1497
      %v2049 = vunpack.c.h.b16 %v1497
      %v2050 = vunpack.c.l.b16 %v1498
      %v2051 = vunpack.c.h.b16 %v1498
      %v2052 = vunpack.c.l.b16 %v1499
      %v2053 = vunpack.c.h.b16 %v1499
      %v2054 = vunpack.c.l.b16 %v1500
      %v2055 = vunpack.c.h.b16 %v1500
      %v2056 = vunpack.c.l.b16 %v1501
      %v2057 = vunpack.c.h.b16 %v1501
      %v2058 = vunpack.c.l.b16 %v1502
      %v2059 = vunpack.c.h.b16 %v1502
      %v2060 = vunpack.c.l.b16 %v1503
      %v2061 = vunpack.c.h.b16 %v1503
      %v2062 = vunpack.c.l.b16 %v1504
      %v2063 = vunpack.c.h.b16 %v1504
      %v2064 = vunpack.c.l.b16 %v1505
      %v2065 = vunpack.c.h.b16 %v1505
      %v2066 = vunpack.c.l.b16 %v1506
      %v2067 = vunpack.c.h.b16 %v1506
      %v2068 = vunpack.c.l.b16 %v1507
      %v2069 = vunpack.c.h.b16 %v1507
      %v2070 = vunpack.c.l.b16 %v1508
      %v2071 = vunpack.c.h.b16 %v1508
      %v2072 = vunpack.c.l.b16 %v1509
      %v2073 = vunpack.c.h.b16 %v1509
      %v2074 = vunpack.c.l.b16 %v1510
      %v2075 = vunpack.c.h.b16 %v1510
      %v2076 = vunpack.c.l.b16 %v1511
      %v2077 = vunpack.c.h.b16 %v1511
      %v2078 = vunpack.c.l.b16 %v1512
      %v2079 = vunpack.c.h.b16 %v1512
      %v2080 = vunpack.c.l.b16 %v1513
      %v2081 = vunpack.c.h.b16 %v1513
      %v2082 = vunpack.c.l.b16 %v1514
      %v2083 = vunpack.c.h.b16 %v1514
      %v2084 = vunpack.c.l.b16 %v1515
      %v2085 = vunpack.c.h.b16 %v1515
      %v2086 = vunpack.c.l.b16 %v1516
      %v2087 = vunpack.c.h.b16 %v1516
      %v2088 = vunpack.c.l.b16 %v1517
      %v2089 = vunpack.c.h.b16 %v1517
      %v2090 = vunpack.c.l.b16 %v1518
      %v2091 = vunpack.c.h.b16 %v1518
      %v2092 = vunpack.c.l.b16 %v1519
      %v2093 = vunpack.c.h.b16 %v1519
      %v2094 = vunpack.c.l.b16 %v1520
      %v2095 = vunpack.c.h.b16 %v1520
      %v2096 = vunpack.c.l.b16 %v1521
      %v2097 = vunpack.c.h.b16 %v1521
      %v2098 = vunpack.c.l.b16 %v1522
      %v2099 = vunpack.c.h.b16 %v1522
      %v2100 = vunpack.c.l.b16 %v1523
      %v2101 = vunpack.c.h.b16 %v1523
      %v2102 = vunpack.c.l.b16 %v1524
      %v2103 = vunpack.c.h.b16 %v1524
      %v2104 = vunpack.c.l.b16 %v1525
      %v2105 = vunpack.c.h.b16 %v1525
      %v2106 = vunpack.c.l.b16 %v1526
      %v2107 = vunpack.c.h.b16 %v1526
      %v2108 = vunpack.c.l.b16 %v1527
      %v2109 = vunpack.c.h.b16 %v1527
      %v2110 = vunpack.c.l.b16 %v1528
      %v2111 = vunpack.c.h.b16 %v1528
      %v2112 = vunpack.c.l.b16 %v1529
      %v2113 = vunpack.c.h.b16 %v1529
      %v2114 = vunpack.c.l.b16 %v1530
      %v2115 = vunpack.c.h.b16 %v1530
      %v2116 = vunpack.c.l.b16 %v1531
      %v2117 = vunpack.c.h.b16 %v1531
      %v2118 = vunpack.c.l.b16 %v1532
      %v2119 = vunpack.c.h.b16 %v1532
      %v2120 = vunpack.c.l.b16 %v1533
      %v2121 = vunpack.c.h.b16 %v1533
      %v2122 = vunpack.c.l.b16 %v1534
      %v2123 = vunpack.c.h.b16 %v1534
      %v2124 = vunpack.c.l.b16 %v1535
      %v2125 = vunpack.c.h.b16 %v1535
      %v2126 = vunpack.c.l.b16 %v1536
      %v2127 = vunpack.c.h.b16 %v1536
      %v2128 = vunpack.c.l.b16 %v1537
      %v2129 = vunpack.c.h.b16 %v1537
      %v2130 = vunpack.c.l.b16 %v1538
      %v2131 = vunpack.c.h.b16 %v1538
      %v2132 = vunpack.c.l.b16 %v1539
      %v2133 = vunpack.c.h.b16 %v1539
      %v2134 = vunpack.c.l.b16 %v1540
      %v2135 = vunpack.c.h.b16 %v1540
      %v2136 = vunpack.c.l.b16 %v1541
      %v2137 = vunpack.c.h.b16 %v1541
      %v2138 = vunpack.c.l.b16 %v1542
      %v2139 = vunpack.c.h.b16 %v1542
      %v2140 = vunpack.c.l.b16 %v1543
      %v2141 = vunpack.c.h.b16 %v1543
      %v2142 = vunpack.c.l.b16 %v1544
      %v2143 = vunpack.c.h.b16 %v1544
      %v2144 = vunpack.c.l.b16 %v1545
      %v2145 = vunpack.c.h.b16 %v1545
      %v2146 = vunpack.c.l.b16 %v1546
      %v2147 = vunpack.c.h.b16 %v1546
      %v2148 = vunpack.c.l.b16 %v1547
      %v2149 = vunpack.c.h.b16 %v1547
      %v2150 = vunpack.c.l.b16 %v1548
      %v2151 = vunpack.c.h.b16 %v1548
      %v2152 = vunpack.c.l.b16 %v1549
      %v2153 = vunpack.c.h.b16 %v1549
      %v2154 = vunpack.c.l.b16 %v1550
      %v2155 = vunpack.c.h.b16 %v1550
      %v2156 = vunpack.c.l.b16 %v1551
      %v2157 = vunpack.c.h.b16 %v1551
      %v2158 = vunpack.c.l.b16 %v1552
      %v2159 = vunpack.c.h.b16 %v1552
      %v2160 = vunpack.c.l.b16 %v1553
      %v2161 = vunpack.c.h.b16 %v1553
      %v2162 = vunpack.c.l.b16 %v1554
      %v2163 = vunpack.c.h.b16 %v1554
      %v2164 = vunpack.c.l.b16 %v1555
      %v2165 = vunpack.c.h.b16 %v1555
      %v2166 = vunpack.c.l.b16 %v1556
      %v2167 = vunpack.c.h.b16 %v1556
      %v2168 = vunpack.c.l.b16 %v1557
      %v2169 = vunpack.c.h.b16 %v1557
      %v2170 = vunpack.c.l.b16 %v1558
      %v2171 = vunpack.c.h.b16 %v1558
      %v2172 = vunpack.c.l.b16 %v1559
      %v2173 = vunpack.c.h.b16 %v1559
      %v2174 = vunpack.c.l.b16 %v1560
      %v2175 = vunpack.c.h.b16 %v1560
      %v2176 = vunpack.c.l.b16 %v1561
      %v2177 = vunpack.c.h.b16 %v1561
      %v2178 = vunpack.c.l.b16 %v1562
      %v2179 = vunpack.c.h.b16 %v1562
      %v2180 = vunpack.c.l.b16 %v1563
      %v2181 = vunpack.c.h.b16 %v1563
      %v2182 = vunpack.c.l.b16 %v1564
      %v2183 = vunpack.c.h.b16 %v1564
      %v2184 = vunpack.c.l.b16 %v1565
      %v2185 = vunpack.c.h.b16 %v1565
      %v2186 = vunpack.c.l.b16 %v1566
      %v2187 = vunpack.c.h.b16 %v1566
      %v2188 = vunpack.c.l.b16 %v1567
      %v2189 = vunpack.c.h.b16 %v1567
      %v2190 = vunpack.c.l.b16 %v1568
      %v2191 = vunpack.c.h.b16 %v1568
      %v2192 = vunpack.c.l.b16 %v1569
      %v2193 = vunpack.c.h.b16 %v1569
      %v2194 = vunpack.c.l.b16 %v1570
      %v2195 = vunpack.c.h.b16 %v1570
      %v2196 = vunpack.c.l.b16 %v1571
      %v2197 = vunpack.c.h.b16 %v1571
      %v2198 = vunpack.c.l.b16 %v1572
      %v2199 = vunpack.c.h.b16 %v1572
      %v2200 = vunpack.c.l.b16 %v1573
      %v2201 = vunpack.c.h.b16 %v1573
      %v2202 = vunpack.c.l.b16 %v1574
      %v2203 = vunpack.c.h.b16 %v1574
      %v2204 = vunpack.c.l.b16 %v1575
      %v2205 = vunpack.c.h.b16 %v1575
      %v2206 = vunpack.c.l.b16 %v1576
      %v2207 = vunpack.c.h.b16 %v1576
      %v2208 = vunpack.c.l.b16 %v1577
      %v2209 = vunpack.c.h.b16 %v1577
      %v2210 = vunpack.c.l.b16 %v1578
      %v2211 = vunpack.c.h.b16 %v1578
      %v2212 = vunpack.c.l.b16 %v1579
      %v2213 = vunpack.c.h.b16 %v1579
      %v2214 = vunpack.c.l.b16 %v1580
      %v2215 = vunpack.c.h.b16 %v1580
      %v2216 = vunpack.c.l.b16 %v1581
      %v2217 = vunpack.c.h.b16 %v1581
      %v2218 = vunpack.c.l.b16 %v1582
      %v2219 = vunpack.c.h.b16 %v1582
      %v2220 = vunpack.c.l.b16 %v1583
      %v2221 = vunpack.c.h.b16 %v1583
      %v2222 = vunpack.c.l.b16 %v1584
      %v2223 = vunpack.c.h.b16 %v1584
      %v2224 = vunpack.c.l.b16 %v1585
      %v2225 = vunpack.c.h.b16 %v1585
      %v2226 = vunpack.c.l.b16 %v1586
      %v2227 = vunpack.c.h.b16 %v1586
      %v2228 = vunpack.c.l.b16 %v1587
      %v2229 = vunpack.c.h.b16 %v1587
      %v2230 = vunpack.c.l.b16 %v1588
      %v2231 = vunpack.c.h.b16 %v1588
      %v2232 = vunpack.c.l.b16 %v1589
      %v2233 = vunpack.c.h.b16 %v1589
      %v2234 = vunpack.c.l.b16 %v1590
      %v2235 = vunpack.c.h.b16 %v1590
      %v2236 = vunpack.c.l.b16 %v1591
      %v2237 = vunpack.c.h.b16 %v1591
      %v2238 = vunpack.c.l.b16 %v1592
      %v2239 = vunpack.c.h.b16 %v1592
      %v2240 = vunpack.c.l.b16 %v1593
      %v2241 = vunpack.c.h.b16 %v1593
      %v2242 = vunpack.c.l.b16 %v1594
      %v2243 = vunpack.c.h.b16 %v1594
      %v2244 = vunpack.c.l.b16 %v1595
      %v2245 = vunpack.c.h.b16 %v1595
      %v2246 = vunpack.c.l.b16 %v1596
      %v2247 = vunpack.c.h.b16 %v1596
      %v2248 = vunpack.c.l.b16 %v1597
      %v2249 = vunpack.c.h.b16 %v1597
      %v2250 = vunpack.c.l.b16 %v1598
      %v2251 = vunpack.c.h.b16 %v1598
      %v2252 = vunpack.c.l.b16 %v1599
      %v2253 = vunpack.c.h.b16 %v1599
      %v2254 = vunpack.c.l.b16 %v1600
      %v2255 = vunpack.c.h.b16 %v1600
      %v2256 = vunpack.c.l.b16 %v1601
      %v2257 = vunpack.c.h.b16 %v1601
      %v2258 = vunpack.c.l.b16 %v1602
      %v2259 = vunpack.c.h.b16 %v1602
      %v2260 = vunpack.c.l.b16 %v1603
      %v2261 = vunpack.c.h.b16 %v1603
      %v2262 = vunpack.c.l.b16 %v1604
      %v2263 = vunpack.c.h.b16 %v1604
      %v2264 = vunpack.c.l.b16 %v1605
      %v2265 = vunpack.c.h.b16 %v1605
      %v2266 = vunpack.c.l.b16 %v1606
      %v2267 = vunpack.c.h.b16 %v1606
      %v2268 = vunpack.c.l.b16 %v1607
      %v2269 = vunpack.c.h.b16 %v1607
      %v2270 = vunpack.c.l.b16 %v1608
      %v2271 = vunpack.c.h.b16 %v1608
      %v2272 = vunpack.c.l.b16 %v1609
      %v2273 = vunpack.c.h.b16 %v1609
      %v2274 = vunpack.c.l.b16 %v1610
      %v2275 = vunpack.c.h.b16 %v1610
      %v2276 = vunpack.c.l.b16 %v1611
      %v2277 = vunpack.c.h.b16 %v1611
      %v2278 = vunpack.c.l.b16 %v1612
      %v2279 = vunpack.c.h.b16 %v1612
      %v2280 = vunpack.c.l.b16 %v1613
      %v2281 = vunpack.c.h.b16 %v1613
      %v2282 = vunpack.c.l.b16 %v1614
      %v2283 = vunpack.c.h.b16 %v1614
      %v2284 = vunpack.c.l.b16 %v1615
      %v2285 = vunpack.c.h.b16 %v1615
      %v2286 = vunpack.c.l.b16 %v1616
      %v2287 = vunpack.c.h.b16 %v1616
      %v2288 = vunpack.c.l.b16 %v1617
      %v2289 = vunpack.c.h.b16 %v1617
      %v2290 = vunpack.c.l.b16 %v1618
      %v2291 = vunpack.c.h.b16 %v1618
      %v2292 = vunpack.c.l.b16 %v1619
      %v2293 = vunpack.c.h.b16 %v1619
      %v2294 = vunpack.c.l.b16 %v1620
      %v2295 = vunpack.c.h.b16 %v1620
      %v2296 = vunpack.c.l.b16 %v1621
      %v2297 = vunpack.c.h.b16 %v1621
      %v2298 = vunpack.c.l.b16 %v1622
      %v2299 = vunpack.c.h.b16 %v1622
      %v2300 = vunpack.c.l.b16 %v1623
      %v2301 = vunpack.c.h.b16 %v1623
      %v2302 = vunpack.c.l.b16 %v1624
      %v2303 = vunpack.c.h.b16 %v1624
      %v2304 = vunpack.c.l.b16 %v1625
      %v2305 = vunpack.c.h.b16 %v1625
      %v2306 = vunpack.c.l.b16 %v1626
      %v2307 = vunpack.c.h.b16 %v1626
      %v2308 = vunpack.c.l.b16 %v1627
      %v2309 = vunpack.c.h.b16 %v1627
      %v2310 = vunpack.c.l.b16 %v1628
      %v2311 = vunpack.c.h.b16 %v1628
      %v2312 = vunpack.c.l.b16 %v1629
      %v2313 = vunpack.c.h.b16 %v1629
      %v2314 = vunpack.c.l.b16 %v1630
      %v2315 = vunpack.c.h.b16 %v1630
      %v2316 = vunpack.c.l.b16 %v1631
      %v2317 = vunpack.c.h.b16 %v1631
      %v2318 = vunpack.c.l.b16 %v1632
      %v2319 = vunpack.c.h.b16 %v1632
      %v2320 = vunpack.c.l.b16 %v1633
      %v2321 = vunpack.c.h.b16 %v1633
      %v2322 = vunpack.c.l.b16 %v1634
      %v2323 = vunpack.c.h.b16 %v1634
      %v2324 = vunpack.c.l.b16 %v1635
      %v2325 = vunpack.c.h.b16 %v1635
      %v2326 = vunpack.c.l.b16 %v1636
      %v2327 = vunpack.c.h.b16 %v1636
      %v2328 = vunpack.c.l.b16 %v1637
      %v2329 = vunpack.c.h.b16 %v1637
      %v2330 = vunpack.c.l.b16 %v1638
      %v2331 = vunpack.c.h.b16 %v1638
      %v2332 = vunpack.c.l.b16 %v1639
      %v2333 = vunpack.c.h.b16 %v1639
      %v2334 = vunpack.c.l.b16 %v1640
      %v2335 = vunpack.c.h.b16 %v1640
      %v2336 = vunpack.c.l.b16 %v1641
      %v2337 = vunpack.c.h.b16 %v1641
      %v2338 = vunpack.c.l.b16 %v1642
      %v2339 = vunpack.c.h.b16 %v1642
      %v2340 = vunpack.c.l.b16 %v1643
      %v2341 = vunpack.c.h.b16 %v1643
      %v2342 = vunpack.c.l.b16 %v1644
      %v2343 = vunpack.c.h.b16 %v1644
      %v2344 = vunpack.c.l.b16 %v1645
      %v2345 = vunpack.c.h.b16 %v1645
      %v2346 = vunpack.c.l.b16 %v1646
      %v2347 = vunpack.c.h.b16 %v1646
      %v2348 = vunpack.c.l.b16 %v1647
      %v2349 = vunpack.c.h.b16 %v1647
      %v2350 = vpack.c.b16 %v1968, %v1966
      %v2351 = vpack.c.b16 %v1969, %v1967
      %v2352 = vpack.c.b16 %v1972, %v1970
      %v2353 = vpack.c.b16 %v1973, %v1971
      %v2354 = vpack.c.b16 %v1976, %v1974
      %v2355 = vpack.c.b16 %v1977, %v1975
      %v2356 = vpack.c.b16 %v1980, %v1978
      %v2357 = vpack.c.b16 %v1981, %v1979
      %v2358 = vpack.c.b16 %v1984, %v1982
      %v2359 = vpack.c.b16 %v1985, %v1983
      %v2360 = vpack.c.b16 %v1988, %v1986
      %v2361 = vpack.c.b16 %v1989, %v1987
      %v2362 = vpack.c.b16 %v1992, %v1990
      %v2363 = vpack.c.b16 %v1993, %v1991
      %v2364 = vpack.c.b16 %v1996, %v1994
      %v2365 = vpack.c.b16 %v1997, %v1995
      %v2366 = vpack.c.b16 %v2000, %v1998
      %v2367 = vpack.c.b16 %v2001, %v1999
      %v2368 = vpack.c.b16 %v2004, %v2002
      %v2369 = vpack.c.b16 %v2005, %v2003
      %v2370 = vpack.c.b16 %v2008, %v2006
      %v2371 = vpack.c.b16 %v2009, %v2007
      %v2372 = vpack.c.b16 %v2012, %v2010
      %v2373 = vpack.c.b16 %v2013, %v2011
      %v2374 = vpack.c.b16 %v2016, %v2014
      %v2375 = vpack.c.b16 %v2017, %v2015
      %v2376 = vpack.c.b16 %v2020, %v2018
      %v2377 = vpack.c.b16 %v2021, %v2019
      %v2378 = vpack.c.b16 %v2024, %v2022
      %v2379 = vpack.c.b16 %v2025, %v2023
      %v2380 = vpack.c.b16 %v2028, %v2026
      %v2381 = vpack.c.b16 %v2029, %v2027
      %v2382 = vpack.c.b16 %v2032, %v2030
      %v2383 = vpack.c.b16 %v2033, %v2031
      %v2384 = vpack.c.b16 %v2036, %v2034
      %v2385 = vpack.c.b16 %v2037, %v2035
      %v2386 = vpack.c.b16 %v2040, %v2038
      %v2387 = vpack.c.b16 %v2041, %v2039
      %v2388 = vpack.c.b16 %v2044, %v2042
      %v2389 = vpack.c.b16 %v2045, %v2043
      %v2390 = vpack.c.b16 %v2048, %v2046
      %v2391 = vpack.c.b16 %v2049, %v2047
      %v2392 = vpack.c.b16 %v2052, %v2050
      %v2393 = vpack.c.b16 %v2053, %v2051
      %v2394 = vpack.c.b16 %v2056, %v2054
      %v2395 = vpack.c.b16 %v2057, %v2055
      %v2396 = vpack.c.b16 %v2060, %v2058
      %v2397 = vpack.c.b16 %v2061, %v2059
      %v2398 = vpack.c.b16 %v2064, %v2062
      %v2399 = vpack.c.b16 %v2065, %v2063
      %v2400 = vpack.c.b16 %v2068, %v2066
      %v2401 = vpack.c.b16 %v2069, %v2067
      %v2402 = vpack.c.b16 %v2072, %v2070
      %v2403 = vpack.c.b16 %v2073, %v2071
      %v2404 = vpack.c.b16 %v2076, %v2074
      %v2405 = vpack.c.b16 %v2077, %v2075
      %v2406 = vpack.c.b16 %v2080, %v2078
      %v2407 = vpack.c.b16 %v2081, %v2079
      %v2408 = vpack.c.b16 %v2084, %v2082
      %v2409 = vpack.c.b16 %v2085, %v2083
      %v2410 = vpack.c.b16 %v2088, %v2086
      %v2411 = vpack.c.b16 %v2089, %v2087
      %v2412 = vpack.c.b16 %v2092, %v2090
      %v2413 = vpack.c.b16 %v2093, %v2091
      %v2414 = vpack.c.b16 %v2096, %v2094
      %v2415 = vpack.c.b16 %v2097, %v2095
      %v2416 = vpack.c.b16 %v2100, %v2098
      %v2417 = vpack.c.b16 %v2101, %v2099
      %v2418 = vpack.c.b16 %v2104, %v2102
      %v2419 = vpack.c.b16 %v2105, %v2103
      %v2420 = vpack.c.b16 %v2108, %v2106
      %v2421 = vpack.c.b16 %v2109, %v2107
      %v2422 = vpack.c.b16 %v2112, %v2110
      %v2423 = vpack.c.b16 %v2113, %v2111
      %v2424 = vpack.c.b16 %v2116, %v2114
      %v2425 = vpack.c.b16 %v2117, %v2115
      %v2426 = vpack.c.b16 %v2120, %v2118
      %v2427 = vpack.c.b16 %v2121, %v2119
      %v2428 = vpack.c.b16 %v2124, %v2122
      %v2429 = vpack.c.b16 %v2125, %v2123
      %v2430 = vpack.c.b16 %v2128, %v2126
      %v2431 = vpack.c.b16 %v2129, %v2127
      %v2432 = vpack.c.b16 %v2132, %v2130
      %v2433 = vpack.c.b16 %v2133, %v2131
      %v2434 = vpack.c.b16 %v2136, %v2134
      %v2435 = vpack.c.b16 %v2137, %v2135
      %v2436 = vpack.c.b16 %v2140, %v2138
      %v2437 = vpack.c.b16 %v2141, %v2139
      %v2438 = vpack.c.b16 %v2144, %v2142
      %v2439 = vpack.c.b16 %v2145, %v2143
      %v2440 = vpack.c.b16 %v2148, %v2146
      %v2441 = vpack.c.b16 %v2149, %v2147
      %v2442 = vpack.c.b16 %v2152, %v2150
      %v2443 = vpack.c.b16 %v2153, %v2151
      %v2444 = vpack.c.b16 %v2156, %v2154
      %v2445 = vpack.c.b16 %v2157, %v2155
      %v2446 = vpack.c.b16 %v2160, %v2158
      %v2447 = vpack.c.b16 %v2161, %v2159
      %v2448 = vpack.c.b16 %v2164, %v2162
      %v2449 = vpack.c.b16 %v2165, %v2163
      %v2450 = vpack.c.b16 %v2168, %v2166
      %v2451 = vpack.c.b16 %v2169, %v2167
      %v2452 = vpack.c.b16 %v2172, %v2170
      %v2453 = vpack.c.b16 %v2173, %v2171
      %v2454 = vpack.c.b16 %v2176, %v2174
      %v2455 = vpack.c.b16 %v2177, %v2175
      %v2456 = vpack.c.b16 %v2180, %v2178
      %v2457 = vpack.c.b16 %v2181, %v2179
      %v2458 = vpack.c.b16 %v2184, %v2182
      %v2459 = vpack.c.b16 %v2185, %v2183
      %v2460 = vpack.c.b16 %v2188, %v2186
      %v2461 = vpack.c.b16 %v2189, %v2187
      %v2462 = vpack.c.b16 %v2192, %v2190
      %v2463 = vpack.c.b16 %v2193, %v2191
      %v2464 = vpack.c.b16 %v2196, %v2194
      %v2465 = vpack.c.b16 %v2197, %v2195
      %v2466 = vpack.c.b16 %v2200, %v2198
      %v2467 = vpack.c.b16 %v2201, %v2199
      %v2468 = vpack.c.b16 %v2204, %v2202
      %v2469 = vpack.c.b16 %v2205, %v2203
      %v2470 = vpack.c.b16 %v2208, %v2206
      %v2471 = vpack.c.b16 %v2209, %v2207
      %v2472 = vpack.c.b16 %v2212, %v2210
      %v2473 = vpack.c.b16 %v2213, %v2211
      %v2474 = vpack.c.b16 %v2216, %v2214
      %v2475 = vpack.c.b16 %v2217, %v2215
      %v2476 = vpack.c.b16 %v2220, %v2218
      %v2477 = vpack.c.b16 %v2221, %v2219
      %v2478 = vpack.c.b16 %v2224, %v2222
      %v2479 = vpack.c.b16 %v2225, %v2223
      %v2480 = vpack.c.b16 %v2228, %v2226
      %v2481 = vpack.c.b16 %v2229, %v2227
      %v2482 = vpack.c.b16 %v2232, %v2230
      %v2483 = vpack.c.b16 %v2233, %v2231
      %v2484 = vpack.c.b16 %v2236, %v2234
      %v2485 = vpack.c.b16 %v2237, %v2235
      %v2486 = vpack.c.b16 %v2240, %v2238
      %v2487 = vpack.c.b16 %v2241, %v2239
      %v2488 = vpack.c.b16 %v2244, %v2242
      %v2489 = vpack.c.b16 %v2245, %v2243
      %v2490 = vpack.c.b16 %v2248, %v2246
      %v2491 = vpack.c.b16 %v2249, %v2247
      %v2492 = vpack.c.b16 %v2252, %v2250
      %v2493 = vpack.c.b16 %v2253, %v2251
      %v2494 = vpack.c.b16 %v2256, %v2254
      %v2495 = vpack.c.b16 %v2257, %v2255
      %v2496 = vpack.c.b16 %v2260, %v2258
      %v2497 = vpack.c.b16 %v2261, %v2259
      %v2498 = vpack.c.b16 %v2264, %v2262
      %v2499 = vpack.c.b16 %v2265, %v2263
      %v2500 = vpack.c.b16 %v2268, %v2266
      %v2501 = vpack.c.b16 %v2269, %v2267
      %v2502 = vpack.c.b16 %v2272, %v2270
      %v2503 = vpack.c.b16 %v2273, %v2271
      %v2504 = vpack.c.b16 %v2276, %v2274
      %v2505 = vpack.c.b16 %v2277, %v2275
      %v2506 = vpack.c.b16 %v2280, %v2278
      %v2507 = vpack.c.b16 %v2281, %v2279
      %v2508 = vpack.c.b16 %v2284, %v2282
      %v2509 = vpack.c.b16 %v2285, %v2283
      %v2510 = vpack.c.b16 %v2288, %v2286
      %v2511 = vpack.c.b16 %v2289, %v2287
      %v2512 = vpack.c.b16 %v2292, %v2290
      %v2513 = vpack.c.b16 %v2293, %v2291
      %v2514 = vpack.c.b16 %v2296, %v2294
      %v2515 = vpack.c.b16 %v2297, %v2295
      %v2516 = vpack.c.b16 %v2300, %v2298
      %v2517 = vpack.c.b16 %v2301, %v2299
      %v2518 = vpack.c.b16 %v2304, %v2302
      %v2519 = vpack.c.b16 %v2305, %v2303
      %v2520 = vpack.c.b16 %v2308, %v2306
      %v2521 = vpack.c.b16 %v2309, %v2307
      %v2522 = vpack.c.b16 %v2312, %v2310
      %v2523 = vpack.c.b16 %v2313, %v2311
      %v2524 = vpack.c.b16 %v2316, %v2314
      %v2525 = vpack.c.b16 %v2317, %v2315
      %v2526 = vpack.c.b16 %v2320, %v2318
      %v2527 = vpack.c.b16 %v2321, %v2319
      %v2528 = vpack.c.b16 %v2324, %v2322
      %v2529 = vpack.c.b16 %v2325, %v2323
      %v2530 = vpack.c.b16 %v2328, %v2326
      %v2531 = vpack.c.b16 %v2329, %v2327
      %v2532 = vpack.c.b16 %v2332, %v2330
      %v2533 = vpack.c.b16 %v2333, %v2331
      %v2534 = vpack.c.b16 %v2336, %v2334
      %v2535 = vpack.c.b16 %v2337, %v2335
      %v2536 = vpack.c.b16 %v2340, %v2338
      %v2537 = vpack.c.b16 %v2341, %v2339
      %v2538 = vpack.c.b16 %v2344, %v2342
      %v2539 = vpack.c.b16 %v2345, %v2343
      %v2540 = vpack.c.b16 %v2348, %v2346
      %v2541 = vpack.c.b16 %v2349, %v2347
      %2734 = vmatpush.bf16.msra.mxu0 %v2364
      %2735 = vmatpush.bf16.msra.mxu0 %v2362
      %2736 = vmatpush.bf16.msra.mxu0 %v2360
      %2737 = vmatpush.bf16.msra.mxu0 %v2358
      %2738 = vmatpush.bf16.msra.mxu0 %v2356
      %2739 = vmatpush.bf16.msra.mxu0 %v2354
      %2740 = vmatpush.bf16.msra.mxu0 %v2352
      %2741 = vmatpush.bf16.msra.mxu0 %v2350
      %2742 = vmatmul.bf16.gmra.mxu0 %v1726
      %v2743 = vpop.f32.mrf.mxu0
      %v2744 = vadd.f32 %v1650, %v2743
      %v2745 = vpop.f32.mrf.mxu0
      %v2746 = vadd.f32 %v1650, %v2745
      %2747 = vmatmul.bf16.gmra.mxu0 %v1738
      %v2748 = vpop.f32.mrf.mxu0
      %v2749 = vadd.f32 %v1650, %v2748
      %v2750 = vpop.f32.mrf.mxu0
      %v2751 = vadd.f32 %v1650, %v2750
      %2752 = vdwg.mxu0
      %2753 = vmatpush.bf16.msra.mxu0 %v2380
      %2754 = vmatpush.bf16.msra.mxu0 %v2378
      %2755 = vmatpush.bf16.msra.mxu0 %v2376
      %2756 = vmatpush.bf16.msra.mxu0 %v2374
      %2757 = vmatpush.bf16.msra.mxu0 %v2372
      %2758 = vmatpush.bf16.msra.mxu0 %v2370
      %2759 = vmatpush.bf16.msra.mxu0 %v2368
      %2760 = vmatpush.bf16.msra.mxu0 %v2366
      %2761 = vmatmul.bf16.gmra.mxu0 %v1727
      %v2762 = vpop.f32.mrf.mxu0
      %v2763 = vadd.f32 %v2744, %v2762
      %v2764 = vpop.f32.mrf.mxu0
      %v2765 = vadd.f32 %v2746, %v2764
      %2766 = vmatmul.bf16.gmra.mxu0 %v1739
      %v2767 = vpop.f32.mrf.mxu0
      %v2768 = vadd.f32 %v2749, %v2767
      %v2769 = vpop.f32.mrf.mxu0
      %v2770 = vadd.f32 %v2751, %v2769
      %2771 = vdwg.mxu0
      %2772 = vmatpush.bf16.msra.mxu0 %v2396
      %2773 = vmatpush.bf16.msra.mxu0 %v2394
      %2774 = vmatpush.bf16.msra.mxu0 %v2392
      %2775 = vmatpush.bf16.msra.mxu0 %v2390
      %2776 = vmatpush.bf16.msra.mxu0 %v2388
      %2777 = vmatpush.bf16.msra.mxu0 %v2386
      %2778 = vmatpush.bf16.msra.mxu0 %v2384
      %2779 = vmatpush.bf16.msra.mxu0 %v2382
      %2780 = vmatmul.bf16.gmra.mxu0 %v1728
      %v2781 = vpop.f32.mrf.mxu0
      %v2782 = vadd.f32 %v2763, %v2781
      %v2783 = vpop.f32.mrf.mxu0
      %v2784 = vadd.f32 %v2765, %v2783
      %2785 = vmatmul.bf16.gmra.mxu0 %v1740
      %v2786 = vpop.f32.mrf.mxu0
      %v2787 = vadd.f32 %v2768, %v2786
      %v2788 = vpop.f32.mrf.mxu0
      %v2789 = vadd.f32 %v2770, %v2788
      %2790 = vdwg.mxu0
      %2791 = vmatpush.bf16.msra.mxu0 %v2412
      %2792 = vmatpush.bf16.msra.mxu0 %v2410
      %2793 = vmatpush.bf16.msra.mxu0 %v2408
      %2794 = vmatpush.bf16.msra.mxu0 %v2406
      %2795 = vmatpush.bf16.msra.mxu0 %v2404
      %2796 = vmatpush.bf16.msra.mxu0 %v2402
      %2797 = vmatpush.bf16.msra.mxu0 %v2400
      %2798 = vmatpush.bf16.msra.mxu0 %v2398
      %2799 = vmatmul.bf16.gmra.mxu0 %v1729
      %v2800 = vpop.f32.mrf.mxu0
      %v2801 = vadd.f32 %v2782, %v2800
      %v2802 = vpop.f32.mrf.mxu0
      %v2803 = vadd.f32 %v2784, %v2802
      %2804 = vmatmul.bf16.gmra.mxu0 %v1741
      %v2805 = vpop.f32.mrf.mxu0
      %v2806 = vadd.f32 %v2787, %v2805
      %v2807 = vpop.f32.mrf.mxu0
      %v2808 = vadd.f32 %v2789, %v2807
      %2809 = vdwg.mxu0
      %2810 = vmatpush.bf16.msra.mxu0 %v2428
      %2811 = vmatpush.bf16.msra.mxu0 %v2426
      %2812 = vmatpush.bf16.msra.mxu0 %v2424
      %2813 = vmatpush.bf16.msra.mxu0 %v2422
      %2814 = vmatpush.bf16.msra.mxu0 %v2420
      %2815 = vmatpush.bf16.msra.mxu0 %v2418
      %2816 = vmatpush.bf16.msra.mxu0 %v2416
      %2817 = vmatpush.bf16.msra.mxu0 %v2414
      %2818 = vmatmul.bf16.gmra.mxu0 %v1730
      %v2819 = vpop.f32.mrf.mxu0
      %v2820 = vadd.f32 %v2801, %v2819
      %v2821 = vpop.f32.mrf.mxu0
      %v2822 = vadd.f32 %v2803, %v2821
      %2823 = vmatmul.bf16.gmra.mxu0 %v1742
      %v2824 = vpop.f32.mrf.mxu0
      %v2825 = vadd.f32 %v2806, %v2824
      %v2826 = vpop.f32.mrf.mxu0
      %v2827 = vadd.f32 %v2808, %v2826
      %2828 = vdwg.mxu0
      %2829 = vmatpush.bf16.msra.mxu0 %v2444
      %2830 = vmatpush.bf16.msra.mxu0 %v2442
      %2831 = vmatpush.bf16.msra.mxu0 %v2440
      %2832 = vmatpush.bf16.msra.mxu0 %v2438
      %2833 = vmatpush.bf16.msra.mxu0 %v2436
      %2834 = vmatpush.bf16.msra.mxu0 %v2434
      %2835 = vmatpush.bf16.msra.mxu0 %v2432
      %2836 = vmatpush.bf16.msra.mxu0 %v2430
      %2837 = vmatmul.bf16.gmra.mxu0 %v1731
      %v2838 = vpop.f32.mrf.mxu0
      %v2839 = vadd.f32 %v2820, %v2838
      %v2840 = vpop.f32.mrf.mxu0
      %v2841 = vadd.f32 %v2822, %v2840
      %2842 = vmatmul.bf16.gmra.mxu0 %v1743
      %v2843 = vpop.f32.mrf.mxu0
      %v2844 = vadd.f32 %v2825, %v2843
      %v2845 = vpop.f32.mrf.mxu0
      %v2846 = vadd.f32 %v2827, %v2845
      %2847 = vdwg.mxu0
      %2848 = vmatpush.bf16.msra.mxu0 %v2460
      %2849 = vmatpush.bf16.msra.mxu0 %v2458
      %2850 = vmatpush.bf16.msra.mxu0 %v2456
      %2851 = vmatpush.bf16.msra.mxu0 %v2454
      %2852 = vmatpush.bf16.msra.mxu0 %v2452
      %2853 = vmatpush.bf16.msra.mxu0 %v2450
      %2854 = vmatpush.bf16.msra.mxu0 %v2448
      %2855 = vmatpush.bf16.msra.mxu0 %v2446
      %2856 = vmatmul.bf16.gmra.mxu0 %v1732
      %v2857 = vpop.f32.mrf.mxu0
      %v2858 = vadd.f32 %v2839, %v2857
      %v2859 = vpop.f32.mrf.mxu0
      %v2860 = vadd.f32 %v2841, %v2859
      %2861 = vmatmul.bf16.gmra.mxu0 %v1744
      %v2862 = vpop.f32.mrf.mxu0
      %v2863 = vadd.f32 %v2844, %v2862
      %v2864 = vpop.f32.mrf.mxu0
      %v2865 = vadd.f32 %v2846, %v2864
      %2866 = vdwg.mxu0
      %2867 = vmatpush.bf16.msra.mxu0 %v2476
      %2868 = vmatpush.bf16.msra.mxu0 %v2474
      %2869 = vmatpush.bf16.msra.mxu0 %v2472
      %2870 = vmatpush.bf16.msra.mxu0 %v2470
      %2871 = vmatpush.bf16.msra.mxu0 %v2468
      %2872 = vmatpush.bf16.msra.mxu0 %v2466
      %2873 = vmatpush.bf16.msra.mxu0 %v2464
      %2874 = vmatpush.bf16.msra.mxu0 %v2462
      %2875 = vmatmul.bf16.gmra.mxu0 %v1733
      %v2876 = vpop.f32.mrf.mxu0
      %v2877 = vadd.f32 %v2858, %v2876
      %v2878 = vpop.f32.mrf.mxu0
      %v2879 = vadd.f32 %v2860, %v2878
      %2880 = vmatmul.bf16.gmra.mxu0 %v1745
      %v2881 = vpop.f32.mrf.mxu0
      %v2882 = vadd.f32 %v2863, %v2881
      %v2883 = vpop.f32.mrf.mxu0
      %v2884 = vadd.f32 %v2865, %v2883
      %2885 = vdwg.mxu0
      %2886 = vmatpush.bf16.msra.mxu0 %v2492
      %2887 = vmatpush.bf16.msra.mxu0 %v2490
      %2888 = vmatpush.bf16.msra.mxu0 %v2488
      %2889 = vmatpush.bf16.msra.mxu0 %v2486
      %2890 = vmatpush.bf16.msra.mxu0 %v2484
      %2891 = vmatpush.bf16.msra.mxu0 %v2482
      %2892 = vmatpush.bf16.msra.mxu0 %v2480
      %2893 = vmatpush.bf16.msra.mxu0 %v2478
      %2894 = vmatmul.bf16.gmra.mxu0 %v1734
      %v2895 = vpop.f32.mrf.mxu0
      %v2896 = vadd.f32 %v2877, %v2895
      %v2897 = vpop.f32.mrf.mxu0
      %v2898 = vadd.f32 %v2879, %v2897
      %2899 = vmatmul.bf16.gmra.mxu0 %v1746
      %v2900 = vpop.f32.mrf.mxu0
      %v2901 = vadd.f32 %v2882, %v2900
      %v2902 = vpop.f32.mrf.mxu0
      %v2903 = vadd.f32 %v2884, %v2902
      %2904 = vdwg.mxu0
      %2905 = vmatpush.bf16.msra.mxu0 %v2508
      %2906 = vmatpush.bf16.msra.mxu0 %v2506
      %2907 = vmatpush.bf16.msra.mxu0 %v2504
      %2908 = vmatpush.bf16.msra.mxu0 %v2502
      %2909 = vmatpush.bf16.msra.mxu0 %v2500
      %2910 = vmatpush.bf16.msra.mxu0 %v2498
      %2911 = vmatpush.bf16.msra.mxu0 %v2496
      %2912 = vmatpush.bf16.msra.mxu0 %v2494
      %2913 = vmatmul.bf16.gmra.mxu0 %v1735
      %v2914 = vpop.f32.mrf.mxu0
      %v2915 = vadd.f32 %v2896, %v2914
      %v2916 = vpop.f32.mrf.mxu0
      %v2917 = vadd.f32 %v2898, %v2916
      %2918 = vmatmul.bf16.gmra.mxu0 %v1747
      %v2919 = vpop.f32.mrf.mxu0
      %v2920 = vadd.f32 %v2901, %v2919
      %v2921 = vpop.f32.mrf.mxu0
      %v2922 = vadd.f32 %v2903, %v2921
      %2923 = vdwg.mxu0
      %2924 = vmatpush.bf16.msra.mxu0 %v2524
      %2925 = vmatpush.bf16.msra.mxu0 %v2522
      %2926 = vmatpush.bf16.msra.mxu0 %v2520
      %2927 = vmatpush.bf16.msra.mxu0 %v2518
      %2928 = vmatpush.bf16.msra.mxu0 %v2516
      %2929 = vmatpush.bf16.msra.mxu0 %v2514
      %2930 = vmatpush.bf16.msra.mxu0 %v2512
      %2931 = vmatpush.bf16.msra.mxu0 %v2510
      %2932 = vmatmul.bf16.gmra.mxu0 %v1736
      %v2933 = vpop.f32.mrf.mxu0
      %v2934 = vadd.f32 %v2915, %v2933
      %v2935 = vpop.f32.mrf.mxu0
      %v2936 = vadd.f32 %v2917, %v2935
      %2937 = vmatmul.bf16.gmra.mxu0 %v1748
      %v2938 = vpop.f32.mrf.mxu0
      %v2939 = vadd.f32 %v2920, %v2938
      %v2940 = vpop.f32.mrf.mxu0
      %v2941 = vadd.f32 %v2922, %v2940
      %2942 = vdwg.mxu0
      %2943 = vmatpush.bf16.msra.mxu0 %v2540
      %2944 = vmatpush.bf16.msra.mxu0 %v2538
      %2945 = vmatpush.bf16.msra.mxu0 %v2536
      %2946 = vmatpush.bf16.msra.mxu0 %v2534
      %2947 = vmatpush.bf16.msra.mxu0 %v2532
      %2948 = vmatpush.bf16.msra.mxu0 %v2530
      %2949 = vmatpush.bf16.msra.mxu0 %v2528
      %2950 = vmatpush.bf16.msra.mxu0 %v2526
      %2951 = vmatmul.bf16.gmra.mxu0 %v1737
      %v2952 = vpop.f32.mrf.mxu0
      %v2953 = vadd.f32 %v2934, %v2952
      %v2954 = vpop.f32.mrf.mxu0
      %v2955 = vadd.f32 %v2936, %v2954
      %2956 = vmatmul.bf16.gmra.mxu0 %v1749
      %v2957 = vpop.f32.mrf.mxu0
      %v2958 = vadd.f32 %v2939, %v2957
      %v2959 = vpop.f32.mrf.mxu0
      %v2960 = vadd.f32 %v2941, %v2959
      %2961 = vdwg.mxu0
      %2962 = vmatpush.bf16.msra.mxu0 %v2365
      %2963 = vmatpush.bf16.msra.mxu0 %v2363
      %2964 = vmatpush.bf16.msra.mxu0 %v2361
      %2965 = vmatpush.bf16.msra.mxu0 %v2359
      %2966 = vmatpush.bf16.msra.mxu0 %v2357
      %2967 = vmatpush.bf16.msra.mxu0 %v2355
      %2968 = vmatpush.bf16.msra.mxu0 %v2353
      %2969 = vmatpush.bf16.msra.mxu0 %v2351
      %2970 = vmatmul.bf16.gmra.mxu0 %v1726
      %v2971 = vpop.f32.mrf.mxu0
      %v2972 = vadd.f32 %v1651, %v2971
      %v2973 = vpop.f32.mrf.mxu0
      %v2974 = vadd.f32 %v1651, %v2973
      %2975 = vmatmul.bf16.gmra.mxu0 %v1738
      %v2976 = vpop.f32.mrf.mxu0
      %v2977 = vadd.f32 %v1651, %v2976
      %v2978 = vpop.f32.mrf.mxu0
      %v2979 = vadd.f32 %v1651, %v2978
      %2980 = vdwg.mxu0
      %2981 = vmatpush.bf16.msra.mxu0 %v2381
      %2982 = vmatpush.bf16.msra.mxu0 %v2379
      %2983 = vmatpush.bf16.msra.mxu0 %v2377
      %2984 = vmatpush.bf16.msra.mxu0 %v2375
      %2985 = vmatpush.bf16.msra.mxu0 %v2373
      %2986 = vmatpush.bf16.msra.mxu0 %v2371
      %2987 = vmatpush.bf16.msra.mxu0 %v2369
      %2988 = vmatpush.bf16.msra.mxu0 %v2367
      %2989 = vmatmul.bf16.gmra.mxu0 %v1727
      %v2990 = vpop.f32.mrf.mxu0
      %v2991 = vadd.f32 %v2972, %v2990
      %v2992 = vpop.f32.mrf.mxu0
      %v2993 = vadd.f32 %v2974, %v2992
      %2994 = vmatmul.bf16.gmra.mxu0 %v1739
      %v2995 = vpop.f32.mrf.mxu0
      %v2996 = vadd.f32 %v2977, %v2995
      %v2997 = vpop.f32.mrf.mxu0
      %v2998 = vadd.f32 %v2979, %v2997
      %2999 = vdwg.mxu0
      %3000 = vmatpush.bf16.msra.mxu0 %v2397
      %3001 = vmatpush.bf16.msra.mxu0 %v2395
      %3002 = vmatpush.bf16.msra.mxu0 %v2393
      %3003 = vmatpush.bf16.msra.mxu0 %v2391
      %3004 = vmatpush.bf16.msra.mxu0 %v2389
      %3005 = vmatpush.bf16.msra.mxu0 %v2387
      %3006 = vmatpush.bf16.msra.mxu0 %v2385
      %3007 = vmatpush.bf16.msra.mxu0 %v2383
      %3008 = vmatmul.bf16.gmra.mxu0 %v1728
      %v3009 = vpop.f32.mrf.mxu0
      %v3010 = vadd.f32 %v2991, %v3009
      %v3011 = vpop.f32.mrf.mxu0
      %v3012 = vadd.f32 %v2993, %v3011
      %3013 = vmatmul.bf16.gmra.mxu0 %v1740
      %v3014 = vpop.f32.mrf.mxu0
      %v3015 = vadd.f32 %v2996, %v3014
      %v3016 = vpop.f32.mrf.mxu0
      %v3017 = vadd.f32 %v2998, %v3016
      %3018 = vdwg.mxu0
      %3019 = vmatpush.bf16.msra.mxu0 %v2413
      %3020 = vmatpush.bf16.msra.mxu0 %v2411
      %3021 = vmatpush.bf16.msra.mxu0 %v2409
      %3022 = vmatpush.bf16.msra.mxu0 %v2407
      %3023 = vmatpush.bf16.msra.mxu0 %v2405
      %3024 = vmatpush.bf16.msra.mxu0 %v2403
      %3025 = vmatpush.bf16.msra.mxu0 %v2401
      %3026 = vmatpush.bf16.msra.mxu0 %v2399
      %3027 = vmatmul.bf16.gmra.mxu0 %v1729
      %v3028 = vpop.f32.mrf.mxu0
      %v3029 = vadd.f32 %v3010, %v3028
      %v3030 = vpop.f32.mrf.mxu0
      %v3031 = vadd.f32 %v3012, %v3030
      %3032 = vmatmul.bf16.gmra.mxu0 %v1741
      %v3033 = vpop.f32.mrf.mxu0
      %v3034 = vadd.f32 %v3015, %v3033
      %v3035 = vpop.f32.mrf.mxu0
      %v3036 = vadd.f32 %v3017, %v3035
      %3037 = vdwg.mxu0
      %3038 = vmatpush.bf16.msra.mxu0 %v2429
      %3039 = vmatpush.bf16.msra.mxu0 %v2427
      %3040 = vmatpush.bf16.msra.mxu0 %v2425
      %3041 = vmatpush.bf16.msra.mxu0 %v2423
      %3042 = vmatpush.bf16.msra.mxu0 %v2421
      %3043 = vmatpush.bf16.msra.mxu0 %v2419
      %3044 = vmatpush.bf16.msra.mxu0 %v2417
      %3045 = vmatpush.bf16.msra.mxu0 %v2415
      %3046 = vmatmul.bf16.gmra.mxu0 %v1730
      %v3047 = vpop.f32.mrf.mxu0
      %v3048 = vadd.f32 %v3029, %v3047
      %v3049 = vpop.f32.mrf.mxu0
      %v3050 = vadd.f32 %v3031, %v3049
      %3051 = vmatmul.bf16.gmra.mxu0 %v1742
      %v3052 = vpop.f32.mrf.mxu0
      %v3053 = vadd.f32 %v3034, %v3052
      %v3054 = vpop.f32.mrf.mxu0
      %v3055 = vadd.f32 %v3036, %v3054
      %3056 = vdwg.mxu0
      %3057 = vmatpush.bf16.msra.mxu0 %v2445
      %3058 = vmatpush.bf16.msra.mxu0 %v2443
      %3059 = vmatpush.bf16.msra.mxu0 %v2441
      %3060 = vmatpush.bf16.msra.mxu0 %v2439
      %3061 = vmatpush.bf16.msra.mxu0 %v2437
      %3062 = vmatpush.bf16.msra.mxu0 %v2435
      %3063 = vmatpush.bf16.msra.mxu0 %v2433
      %3064 = vmatpush.bf16.msra.mxu0 %v2431
      %3065 = vmatmul.bf16.gmra.mxu0 %v1731
      %v3066 = vpop.f32.mrf.mxu0
      %v3067 = vadd.f32 %v3048, %v3066
      %v3068 = vpop.f32.mrf.mxu0
      %v3069 = vadd.f32 %v3050, %v3068
      %3070 = vmatmul.bf16.gmra.mxu0 %v1743
      %v3071 = vpop.f32.mrf.mxu0
      %v3072 = vadd.f32 %v3053, %v3071
      %v3073 = vpop.f32.mrf.mxu0
      %v3074 = vadd.f32 %v3055, %v3073
      %3075 = vdwg.mxu0
      %3076 = vmatpush.bf16.msra.mxu0 %v2461
      %3077 = vmatpush.bf16.msra.mxu0 %v2459
      %3078 = vmatpush.bf16.msra.mxu0 %v2457
      %3079 = vmatpush.bf16.msra.mxu0 %v2455
      %3080 = vmatpush.bf16.msra.mxu0 %v2453
      %3081 = vmatpush.bf16.msra.mxu0 %v2451
      %3082 = vmatpush.bf16.msra.mxu0 %v2449
      %3083 = vmatpush.bf16.msra.mxu0 %v2447
      %3084 = vmatmul.bf16.gmra.mxu0 %v1732
      %v3085 = vpop.f32.mrf.mxu0
      %v3086 = vadd.f32 %v3067, %v3085
      %v3087 = vpop.f32.mrf.mxu0
      %v3088 = vadd.f32 %v3069, %v3087
      %3089 = vmatmul.bf16.gmra.mxu0 %v1744
      %v3090 = vpop.f32.mrf.mxu0
      %v3091 = vadd.f32 %v3072, %v3090
      %v3092 = vpop.f32.mrf.mxu0
      %v3093 = vadd.f32 %v3074, %v3092
      %3094 = vdwg.mxu0
      %3095 = vmatpush.bf16.msra.mxu0 %v2477
      %3096 = vmatpush.bf16.msra.mxu0 %v2475
      %3097 = vmatpush.bf16.msra.mxu0 %v2473
      %3098 = vmatpush.bf16.msra.mxu0 %v2471
      %3099 = vmatpush.bf16.msra.mxu0 %v2469
      %3100 = vmatpush.bf16.msra.mxu0 %v2467
      %3101 = vmatpush.bf16.msra.mxu0 %v2465
      %3102 = vmatpush.bf16.msra.mxu0 %v2463
      %3103 = vmatmul.bf16.gmra.mxu0 %v1733
      %v3104 = vpop.f32.mrf.mxu0
      %v3105 = vadd.f32 %v3086, %v3104
      %v3106 = vpop.f32.mrf.mxu0
      %v3107 = vadd.f32 %v3088, %v3106
      %3108 = vmatmul.bf16.gmra.mxu0 %v1745
      %v3109 = vpop.f32.mrf.mxu0
      %v3110 = vadd.f32 %v3091, %v3109
      %v3111 = vpop.f32.mrf.mxu0
      %v3112 = vadd.f32 %v3093, %v3111
      %3113 = vdwg.mxu0
      %3114 = vmatpush.bf16.msra.mxu0 %v2493
      %3115 = vmatpush.bf16.msra.mxu0 %v2491
      %3116 = vmatpush.bf16.msra.mxu0 %v2489
      %3117 = vmatpush.bf16.msra.mxu0 %v2487
      %3118 = vmatpush.bf16.msra.mxu0 %v2485
      %3119 = vmatpush.bf16.msra.mxu0 %v2483
      %3120 = vmatpush.bf16.msra.mxu0 %v2481
      %3121 = vmatpush.bf16.msra.mxu0 %v2479
      %3122 = vmatmul.bf16.gmra.mxu0 %v1734
      %v3123 = vpop.f32.mrf.mxu0
      %v3124 = vadd.f32 %v3105, %v3123
      %v3125 = vpop.f32.mrf.mxu0
      %v3126 = vadd.f32 %v3107, %v3125
      %3127 = vmatmul.bf16.gmra.mxu0 %v1746
      %v3128 = vpop.f32.mrf.mxu0
      %v3129 = vadd.f32 %v3110, %v3128
      %v3130 = vpop.f32.mrf.mxu0
      %v3131 = vadd.f32 %v3112, %v3130
      %3132 = vdwg.mxu0
      %3133 = vmatpush.bf16.msra.mxu0 %v2509
      %3134 = vmatpush.bf16.msra.mxu0 %v2507
      %3135 = vmatpush.bf16.msra.mxu0 %v2505
      %3136 = vmatpush.bf16.msra.mxu0 %v2503
      %3137 = vmatpush.bf16.msra.mxu0 %v2501
      %3138 = vmatpush.bf16.msra.mxu0 %v2499
      %3139 = vmatpush.bf16.msra.mxu0 %v2497
      %3140 = vmatpush.bf16.msra.mxu0 %v2495
      %3141 = vmatmul.bf16.gmra.mxu0 %v1735
      %v3142 = vpop.f32.mrf.mxu0
      %v3143 = vadd.f32 %v3124, %v3142
      %v3144 = vpop.f32.mrf.mxu0
      %v3145 = vadd.f32 %v3126, %v3144
      %3146 = vmatmul.bf16.gmra.mxu0 %v1747
      %v3147 = vpop.f32.mrf.mxu0
      %v3148 = vadd.f32 %v3129, %v3147
      %v3149 = vpop.f32.mrf.mxu0
      %v3150 = vadd.f32 %v3131, %v3149
      %3151 = vdwg.mxu0
      %3152 = vmatpush.bf16.msra.mxu0 %v2525
      %3153 = vmatpush.bf16.msra.mxu0 %v2523
      %3154 = vmatpush.bf16.msra.mxu0 %v2521
      %3155 = vmatpush.bf16.msra.mxu0 %v2519
      %3156 = vmatpush.bf16.msra.mxu0 %v2517
      %3157 = vmatpush.bf16.msra.mxu0 %v2515
      %3158 = vmatpush.bf16.msra.mxu0 %v2513
      %3159 = vmatpush.bf16.msra.mxu0 %v2511
      %3160 = vmatmul.bf16.gmra.mxu0 %v1736
      %v3161 = vpop.f32.mrf.mxu0
      %v3162 = vadd.f32 %v3143, %v3161
      %v3163 = vpop.f32.mrf.mxu0
      %v3164 = vadd.f32 %v3145, %v3163
      %3165 = vmatmul.bf16.gmra.mxu0 %v1748
      %v3166 = vpop.f32.mrf.mxu0
      %v3167 = vadd.f32 %v3148, %v3166
      %v3168 = vpop.f32.mrf.mxu0
      %v3169 = vadd.f32 %v3150, %v3168
      %3170 = vdwg.mxu0
      %3171 = vmatpush.bf16.msra.mxu0 %v2541
      %3172 = vmatpush.bf16.msra.mxu0 %v2539
      %3173 = vmatpush.bf16.msra.mxu0 %v2537
      %3174 = vmatpush.bf16.msra.mxu0 %v2535
      %3175 = vmatpush.bf16.msra.mxu0 %v2533
      %3176 = vmatpush.bf16.msra.mxu0 %v2531
      %3177 = vmatpush.bf16.msra.mxu0 %v2529
      %3178 = vmatpush.bf16.msra.mxu0 %v2527
      %3179 = vmatmul.bf16.gmra.mxu0 %v1737
      %v3180 = vpop.f32.mrf.mxu0
      %v3181 = vadd.f32 %v3162, %v3180
      %v3182 = vpop.f32.mrf.mxu0
      %v3183 = vadd.f32 %v3164, %v3182
      %3184 = vmatmul.bf16.gmra.mxu0 %v1749
      %v3185 = vpop.f32.mrf.mxu0
      %v3186 = vadd.f32 %v3167, %v3185
      %v3187 = vpop.f32.mrf.mxu0
      %v3188 = vadd.f32 %v3169, %v3187
      %3189 = vdwg.mxu0
      %vm3190 = vcmp.ge.f32.partialorder %v2953, 0.0
      %vm3191 = vcmp.ge.f32.partialorder %v3181, 0.0
      %vm3192 = vcmp.ge.f32.partialorder %v2955, 0.0
      %vm3193 = vcmp.ge.f32.partialorder %v3183, 0.0
      %vm3194 = vcmp.ge.f32.partialorder %v2958, 0.0
      %vm3195 = vcmp.ge.f32.partialorder %v3186, 0.0
      %vm3196 = vcmp.ge.f32.partialorder %v2960, 0.0
      %vm3197 = vcmp.ge.f32.partialorder %v3188, 0.0
      %v3198 = vmul.f32 %v2953, 0.1
      %v3199 = vmul.f32 %v3181, 0.1
      %v3200 = vmul.f32 %v2955, 0.1
      %v3201 = vmul.f32 %v3183, 0.1
      %v3202 = vmul.f32 %v2958, 0.1
      %v3203 = vmul.f32 %v3186, 0.1
      %v3204 = vmul.f32 %v2960, 0.1
      %v3205 = vmul.f32 %v3188, 0.1
      %v3206 = vsel %vm3190, %v2953, %v3198
      %v3207 = vsel %vm3191, %v3181, %v3199
      %v3208 = vsel %vm3192, %v2955, %v3200
      %v3209 = vsel %vm3193, %v3183, %v3201
      %v3210 = vsel %vm3194, %v2958, %v3202
      %v3211 = vsel %vm3195, %v3186, %v3203
      %v3212 = vsel %vm3196, %v2960, %v3204
      %v3213 = vsel %vm3197, %v3188, %v3205
      %3214 = vst [vmem:[%s422] sm:$0xff] %v3206
      %3215 = vst [vmem:[%s422 + $0x8] sm:$0xff] %v3207
      %3216 = vst [vmem:[%s422 + $0x10] sm:$0xff] %v3208
      %3217 = vst [vmem:[%s422 + $0x18] sm:$0xff] %v3209
      %3218 = vst [vmem:[%s429] sm:$0xff] %v3210
      %3219 = vst [vmem:[%s429 + $0x8] sm:$0xff] %v3211
      %3220 = vst [vmem:[%s429 + $0x10] sm:$0xff] %v3212
      %3221 = vst [vmem:[%s429 + $0x18] sm:$0xff] %v3213
      %s3222 = smul.u32 2, %s22
      %p3223 = scmp.lt.s32.totalorder %s3222, 3
      %s3224 = scalar_select %p3223, %s3222, 3
      %s3225 = smul.addr %s3224, 2
      %s3226 = smul.addr %s3225, 8
      %s3227 = scalar_lea.vmem %s9, %s3226
      %s3228 = smul.u32 2, %s22
      %p3229 = scmp.lt.s32.totalorder %s3228, 3
      %s3230 = scalar_select %p3229, %s3228, 3
      %s3231 = smul.addr %s3230, 2
      %s3232 = smul.addr %s3231, 8
      %s3233 = scalar_lea.vmem %s10, %s3232
      // Predicated region
      $region57: #{up2d_forward.1} parent=55 // pred_check
        %p3234 = pneg %p244
      $region58: #{up2d_forward.1} parent=55 // pred_check_branch
        %3236 = sbr.rel (%p3234) target = $region60
      $region59: #{up2d_forward.1} parent=55 // pred_region
        %s3237 = smul.u32 2, %s22
      $region60: #{up2d_forward.1} parent=55 // pred_fallthru
        _
      // Predicated region
      $region61: #{up2d_forward.1} parent=55 // pred_check
        %p3238 = pneg %p270
      $region62: #{up2d_forward.1} parent=55 // pred_check_branch
        %3240 = sbr.rel (%p3238) target = $region64
      $region63: #{up2d_forward.1} parent=55 // pred_region
        %s3241 = smul.u32 2, %s22
      $region64: #{up2d_forward.1} parent=55 // pred_fallthru
        _
    $region56: #{up2d_forward.1} parent=5 // pred_fallthru
      _
    %p3242 = scmp.le.s32.totalorder 2, %s17
    // Predicated region
    $region65: #{up2d_forward.1} parent=5 // pred_check
      %p3243 = pneg %p3242
    $region66: #{up2d_forward.1} parent=5 // pred_check_branch
      %3245 = sbr.rel (%p3243) target = $region68
    $region67: #{up2d_forward.1} parent=5 // pred_region
      %s3246 = ssub.s32 %s17, 2
      // Predicated region
      $region69: #{up2d_forward.1} parent=67 // pred_check
        %p3247 = pneg %p250
      $region70: #{up2d_forward.1} parent=67 // pred_check_branch
        %3249 = sbr.rel (%p3247) target = $region72
      $region71: #{up2d_forward.1} parent=67 // pred_region
        %s3250 = smul.u32 2, %s23
        %p3251 = scmp.lt.s32.totalorder %s3250, 3
        %s3252 = scalar_select %p3251, %s3250, 3
        %s3253 = smul.addr %s3252, 2
        %s3254 = smul.addr %s3253, 8
        %s3255 = scalar_lea.vmem %s9, %s3254
      $region72: #{up2d_forward.1} parent=67 // pred_fallthru
        _
      // Predicated region
      $region73: #{up2d_forward.1} parent=67 // pred_check
        %p3256 = pneg %p276
      $region74: #{up2d_forward.1} parent=67 // pred_check_branch
        %3258 = sbr.rel (%p3256) target = $region76
      $region75: #{up2d_forward.1} parent=67 // pred_region
        %s3259 = smul.u32 2, %s23
        %p3260 = scmp.lt.s32.totalorder %s3259, 3
        %s3261 = scalar_select %p3260, %s3259, 3
        %s3262 = smul.addr %s3261, 2
        %s3263 = smul.addr %s3262, 8
        %s3264 = scalar_lea.vmem %s10, %s3263
      $region76: #{up2d_forward.1} parent=67 // pred_fallthru
        _
    $region68: #{up2d_forward.1} parent=5 // pred_fallthru
      _
  $region6: #{up2d_forward.1} parent=0 // loop_footer
    %s21 = sadd.s32 1, %s17
  $region7: #{up2d_forward.1} parent=0 // loop_footer_branch
    %16 = sbr.rel target = $region3
  $region8: #{up2d_forward.1} parent=0 // loop_exit
    _

</llo_original>
